<compile_context>
chip_gen: v7x
topology: tpu7x:2x2x1
jax: 0.10.0
libtpu: 0.0.40
codegen_flags: <defaults>
</compile_context>

<pallas_src>
import numpy as np
import jax
import jax.numpy as jnp
from jax.experimental import pallas as pl
from jax.experimental.pallas import tpu as pltpu


# ---------------------------------------------------------------------------
# Pallas kernels
# ---------------------------------------------------------------------------
def _twin_encoder_kernel(x_ref, s1_ref, s2_ref, s3_ref,
                         w1_ref, w2_ref, w3_ref,
                         b1_ref, b2_ref, b3_ref, o_ref):
    """One grid step = one encoder (enc1 or enc2), all 3 conv layers fused.

    x_ref : (HW0, Bs*Cin0)          bf16   feature columns, batch folded into cols
    s*_ref: (9, OHOW, HW)           bf16   one-hot im2col gather per kernel tap
    w*_ref: (9, Bs*Cin, Bs*Cout)    bf16   kron(I_Bs, W_tap) block-diag weights
    b*_ref: (1, Bs*Cout)            f32    bias tiled over the stacked batch
    o_ref : (OHOW3, Bs*Cout3)       f32
    """
    def conv_layer(x_bf16, s_ref, w_ref, b_ref):
        ohow = s_ref.shape[1]
        ncols = w_ref.shape[2]
        acc = jnp.zeros((ohow, ncols), jnp.float32)
        for k in range(9):                     # static unroll over kernel taps
            # gather (im2col row selection, padding rows are all-zero)
            p_k = jnp.dot(s_ref[k], x_bf16, preferred_element_type=jnp.float32)
            # S is 0/1 so the bf16 cast below is lossless
            acc = acc + jnp.dot(p_k.astype(jnp.bfloat16), w_ref[k],
                                preferred_element_type=jnp.float32)
        return jnp.maximum(acc + b_ref[...], 0.0)      # f32 epilogue

    h = conv_layer(x_ref[...], s1_ref, w1_ref, b1_ref)                   # (64, Bs*16)
    h = conv_layer(h.astype(jnp.bfloat16), s2_ref, w2_ref, b2_ref)       # (16, Bs*32)
    h = conv_layer(h.astype(jnp.bfloat16), s3_ref, w3_ref, b3_ref)       # (4,  Bs*64)
    o_ref[...] = h.astype(o_ref.dtype)


def _mlp_kernel(x_ref, w1_ref, b1_ref, w2_ref, b2_ref, o_ref):
    """sigmoid(relu(x @ W1^T + b1) . w2 + b2), batched over both disc calls."""
    h = jnp.dot(x_ref[...].astype(jnp.bfloat16), w1_ref[...],
                preferred_element_type=jnp.float32)
    h = jnp.maximum(h + b1_ref[...], 0.0)
    # Final Linear has out_dim=1: do it as a VPU reduction, not an N=1 MXU matmul.
    logits = jnp.sum(h * w2_ref[...], axis=-1, keepdims=True) + b2_ref[...]
    o_ref[...] = jax.nn.sigmoid(logits).astype(o_ref.dtype)


# ---------------------------------------------------------------------------
# Pallas wrappers
# ---------------------------------------------------------------------------
_VMEM_LIMIT = 16 * 1024 * 1024   # whole model + activations are ~2 MiB; fits every gen


def twin_encoder(x_stacked, prep):
    """x_stacked: (2, HW0, Bs*Cin0) -> (2, OHOW3, Bs*Cout3)."""
    s1, s2, s3 = prep["s"]
    w1, w2, w3 = prep["w"]
    b1, b2, b3 = prep["b"]
    p3 = s3.shape[1]
    out_cols = w3.shape[-1]
    return pl.pallas_call(
        _twin_encoder_kernel,
        out_shape=jax.ShapeDtypeStruct((2, p3, out_cols), jnp.float32),
        grid=(2,),
        in_specs=[
            pl.BlockSpec((None,) + x_stacked.shape[1:], lambda e: (e, 0, 0)),
            pl.BlockSpec(s1.shape, lambda e: (0, 0, 0)),
            pl.BlockSpec(s2.shape, lambda e: (0, 0, 0)),
            pl.BlockSpec(s3.shape, lambda e: (0, 0, 0)),
            pl.BlockSpec((None,) + w1.shape[1:], lambda e: (e, 0, 0, 0)),
            pl.BlockSpec((None,) + w2.shape[1:], lambda e: (e, 0, 0, 0)),
            pl.BlockSpec((None,) + w3.shape[1:], lambda e: (e, 0, 0, 0)),
            pl.BlockSpec((None,) + b1.shape[1:], lambda e: (e, 0, 0)),
            pl.BlockSpec((None,) + b2.shape[1:], lambda e: (e, 0, 0)),
            pl.BlockSpec((None,) + b3.shape[1:], lambda e: (e, 0, 0)),
        ],
        out_specs=pl.BlockSpec((None, p3, out_cols), lambda e: (e, 0, 0)),
        compiler_params=pltpu.CompilerParams(
            dimension_semantics=("parallel",),          # enc1 / enc2 on separate TCs (v7x)
            vmem_limit_bytes=_VMEM_LIMIT),
    )(x_stacked, s1, s2, s3, w1, w2, w3, b1, b2, b3)


def mlp_discriminator(x, disc):
    """x: (B, 512) -> (B, 1); both discriminator invocations batched together."""
    w1t, b1, w2row, b2 = disc
    B, D = x.shape
    H = w1t.shape[1]
    return pl.pallas_call(
        _mlp_kernel,
        out_shape=jax.ShapeDtypeStruct((B, 1), jnp.float32),
        grid=(1,),
        in_specs=[
            pl.BlockSpec((B, D), lambda i: (0, 0)),
            pl.BlockSpec((D, H), lambda i: (0, 0)),
            pl.BlockSpec((1, H), lambda i: (0, 0)),
            pl.BlockSpec((1, H), lambda i: (0, 0)),
            pl.BlockSpec((1, 1), lambda i: (0, 0)),
        ],
        out_specs=pl.BlockSpec((B, 1), lambda i: (0, 0)),
        compiler_params=pltpu.CompilerParams(
            dimension_semantics=("arbitrary",),
            vmem_limit_bytes=_VMEM_LIMIT),
    )(x, w1t, b1, w2row, b2)


# ---------------------------------------------------------------------------
# Init-time preprocessing (hoisted out of the hot path)
# ---------------------------------------------------------------------------
def _selection_matrices(h, w, kh=3, kw=3, stride=2, pad=1):
    """(9, OH*OW, H*W) 0/1 gather matrices; padded taps are all-zero rows."""
    oh = (h + 2 * pad - kh) // stride + 1
    ow = (w + 2 * pad - kw) // stride + 1
    s = np.zeros((kh * kw, oh * ow, h * w), np.float32)
    for ki in range(kh):
        for kj in range(kw):
            k = ki * kw + kj
            for oi in range(oh):
                for oj in range(ow):
                    ii = oi * stride - pad + ki
                    jj = oj * stride - pad + kj
                    if 0 <= ii < h and 0 <= jj < w:
                        s[k, oi * ow + oj, ii * w + jj] = 1.0
    return jnp.asarray(s, jnp.bfloat16)


def _block_conv_weight(w, bs):
    """torch (Cout,Cin,3,3) -> (9, bs*Cin, bs*Cout) = per-tap kron(I_bs, W_tap)."""
    cout, cin, kh, kw = w.shape
    wk = jnp.transpose(w, (2, 3, 1, 0)).reshape(kh * kw, cin, cout)   # (9, Cin, Cout)
    eye = jnp.eye(bs, dtype=w.dtype)
    wblk = jnp.einsum('ab,kcd->kacbd', eye, wk).reshape(kh * kw, bs * cin, bs * cout)
    return wblk.astype(jnp.bfloat16)


def _tile_bias(b, bs):
    return jnp.tile(b, bs).reshape(1, bs * b.shape[0]).astype(jnp.float32)


def prepare_params(params, batch):
    """One-time preprocessing: gather matrices, kron weights, transposed MLP weights."""
    bs = 2 * batch                       # the two images are stacked along batch
    s_mats = [_selection_matrices(hw, hw) for hw in (16, 8, 4)]
    w_stacked, b_stacked = [], []
    for layer in range(3):
        w1e, b1e = params["encoder"][layer]
        w2e, b2e = params["encoder2"][layer]
        w_stacked.append(jnp.stack([_block_conv_weight(w1e, bs),
                                    _block_conv_weight(w2e, bs)], axis=0))
        b_stacked.append(jnp.stack([_tile_bias(b1e, bs),
                                    _tile_bias(b2e, bs)], axis=0))
    w1, b1, w2, b2 = params["discriminator"]
    disc = (jnp.transpose(w1).astype(jnp.bfloat16),      # (512, 256)
            b1.reshape(1, -1).astype(jnp.float32),       # (1, 256)
            w2.reshape(1, -1).astype(jnp.float32),       # (1, 256) for VPU reduction
            b2.reshape(1, 1).astype(jnp.float32))        # (1, 1)
    return {"s": s_mats, "w": w_stacked, "b": b_stacked, "disc": disc, "batch": batch}


# ---------------------------------------------------------------------------
# Forward pass
# ---------------------------------------------------------------------------
def _to_feature_columns(x_nchw):
    """(Bs, 1, H, W) NCHW -> (H*W, Bs*C) bf16 (spatial rows, batch x channel cols)."""
    bsz, c, h, w = x_nchw.shape
    return jnp.transpose(x_nchw, (2, 3, 0, 1)).reshape(h * w, bsz * c).astype(jnp.bfloat16)


def _flatten_torch_order(y, bs, c):
    """(P, bs*c) with y[p, b*c+d] = feat[b,p,d]  ->  (bs, c*P), torch NCHW .view(B,-1)."""
    p = y.shape[0]
    return jnp.transpose(y.reshape(p, bs, c), (1, 2, 0)).reshape(bs, c * p)


def similarity_metric_forward(image_1, image_2, prepared):
    bimg = image_1.shape[0]
    bs = 2 * bimg
    # encoder-1 processes [image_1; image_2]; encoder-2 processes [image_2; image_1]
    x_stacked = jnp.stack(
        [_to_feature_columns(jnp.concatenate([image_1, image_2], axis=0)),
         _to_feature_columns(jnp.concatenate([image_2, image_1], axis=0))], axis=0)

    enc_out = twin_encoder(x_stacked, prepared)          # (2, 4, bs*64), f32

    f1 = _flatten_torch_order(enc_out[0], bs, 64)        # (bs, 256)  enc1 features
    f2 = _flatten_torch_order(enc_out[1], bs, 64)        # (bs, 256)  enc2 features
    disc_in = jnp.concatenate([f1, f2], axis=1)          # rows 0..B-1 = "6", B..2B-1 = inverse

    probs = mlp_discriminator(disc_in, prepared["disc"])  # (bs, 1)
    return probs[:bimg], probs[bimg:]


# ---------------------------------------------------------------------------
# Deterministic parameter initialization (torch layouts)
# ---------------------------------------------------------------------------
def init_params(key):
    keys = jax.random.split(key, 16)
    ki = iter(keys)

    def conv_layer(cout, cin):
        w = 0.1 * jax.random.normal(next(ki), (cout, cin, 3, 3), jnp.float32)
        b = 0.01 * jax.random.normal(next(ki), (cout,), jnp.float32)
        return (w, b)

    def make_encoder():
        # 1->16->32->64 channels, 3x3 stride-2 pad-1 convs: 16x16 -> 8 -> 4 -> 2
        return [conv_layer(16, 1), conv_layer(32, 16), conv_layer(64, 32)]

    encoder = make_encoder()
    encoder2 = make_encoder()

    # MetaMLP(512): Linear(512,256) -> ReLU -> Linear(256,1) -> Sigmoid
    w1 = 0.05 * jax.random.normal(next(ki), (256, 512), jnp.float32)
    b1 = 0.01 * jax.random.normal(next(ki), (256,), jnp.float32)
    w2 = 0.05 * jax.random.normal(next(ki), (1, 256), jnp.float32)
    b2 = 0.01 * jax.random.normal(next(ki), (1,), jnp.float32)

    return {"encoder": encoder, "encoder2": encoder2, "discriminator": (w1, b1, w2, b2)}


# ---------------------------------------------------------------------------
# Pure-JAX reference (for correctness check of the Pallas path)
# ---------------------------------------------------------------------------
def _reference_forward(image_1, image_2, params):
    def conv_relu(x, w, b):
        y = jax.lax.conv_general_dilated(
            x, w, window_strides=(2, 2), padding=((1, 1), (1, 1)),
            dimension_numbers=("NCHW", "OIHW", "NCHW"))
        return jax.nn.relu(y + b.reshape(1, -1, 1, 1))

    def enc(x, layers):
        for w, b in layers:
            x = conv_relu(x, w, b)
        return x.reshape(x.shape[0], -1)

    w1, b1, w2, b2 = params["discriminator"]

    def disc(x):
        h = jax.nn.relu(x @ w1.T + b1)
        return jax.nn.sigmoid(h @ w2.T + b2)

    o6 = enc(image_1, params["encoder"])
    o26 = enc(image_2, params["encoder2"])
    oi = enc(image_2, params["encoder"])
    oi2 = enc(image_1, params["encoder2"])
    return (disc(jnp.concatenate([o6, o26], 1)),
            disc(jnp.concatenate([oi, oi2], 1)))


if __name__ == "__main__":
    key = jax.random.PRNGKey(0)
    k_params, k_img1, k_img2 = jax.random.split(key, 3)

    params = init_params(k_params)
    prepared = prepare_params(params, batch=2)          # hoisted preprocessing

    image_1 = jax.random.normal(k_img1, (2, 1, 16, 16), jnp.float32)   # NCHW like torch
    image_2 = jax.random.normal(k_img2, (2, 1, 16, 16), jnp.float32)

    fwd = jax.jit(lambda a, b: similarity_metric_forward(a, b, prepared))
    output, output_inv = fwd(image_1, image_2)
    jax.block_until_ready((output, output_inv))

    ref_out, ref_inv = _reference_forward(image_1, image_2, params)

    assert output.shape == (2, 1) and output_inv.shape == (2, 1)
    assert bool(jnp.all(jnp.isfinite(output))) and bool(jnp.all(jnp.isfinite(output_inv)))
    # bf16 MXU operands / f32 accumulate: generous tolerance on the sigmoid outputs
    assert float(jnp.max(jnp.abs(output - ref_out))) < 5e-2
    assert float(jnp.max(jnp.abs(output_inv - ref_inv))) < 5e-2
    print("KERNEL_OK")
</pallas_src>

<mosaic_0001>
module attributes {stable_mosaic.version = 11 : i64} {
  func.func @_twin_encoder_kernel(%arg0: i32, %arg1: memref<1x256x4xbf16, #tpu.memory_space<vmem>>, %arg2: memref<9x64x256xbf16, #tpu.memory_space<vmem>>, %arg3: memref<9x16x64xbf16, #tpu.memory_space<vmem>>, %arg4: memref<9x4x16xbf16, #tpu.memory_space<vmem>>, %arg5: memref<1x9x4x64xbf16, #tpu.memory_space<vmem>>, %arg6: memref<1x9x64x128xbf16, #tpu.memory_space<vmem>>, %arg7: memref<1x9x128x256xbf16, #tpu.memory_space<vmem>>, %arg8: memref<1x1x64xf32, #tpu.memory_space<vmem>>, %arg9: memref<1x1x128xf32, #tpu.memory_space<vmem>>, %arg10: memref<1x1x256xf32, #tpu.memory_space<vmem>>, %arg11: memref<1x4x256xf32, #tpu.memory_space<vmem>>) attributes {dimension_semantics = [#tpu.dimension_semantics<parallel>], iteration_bounds = array<i64: 2>, scalar_prefetch = 0 : i64, scratch_operands = 0 : i64, tpu.core_type = #tpu.core_type<tc>, window_params = [{transform_indices = @transform_0, window_bounds = array<i64: 1, 256, 4>}, {pipeline_mode = #tpu.pipeline_mode<synchronous>, transform_indices = @transform_1, window_bounds = array<i64: 9, 64, 256>}, {pipeline_mode = #tpu.pipeline_mode<synchronous>, transform_indices = @transform_2, window_bounds = array<i64: 9, 16, 64>}, {pipeline_mode = #tpu.pipeline_mode<synchronous>, transform_indices = @transform_3, window_bounds = array<i64: 9, 4, 16>}, {transform_indices = @transform_4, window_bounds = array<i64: 1, 9, 4, 64>}, {transform_indices = @transform_5, window_bounds = array<i64: 1, 9, 64, 128>}, {transform_indices = @transform_6, window_bounds = array<i64: 1, 9, 128, 256>}, {transform_indices = @transform_7, window_bounds = array<i64: 1, 1, 64>}, {transform_indices = @transform_8, window_bounds = array<i64: 1, 1, 128>}, {transform_indices = @transform_9, window_bounds = array<i64: 1, 1, 256>}, {transform_indices = @transform_10, window_bounds = array<i64: 1, 4, 256>}]} {
    %c0 = arith.constant 0 : index
    %c0_0 = arith.constant 0 : index
    %c0_1 = arith.constant 0 : index
    %0 = vector.load %arg1[%c0, %c0_0, %c0_1] : memref<1x256x4xbf16, #tpu.memory_space<vmem>>, vector<1x256x4xbf16>
    %1 = vector.shape_cast %0 : vector<1x256x4xbf16> to vector<256x4xbf16>
    %cst = arith.constant 0.000000e+00 : f32
    %2 = vector.broadcast %cst : f32 to vector<64x64xf32>
    %c0_2 = arith.constant 0 : index
    %c0_3 = arith.constant 0 : index
    %c0_4 = arith.constant 0 : index
    %3 = vector.load %arg2[%c0_2, %c0_3, %c0_4] : memref<9x64x256xbf16, #tpu.memory_space<vmem>>, vector<1x64x256xbf16>
    %4 = vector.shape_cast %3 : vector<1x64x256xbf16> to vector<64x256xbf16>
    %cst_5 = arith.constant dense<0.000000e+00> : vector<64x4xf32>
    %5 = tpu.matmul %4, %1, %cst_5 {dimension_numbers = #tpu.dot_dimension_numbers<[1], [0], [0], [1], [0, 0, 1, 1], [], []>} : vector<64x256xbf16>, vector<256x4xbf16>, vector<64x4xf32> -> vector<64x4xf32>
    %6 = arith.truncf %5 : vector<64x4xf32> to vector<64x4xbf16>
    %c0_6 = arith.constant 0 : index
    %c0_7 = arith.constant 0 : index
    %c0_8 = arith.constant 0 : index
    %c0_9 = arith.constant 0 : index
    %7 = vector.load %arg5[%c0_6, %c0_7, %c0_8, %c0_9] : memref<1x9x4x64xbf16, #tpu.memory_space<vmem>>, vector<1x1x4x64xbf16>
    %8 = vector.shape_cast %7 : vector<1x1x4x64xbf16> to vector<4x64xbf16>
    %cst_10 = arith.constant dense<0.000000e+00> : vector<64x64xf32>
    %9 = tpu.matmul %6, %8, %cst_10 {dimension_numbers = #tpu.dot_dimension_numbers<[1], [0], [0], [1], [0, 0, 1, 1], [], []>} : vector<64x4xbf16>, vector<4x64xbf16>, vector<64x64xf32> -> vector<64x64xf32>
    %10 = arith.addf %2, %9 : vector<64x64xf32>
    %c1 = arith.constant 1 : index
    %c0_11 = arith.constant 0 : index
    %c0_12 = arith.constant 0 : index
    %11 = vector.load %arg2[%c1, %c0_11, %c0_12] : memref<9x64x256xbf16, #tpu.memory_space<vmem>>, vector<1x64x256xbf16>
    %12 = vector.shape_cast %11 : vector<1x64x256xbf16> to vector<64x256xbf16>
    %cst_13 = arith.constant dense<0.000000e+00> : vector<64x4xf32>
    %13 = tpu.matmul %12, %1, %cst_13 {dimension_numbers = #tpu.dot_dimension_numbers<[1], [0], [0], [1], [0, 0, 1, 1], [], []>} : vector<64x256xbf16>, vector<256x4xbf16>, vector<64x4xf32> -> vector<64x4xf32>
    %14 = arith.truncf %13 : vector<64x4xf32> to vector<64x4xbf16>
    %c0_14 = arith.constant 0 : index
    %c1_15 = arith.constant 1 : index
    %c0_16 = arith.constant 0 : index
    %c0_17 = arith.constant 0 : index
    %15 = vector.load %arg5[%c0_14, %c1_15, %c0_16, %c0_17] : memref<1x9x4x64xbf16, #tpu.memory_space<vmem>>, vector<1x1x4x64xbf16>
    %16 = vector.shape_cast %15 : vector<1x1x4x64xbf16> to vector<4x64xbf16>
    %cst_18 = arith.constant dense<0.000000e+00> : vector<64x64xf32>
    %17 = tpu.matmul %14, %16, %cst_18 {dimension_numbers = #tpu.dot_dimension_numbers<[1], [0], [0], [1], [0, 0, 1, 1], [], []>} : vector<64x4xbf16>, vector<4x64xbf16>, vector<64x64xf32> -> vector<64x64xf32>
    %18 = arith.addf %10, %17 : vector<64x64xf32>
    %c2 = arith.constant 2 : index
    %c0_19 = arith.constant 0 : index
    %c0_20 = arith.constant 0 : index
    %19 = vector.load %arg2[%c2, %c0_19, %c0_20] : memref<9x64x256xbf16, #tpu.memory_space<vmem>>, vector<1x64x256xbf16>
    %20 = vector.shape_cast %19 : vector<1x64x256xbf16> to vector<64x256xbf16>
    %cst_21 = arith.constant dense<0.000000e+00> : vector<64x4xf32>
    %21 = tpu.matmul %20, %1, %cst_21 {dimension_numbers = #tpu.dot_dimension_numbers<[1], [0], [0], [1], [0, 0, 1, 1], [], []>} : vector<64x256xbf16>, vector<256x4xbf16>, vector<64x4xf32> -> vector<64x4xf32>
    %22 = arith.truncf %21 : vector<64x4xf32> to vector<64x4xbf16>
    %c0_22 = arith.constant 0 : index
    %c2_23 = arith.constant 2 : index
    %c0_24 = arith.constant 0 : index
    %c0_25 = arith.constant 0 : index
    %23 = vector.load %arg5[%c0_22, %c2_23, %c0_24, %c0_25] : memref<1x9x4x64xbf16, #tpu.memory_space<vmem>>, vector<1x1x4x64xbf16>
    %24 = vector.shape_cast %23 : vector<1x1x4x64xbf16> to vector<4x64xbf16>
    %cst_26 = arith.constant dense<0.000000e+00> : vector<64x64xf32>
    %25 = tpu.matmul %22, %24, %cst_26 {dimension_numbers = #tpu.dot_dimension_numbers<[1], [0], [0], [1], [0, 0, 1, 1], [], []>} : vector<64x4xbf16>, vector<4x64xbf16>, vector<64x64xf32> -> vector<64x64xf32>
    %26 = arith.addf %18, %25 : vector<64x64xf32>
    %c3 = arith.constant 3 : index
    %c0_27 = arith.constant 0 : index
    %c0_28 = arith.constant 0 : index
    %27 = vector.load %arg2[%c3, %c0_27, %c0_28] : memref<9x64x256xbf16, #tpu.memory_space<vmem>>, vector<1x64x256xbf16>
    %28 = vector.shape_cast %27 : vector<1x64x256xbf16> to vector<64x256xbf16>
    %cst_29 = arith.constant dense<0.000000e+00> : vector<64x4xf32>
    %29 = tpu.matmul %28, %1, %cst_29 {dimension_numbers = #tpu.dot_dimension_numbers<[1], [0], [0], [1], [0, 0, 1, 1], [], []>} : vector<64x256xbf16>, vector<256x4xbf16>, vector<64x4xf32> -> vector<64x4xf32>
    %30 = arith.truncf %29 : vector<64x4xf32> to vector<64x4xbf16>
    %c0_30 = arith.constant 0 : index
    %c3_31 = arith.constant 3 : index
    %c0_32 = arith.constant 0 : index
    %c0_33 = arith.constant 0 : index
    %31 = vector.load %arg5[%c0_30, %c3_31, %c0_32, %c0_33] : memref<1x9x4x64xbf16, #tpu.memory_space<vmem>>, vector<1x1x4x64xbf16>
    %32 = vector.shape_cast %31 : vector<1x1x4x64xbf16> to vector<4x64xbf16>
    %cst_34 = arith.constant dense<0.000000e+00> : vector<64x64xf32>
    %33 = tpu.matmul %30, %32, %cst_34 {dimension_numbers = #tpu.dot_dimension_numbers<[1], [0], [0], [1], [0, 0, 1, 1], [], []>} : vector<64x4xbf16>, vector<4x64xbf16>, vector<64x64xf32> -> vector<64x64xf32>
    %34 = arith.addf %26, %33 : vector<64x64xf32>
    %c4 = arith.constant 4 : index
    %c0_35 = arith.constant 0 : index
    %c0_36 = arith.constant 0 : index
    %35 = vector.load %arg2[%c4, %c0_35, %c0_36] : memref<9x64x256xbf16, #tpu.memory_space<vmem>>, vector<1x64x256xbf16>
    %36 = vector.shape_cast %35 : vector<1x64x256xbf16> to vector<64x256xbf16>
    %cst_37 = arith.constant dense<0.000000e+00> : vector<64x4xf32>
    %37 = tpu.matmul %36, %1, %cst_37 {dimension_numbers = #tpu.dot_dimension_numbers<[1], [0], [0], [1], [0, 0, 1, 1], [], []>} : vector<64x256xbf16>, vector<256x4xbf16>, vector<64x4xf32> -> vector<64x4xf32>
    %38 = arith.truncf %37 : vector<64x4xf32> to vector<64x4xbf16>
    %c0_38 = arith.constant 0 : index
    %c4_39 = arith.constant 4 : index
    %c0_40 = arith.constant 0 : index
    %c0_41 = arith.constant 0 : index
    %39 = vector.load %arg5[%c0_38, %c4_39, %c0_40, %c0_41] : memref<1x9x4x64xbf16, #tpu.memory_space<vmem>>, vector<1x1x4x64xbf16>
    %40 = vector.shape_cast %39 : vector<1x1x4x64xbf16> to vector<4x64xbf16>
    %cst_42 = arith.constant dense<0.000000e+00> : vector<64x64xf32>
    %41 = tpu.matmul %38, %40, %cst_42 {dimension_numbers = #tpu.dot_dimension_numbers<[1], [0], [0], [1], [0, 0, 1, 1], [], []>} : vector<64x4xbf16>, vector<4x64xbf16>, vector<64x64xf32> -> vector<64x64xf32>
    %42 = arith.addf %34, %41 : vector<64x64xf32>
    %c5 = arith.constant 5 : index
    %c0_43 = arith.constant 0 : index
    %c0_44 = arith.constant 0 : index
    %43 = vector.load %arg2[%c5, %c0_43, %c0_44] : memref<9x64x256xbf16, #tpu.memory_space<vmem>>, vector<1x64x256xbf16>
    %44 = vector.shape_cast %43 : vector<1x64x256xbf16> to vector<64x256xbf16>
    %cst_45 = arith.constant dense<0.000000e+00> : vector<64x4xf32>
    %45 = tpu.matmul %44, %1, %cst_45 {dimension_numbers = #tpu.dot_dimension_numbers<[1], [0], [0], [1], [0, 0, 1, 1], [], []>} : vector<64x256xbf16>, vector<256x4xbf16>, vector<64x4xf32> -> vector<64x4xf32>
    %46 = arith.truncf %45 : vector<64x4xf32> to vector<64x4xbf16>
    %c0_46 = arith.constant 0 : index
    %c5_47 = arith.constant 5 : index
    %c0_48 = arith.constant 0 : index
    %c0_49 = arith.constant 0 : index
    %47 = vector.load %arg5[%c0_46, %c5_47, %c0_48, %c0_49] : memref<1x9x4x64xbf16, #tpu.memory_space<vmem>>, vector<1x1x4x64xbf16>
    %48 = vector.shape_cast %47 : vector<1x1x4x64xbf16> to vector<4x64xbf16>
    %cst_50 = arith.constant dense<0.000000e+00> : vector<64x64xf32>
    %49 = tpu.matmul %46, %48, %cst_50 {dimension_numbers = #tpu.dot_dimension_numbers<[1], [0], [0], [1], [0, 0, 1, 1], [], []>} : vector<64x4xbf16>, vector<4x64xbf16>, vector<64x64xf32> -> vector<64x64xf32>
    %50 = arith.addf %42, %49 : vector<64x64xf32>
    %c6 = arith.constant 6 : index
    %c0_51 = arith.constant 0 : index
    %c0_52 = arith.constant 0 : index
    %51 = vector.load %arg2[%c6, %c0_51, %c0_52] : memref<9x64x256xbf16, #tpu.memory_space<vmem>>, vector<1x64x256xbf16>
    %52 = vector.shape_cast %51 : vector<1x64x256xbf16> to vector<64x256xbf16>
    %cst_53 = arith.constant dense<0.000000e+00> : vector<64x4xf32>
    %53 = tpu.matmul %52, %1, %cst_53 {dimension_numbers = #tpu.dot_dimension_numbers<[1], [0], [0], [1], [0, 0, 1, 1], [], []>} : vector<64x256xbf16>, vector<256x4xbf16>, vector<64x4xf32> -> vector<64x4xf32>
    %54 = arith.truncf %53 : vector<64x4xf32> to vector<64x4xbf16>
    %c0_54 = arith.constant 0 : index
    %c6_55 = arith.constant 6 : index
    %c0_56 = arith.constant 0 : index
    %c0_57 = arith.constant 0 : index
    %55 = vector.load %arg5[%c0_54, %c6_55, %c0_56, %c0_57] : memref<1x9x4x64xbf16, #tpu.memory_space<vmem>>, vector<1x1x4x64xbf16>
    %56 = vector.shape_cast %55 : vector<1x1x4x64xbf16> to vector<4x64xbf16>
    %cst_58 = arith.constant dense<0.000000e+00> : vector<64x64xf32>
    %57 = tpu.matmul %54, %56, %cst_58 {dimension_numbers = #tpu.dot_dimension_numbers<[1], [0], [0], [1], [0, 0, 1, 1], [], []>} : vector<64x4xbf16>, vector<4x64xbf16>, vector<64x64xf32> -> vector<64x64xf32>
    %58 = arith.addf %50, %57 : vector<64x64xf32>
    %c7 = arith.constant 7 : index
    %c0_59 = arith.constant 0 : index
    %c0_60 = arith.constant 0 : index
    %59 = vector.load %arg2[%c7, %c0_59, %c0_60] : memref<9x64x256xbf16, #tpu.memory_space<vmem>>, vector<1x64x256xbf16>
    %60 = vector.shape_cast %59 : vector<1x64x256xbf16> to vector<64x256xbf16>
    %cst_61 = arith.constant dense<0.000000e+00> : vector<64x4xf32>
    %61 = tpu.matmul %60, %1, %cst_61 {dimension_numbers = #tpu.dot_dimension_numbers<[1], [0], [0], [1], [0, 0, 1, 1], [], []>} : vector<64x256xbf16>, vector<256x4xbf16>, vector<64x4xf32> -> vector<64x4xf32>
    %62 = arith.truncf %61 : vector<64x4xf32> to vector<64x4xbf16>
    %c0_62 = arith.constant 0 : index
    %c7_63 = arith.constant 7 : index
    %c0_64 = arith.constant 0 : index
    %c0_65 = arith.constant 0 : index
    %63 = vector.load %arg5[%c0_62, %c7_63, %c0_64, %c0_65] : memref<1x9x4x64xbf16, #tpu.memory_space<vmem>>, vector<1x1x4x64xbf16>
    %64 = vector.shape_cast %63 : vector<1x1x4x64xbf16> to vector<4x64xbf16>
    %cst_66 = arith.constant dense<0.000000e+00> : vector<64x64xf32>
    %65 = tpu.matmul %62, %64, %cst_66 {dimension_numbers = #tpu.dot_dimension_numbers<[1], [0], [0], [1], [0, 0, 1, 1], [], []>} : vector<64x4xbf16>, vector<4x64xbf16>, vector<64x64xf32> -> vector<64x64xf32>
    %66 = arith.addf %58, %65 : vector<64x64xf32>
    %c8 = arith.constant 8 : index
    %c0_67 = arith.constant 0 : index
    %c0_68 = arith.constant 0 : index
    %67 = vector.load %arg2[%c8, %c0_67, %c0_68] : memref<9x64x256xbf16, #tpu.memory_space<vmem>>, vector<1x64x256xbf16>
    %68 = vector.shape_cast %67 : vector<1x64x256xbf16> to vector<64x256xbf16>
    %cst_69 = arith.constant dense<0.000000e+00> : vector<64x4xf32>
    %69 = tpu.matmul %68, %1, %cst_69 {dimension_numbers = #tpu.dot_dimension_numbers<[1], [0], [0], [1], [0, 0, 1, 1], [], []>} : vector<64x256xbf16>, vector<256x4xbf16>, vector<64x4xf32> -> vector<64x4xf32>
    %70 = arith.truncf %69 : vector<64x4xf32> to vector<64x4xbf16>
    %c0_70 = arith.constant 0 : index
    %c8_71 = arith.constant 8 : index
    %c0_72 = arith.constant 0 : index
    %c0_73 = arith.constant 0 : index
    %71 = vector.load %arg5[%c0_70, %c8_71, %c0_72, %c0_73] : memref<1x9x4x64xbf16, #tpu.memory_space<vmem>>, vector<1x1x4x64xbf16>
    %72 = vector.shape_cast %71 : vector<1x1x4x64xbf16> to vector<4x64xbf16>
    %cst_74 = arith.constant dense<0.000000e+00> : vector<64x64xf32>
    %73 = tpu.matmul %70, %72, %cst_74 {dimension_numbers = #tpu.dot_dimension_numbers<[1], [0], [0], [1], [0, 0, 1, 1], [], []>} : vector<64x4xbf16>, vector<4x64xbf16>, vector<64x64xf32> -> vector<64x64xf32>
    %74 = arith.addf %66, %73 : vector<64x64xf32>
    %c0_75 = arith.constant 0 : index
    %c0_76 = arith.constant 0 : index
    %c0_77 = arith.constant 0 : index
    %75 = vector.load %arg8[%c0_75, %c0_76, %c0_77] : memref<1x1x64xf32, #tpu.memory_space<vmem>>, vector<1x1x64xf32>
    %76 = vector.shape_cast %75 : vector<1x1x64xf32> to vector<1x64xf32>
    %77 = vector.broadcast %76 : vector<1x64xf32> to vector<64x64xf32>
    %78 = arith.addf %74, %77 : vector<64x64xf32>
    %cst_78 = arith.constant 0.000000e+00 : f32
    %79 = vector.broadcast %cst_78 : f32 to vector<64x64xf32>
    %80 = arith.maximumf %78, %79 : vector<64x64xf32>
    %81 = arith.truncf %80 : vector<64x64xf32> to vector<64x64xbf16>
    %cst_79 = arith.constant 0.000000e+00 : f32
    %82 = vector.broadcast %cst_79 : f32 to vector<16x128xf32>
    %c0_80 = arith.constant 0 : index
    %c0_81 = arith.constant 0 : index
    %c0_82 = arith.constant 0 : index
    %83 = vector.load %arg3[%c0_80, %c0_81, %c0_82] : memref<9x16x64xbf16, #tpu.memory_space<vmem>>, vector<1x16x64xbf16>
    %84 = vector.shape_cast %83 : vector<1x16x64xbf16> to vector<16x64xbf16>
    %cst_83 = arith.constant dense<0.000000e+00> : vector<16x64xf32>
    %85 = tpu.matmul %84, %81, %cst_83 {dimension_numbers = #tpu.dot_dimension_numbers<[1], [0], [0], [1], [0, 0, 1, 1], [], []>} : vector<16x64xbf16>, vector<64x64xbf16>, vector<16x64xf32> -> vector<16x64xf32>
    %86 = arith.truncf %85 : vector<16x64xf32> to vector<16x64xbf16>
    %c0_84 = arith.constant 0 : index
    %c0_85 = arith.constant 0 : index
    %c0_86 = arith.constant 0 : index
    %c0_87 = arith.constant 0 : index
    %87 = vector.load %arg6[%c0_84, %c0_85, %c0_86, %c0_87] : memref<1x9x64x128xbf16, #tpu.memory_space<vmem>>, vector<1x1x64x128xbf16>
    %88 = vector.shape_cast %87 : vector<1x1x64x128xbf16> to vector<64x128xbf16>
    %cst_88 = arith.constant dense<0.000000e+00> : vector<16x128xf32>
    %89 = tpu.matmul %86, %88, %cst_88 {dimension_numbers = #tpu.dot_dimension_numbers<[1], [0], [0], [1], [0, 0, 1, 1], [], []>} : vector<16x64xbf16>, vector<64x128xbf16>, vector<16x128xf32> -> vector<16x128xf32>
    %90 = arith.addf %82, %89 : vector<16x128xf32>
    %c1_89 = arith.constant 1 : index
    %c0_90 = arith.constant 0 : index
    %c0_91 = arith.constant 0 : index
    %91 = vector.load %arg3[%c1_89, %c0_90, %c0_91] : memref<9x16x64xbf16, #tpu.memory_space<vmem>>, vector<1x16x64xbf16>
    %92 = vector.shape_cast %91 : vector<1x16x64xbf16> to vector<16x64xbf16>
    %cst_92 = arith.constant dense<0.000000e+00> : vector<16x64xf32>
    %93 = tpu.matmul %92, %81, %cst_92 {dimension_numbers = #tpu.dot_dimension_numbers<[1], [0], [0], [1], [0, 0, 1, 1], [], []>} : vector<16x64xbf16>, vector<64x64xbf16>, vector<16x64xf32> -> vector<16x64xf32>
    %94 = arith.truncf %93 : vector<16x64xf32> to vector<16x64xbf16>
    %c0_93 = arith.constant 0 : index
    %c1_94 = arith.constant 1 : index
    %c0_95 = arith.constant 0 : index
    %c0_96 = arith.constant 0 : index
    %95 = vector.load %arg6[%c0_93, %c1_94, %c0_95, %c0_96] : memref<1x9x64x128xbf16, #tpu.memory_space<vmem>>, vector<1x1x64x128xbf16>
    %96 = vector.shape_cast %95 : vector<1x1x64x128xbf16> to vector<64x128xbf16>
    %cst_97 = arith.constant dense<0.000000e+00> : vector<16x128xf32>
    %97 = tpu.matmul %94, %96, %cst_97 {dimension_numbers = #tpu.dot_dimension_numbers<[1], [0], [0], [1], [0, 0, 1, 1], [], []>} : vector<16x64xbf16>, vector<64x128xbf16>, vector<16x128xf32> -> vector<16x128xf32>
    %98 = arith.addf %90, %97 : vector<16x128xf32>
    %c2_98 = arith.constant 2 : index
    %c0_99 = arith.constant 0 : index
    %c0_100 = arith.constant 0 : index
    %99 = vector.load %arg3[%c2_98, %c0_99, %c0_100] : memref<9x16x64xbf16, #tpu.memory_space<vmem>>, vector<1x16x64xbf16>
    %100 = vector.shape_cast %99 : vector<1x16x64xbf16> to vector<16x64xbf16>
    %cst_101 = arith.constant dense<0.000000e+00> : vector<16x64xf32>
    %101 = tpu.matmul %100, %81, %cst_101 {dimension_numbers = #tpu.dot_dimension_numbers<[1], [0], [0], [1], [0, 0, 1, 1], [], []>} : vector<16x64xbf16>, vector<64x64xbf16>, vector<16x64xf32> -> vector<16x64xf32>
    %102 = arith.truncf %101 : vector<16x64xf32> to vector<16x64xbf16>
    %c0_102 = arith.constant 0 : index
    %c2_103 = arith.constant 2 : index
    %c0_104 = arith.constant 0 : index
    %c0_105 = arith.constant 0 : index
    %103 = vector.load %arg6[%c0_102, %c2_103, %c0_104, %c0_105] : memref<1x9x64x128xbf16, #tpu.memory_space<vmem>>, vector<1x1x64x128xbf16>
    %104 = vector.shape_cast %103 : vector<1x1x64x128xbf16> to vector<64x128xbf16>
    %cst_106 = arith.constant dense<0.000000e+00> : vector<16x128xf32>
    %105 = tpu.matmul %102, %104, %cst_106 {dimension_numbers = #tpu.dot_dimension_numbers<[1], [0], [0], [1], [0, 0, 1, 1], [], []>} : vector<16x64xbf16>, vector<64x128xbf16>, vector<16x128xf32> -> vector<16x128xf32>
    %106 = arith.addf %98, %105 : vector<16x128xf32>
    %c3_107 = arith.constant 3 : index
    %c0_108 = arith.constant 0 : index
    %c0_109 = arith.constant 0 : index
    %107 = vector.load %arg3[%c3_107, %c0_108, %c0_109] : memref<9x16x64xbf16, #tpu.memory_space<vmem>>, vector<1x16x64xbf16>
    %108 = vector.shape_cast %107 : vector<1x16x64xbf16> to vector<16x64xbf16>
    %cst_110 = arith.constant dense<0.000000e+00> : vector<16x64xf32>
    %109 = tpu.matmul %108, %81, %cst_110 {dimension_numbers = #tpu.dot_dimension_numbers<[1], [0], [0], [1], [0, 0, 1, 1], [], []>} : vector<16x64xbf16>, vector<64x64xbf16>, vector<16x64xf32> -> vector<16x64xf32>
    %110 = arith.truncf %109 : vector<16x64xf32> to vector<16x64xbf16>
    %c0_111 = arith.constant 0 : index
    %c3_112 = arith.constant 3 : index
    %c0_113 = arith.constant 0 : index
    %c0_114 = arith.constant 0 : index
    %111 = vector.load %arg6[%c0_111, %c3_112, %c0_113, %c0_114] : memref<1x9x64x128xbf16, #tpu.memory_space<vmem>>, vector<1x1x64x128xbf16>
    %112 = vector.shape_cast %111 : vector<1x1x64x128xbf16> to vector<64x128xbf16>
    %cst_115 = arith.constant dense<0.000000e+00> : vector<16x128xf32>
    %113 = tpu.matmul %110, %112, %cst_115 {dimension_numbers = #tpu.dot_dimension_numbers<[1], [0], [0], [1], [0, 0, 1, 1], [], []>} : vector<16x64xbf16>, vector<64x128xbf16>, vector<16x128xf32> -> vector<16x128xf32>
    %114 = arith.addf %106, %113 : vector<16x128xf32>
    %c4_116 = arith.constant 4 : index
    %c0_117 = arith.constant 0 : index
    %c0_118 = arith.constant 0 : index
    %115 = vector.load %arg3[%c4_116, %c0_117, %c0_118] : memref<9x16x64xbf16, #tpu.memory_space<vmem>>, vector<1x16x64xbf16>
    %116 = vector.shape_cast %115 : vector<1x16x64xbf16> to vector<16x64xbf16>
    %cst_119 = arith.constant dense<0.000000e+00> : vector<16x64xf32>
    %117 = tpu.matmul %116, %81, %cst_119 {dimension_numbers = #tpu.dot_dimension_numbers<[1], [0], [0], [1], [0, 0, 1, 1], [], []>} : vector<16x64xbf16>, vector<64x64xbf16>, vector<16x64xf32> -> vector<16x64xf32>
    %118 = arith.truncf %117 : vector<16x64xf32> to vector<16x64xbf16>
    %c0_120 = arith.constant 0 : index
    %c4_121 = arith.constant 4 : index
    %c0_122 = arith.constant 0 : index
    %c0_123 = arith.constant 0 : index
    %119 = vector.load %arg6[%c0_120, %c4_121, %c0_122, %c0_123] : memref<1x9x64x128xbf16, #tpu.memory_space<vmem>>, vector<1x1x64x128xbf16>
    %120 = vector.shape_cast %119 : vector<1x1x64x128xbf16> to vector<64x128xbf16>
    %cst_124 = arith.constant dense<0.000000e+00> : vector<16x128xf32>
    %121 = tpu.matmul %118, %120, %cst_124 {dimension_numbers = #tpu.dot_dimension_numbers<[1], [0], [0], [1], [0, 0, 1, 1], [], []>} : vector<16x64xbf16>, vector<64x128xbf16>, vector<16x128xf32> -> vector<16x128xf32>
    %122 = arith.addf %114, %121 : vector<16x128xf32>
    %c5_125 = arith.constant 5 : index
    %c0_126 = arith.constant 0 : index
    %c0_127 = arith.constant 0 : index
    %123 = vector.load %arg3[%c5_125, %c0_126, %c0_127] : memref<9x16x64xbf16, #tpu.memory_space<vmem>>, vector<1x16x64xbf16>
    %124 = vector.shape_cast %123 : vector<1x16x64xbf16> to vector<16x64xbf16>
    %cst_128 = arith.constant dense<0.000000e+00> : vector<16x64xf32>
    %125 = tpu.matmul %124, %81, %cst_128 {dimension_numbers = #tpu.dot_dimension_numbers<[1], [0], [0], [1], [0, 0, 1, 1], [], []>} : vector<16x64xbf16>, vector<64x64xbf16>, vector<16x64xf32> -> vector<16x64xf32>
    %126 = arith.truncf %125 : vector<16x64xf32> to vector<16x64xbf16>
    %c0_129 = arith.constant 0 : index
    %c5_130 = arith.constant 5 : index
    %c0_131 = arith.constant 0 : index
    %c0_132 = arith.constant 0 : index
    %127 = vector.load %arg6[%c0_129, %c5_130, %c0_131, %c0_132] : memref<1x9x64x128xbf16, #tpu.memory_space<vmem>>, vector<1x1x64x128xbf16>
    %128 = vector.shape_cast %127 : vector<1x1x64x128xbf16> to vector<64x128xbf16>
    %cst_133 = arith.constant dense<0.000000e+00> : vector<16x128xf32>
    %129 = tpu.matmul %126, %128, %cst_133 {dimension_numbers = #tpu.dot_dimension_numbers<[1], [0], [0], [1], [0, 0, 1, 1], [], []>} : vector<16x64xbf16>, vector<64x128xbf16>, vector<16x128xf32> -> vector<16x128xf32>
    %130 = arith.addf %122, %129 : vector<16x128xf32>
    %c6_134 = arith.constant 6 : index
    %c0_135 = arith.constant 0 : index
    %c0_136 = arith.constant 0 : index
    %131 = vector.load %arg3[%c6_134, %c0_135, %c0_136] : memref<9x16x64xbf16, #tpu.memory_space<vmem>>, vector<1x16x64xbf16>
    %132 = vector.shape_cast %131 : vector<1x16x64xbf16> to vector<16x64xbf16>
    %cst_137 = arith.constant dense<0.000000e+00> : vector<16x64xf32>
    %133 = tpu.matmul %132, %81, %cst_137 {dimension_numbers = #tpu.dot_dimension_numbers<[1], [0], [0], [1], [0, 0, 1, 1], [], []>} : vector<16x64xbf16>, vector<64x64xbf16>, vector<16x64xf32> -> vector<16x64xf32>
    %134 = arith.truncf %133 : vector<16x64xf32> to vector<16x64xbf16>
    %c0_138 = arith.constant 0 : index
    %c6_139 = arith.constant 6 : index
    %c0_140 = arith.constant 0 : index
    %c0_141 = arith.constant 0 : index
    %135 = vector.load %arg6[%c0_138, %c6_139, %c0_140, %c0_141] : memref<1x9x64x128xbf16, #tpu.memory_space<vmem>>, vector<1x1x64x128xbf16>
    %136 = vector.shape_cast %135 : vector<1x1x64x128xbf16> to vector<64x128xbf16>
    %cst_142 = arith.constant dense<0.000000e+00> : vector<16x128xf32>
    %137 = tpu.matmul %134, %136, %cst_142 {dimension_numbers = #tpu.dot_dimension_numbers<[1], [0], [0], [1], [0, 0, 1, 1], [], []>} : vector<16x64xbf16>, vector<64x128xbf16>, vector<16x128xf32> -> vector<16x128xf32>
    %138 = arith.addf %130, %137 : vector<16x128xf32>
    %c7_143 = arith.constant 7 : index
    %c0_144 = arith.constant 0 : index
    %c0_145 = arith.constant 0 : index
    %139 = vector.load %arg3[%c7_143, %c0_144, %c0_145] : memref<9x16x64xbf16, #tpu.memory_space<vmem>>, vector<1x16x64xbf16>
    %140 = vector.shape_cast %139 : vector<1x16x64xbf16> to vector<16x64xbf16>
    %cst_146 = arith.constant dense<0.000000e+00> : vector<16x64xf32>
    %141 = tpu.matmul %140, %81, %cst_146 {dimension_numbers = #tpu.dot_dimension_numbers<[1], [0], [0], [1], [0, 0, 1, 1], [], []>} : vector<16x64xbf16>, vector<64x64xbf16>, vector<16x64xf32> -> vector<16x64xf32>
    %142 = arith.truncf %141 : vector<16x64xf32> to vector<16x64xbf16>
    %c0_147 = arith.constant 0 : index
    %c7_148 = arith.constant 7 : index
    %c0_149 = arith.constant 0 : index
    %c0_150 = arith.constant 0 : index
    %143 = vector.load %arg6[%c0_147, %c7_148, %c0_149, %c0_150] : memref<1x9x64x128xbf16, #tpu.memory_space<vmem>>, vector<1x1x64x128xbf16>
    %144 = vector.shape_cast %143 : vector<1x1x64x128xbf16> to vector<64x128xbf16>
    %cst_151 = arith.constant dense<0.000000e+00> : vector<16x128xf32>
    %145 = tpu.matmul %142, %144, %cst_151 {dimension_numbers = #tpu.dot_dimension_numbers<[1], [0], [0], [1], [0, 0, 1, 1], [], []>} : vector<16x64xbf16>, vector<64x128xbf16>, vector<16x128xf32> -> vector<16x128xf32>
    %146 = arith.addf %138, %145 : vector<16x128xf32>
    %c8_152 = arith.constant 8 : index
    %c0_153 = arith.constant 0 : index
    %c0_154 = arith.constant 0 : index
    %147 = vector.load %arg3[%c8_152, %c0_153, %c0_154] : memref<9x16x64xbf16, #tpu.memory_space<vmem>>, vector<1x16x64xbf16>
    %148 = vector.shape_cast %147 : vector<1x16x64xbf16> to vector<16x64xbf16>
    %cst_155 = arith.constant dense<0.000000e+00> : vector<16x64xf32>
    %149 = tpu.matmul %148, %81, %cst_155 {dimension_numbers = #tpu.dot_dimension_numbers<[1], [0], [0], [1], [0, 0, 1, 1], [], []>} : vector<16x64xbf16>, vector<64x64xbf16>, vector<16x64xf32> -> vector<16x64xf32>
    %150 = arith.truncf %149 : vector<16x64xf32> to vector<16x64xbf16>
    %c0_156 = arith.constant 0 : index
    %c8_157 = arith.constant 8 : index
    %c0_158 = arith.constant 0 : index
    %c0_159 = arith.constant 0 : index
    %151 = vector.load %arg6[%c0_156, %c8_157, %c0_158, %c0_159] : memref<1x9x64x128xbf16, #tpu.memory_space<vmem>>, vector<1x1x64x128xbf16>
    %152 = vector.shape_cast %151 : vector<1x1x64x128xbf16> to vector<64x128xbf16>
    %cst_160 = arith.constant dense<0.000000e+00> : vector<16x128xf32>
    %153 = tpu.matmul %150, %152, %cst_160 {dimension_numbers = #tpu.dot_dimension_numbers<[1], [0], [0], [1], [0, 0, 1, 1], [], []>} : vector<16x64xbf16>, vector<64x128xbf16>, vector<16x128xf32> -> vector<16x128xf32>
    %154 = arith.addf %146, %153 : vector<16x128xf32>
    %c0_161 = arith.constant 0 : index
    %c0_162 = arith.constant 0 : index
    %c0_163 = arith.constant 0 : index
    %155 = vector.load %arg9[%c0_161, %c0_162, %c0_163] : memref<1x1x128xf32, #tpu.memory_space<vmem>>, vector<1x1x128xf32>
    %156 = vector.shape_cast %155 : vector<1x1x128xf32> to vector<1x128xf32>
    %157 = vector.broadcast %156 : vector<1x128xf32> to vector<16x128xf32>
    %158 = arith.addf %154, %157 : vector<16x128xf32>
    %cst_164 = arith.constant 0.000000e+00 : f32
    %159 = vector.broadcast %cst_164 : f32 to vector<16x128xf32>
    %160 = arith.maximumf %158, %159 : vector<16x128xf32>
    %161 = arith.truncf %160 : vector<16x128xf32> to vector<16x128xbf16>
    %cst_165 = arith.constant 0.000000e+00 : f32
    %162 = vector.broadcast %cst_165 : f32 to vector<4x256xf32>
    %c0_166 = arith.constant 0 : index
    %c0_167 = arith.constant 0 : index
    %c0_168 = arith.constant 0 : index
    %163 = vector.load %arg4[%c0_166, %c0_167, %c0_168] : memref<9x4x16xbf16, #tpu.memory_space<vmem>>, vector<1x4x16xbf16>
    %164 = vector.shape_cast %163 : vector<1x4x16xbf16> to vector<4x16xbf16>
    %cst_169 = arith.constant dense<0.000000e+00> : vector<4x128xf32>
    %165 = tpu.matmul %164, %161, %cst_169 {dimension_numbers = #tpu.dot_dimension_numbers<[1], [0], [0], [1], [0, 0, 1, 1], [], []>} : vector<4x16xbf16>, vector<16x128xbf16>, vector<4x128xf32> -> vector<4x128xf32>
    %166 = arith.truncf %165 : vector<4x128xf32> to vector<4x128xbf16>
    %c0_170 = arith.constant 0 : index
    %c0_171 = arith.constant 0 : index
    %c0_172 = arith.constant 0 : index
    %c0_173 = arith.constant 0 : index
    %167 = vector.load %arg7[%c0_170, %c0_171, %c0_172, %c0_173] : memref<1x9x128x256xbf16, #tpu.memory_space<vmem>>, vector<1x1x128x256xbf16>
    %168 = vector.shape_cast %167 : vector<1x1x128x256xbf16> to vector<128x256xbf16>
    %cst_174 = arith.constant dense<0.000000e+00> : vector<4x256xf32>
    %169 = tpu.matmul %166, %168, %cst_174 {dimension_numbers = #tpu.dot_dimension_numbers<[1], [0], [0], [1], [0, 0, 1, 1], [], []>} : vector<4x128xbf16>, vector<128x256xbf16>, vector<4x256xf32> -> vector<4x256xf32>
    %170 = arith.addf %162, %169 : vector<4x256xf32>
    %c1_175 = arith.constant 1 : index
    %c0_176 = arith.constant 0 : index
    %c0_177 = arith.constant 0 : index
    %171 = vector.load %arg4[%c1_175, %c0_176, %c0_177] : memref<9x4x16xbf16, #tpu.memory_space<vmem>>, vector<1x4x16xbf16>
    %172 = vector.shape_cast %171 : vector<1x4x16xbf16> to vector<4x16xbf16>
    %cst_178 = arith.constant dense<0.000000e+00> : vector<4x128xf32>
    %173 = tpu.matmul %172, %161, %cst_178 {dimension_numbers = #tpu.dot_dimension_numbers<[1], [0], [0], [1], [0, 0, 1, 1], [], []>} : vector<4x16xbf16>, vector<16x128xbf16>, vector<4x128xf32> -> vector<4x128xf32>
    %174 = arith.truncf %173 : vector<4x128xf32> to vector<4x128xbf16>
    %c0_179 = arith.constant 0 : index
    %c1_180 = arith.constant 1 : index
    %c0_181 = arith.constant 0 : index
    %c0_182 = arith.constant 0 : index
    %175 = vector.load %arg7[%c0_179, %c1_180, %c0_181, %c0_182] : memref<1x9x128x256xbf16, #tpu.memory_space<vmem>>, vector<1x1x128x256xbf16>
    %176 = vector.shape_cast %175 : vector<1x1x128x256xbf16> to vector<128x256xbf16>
    %cst_183 = arith.constant dense<0.000000e+00> : vector<4x256xf32>
    %177 = tpu.matmul %174, %176, %cst_183 {dimension_numbers = #tpu.dot_dimension_numbers<[1], [0], [0], [1], [0, 0, 1, 1], [], []>} : vector<4x128xbf16>, vector<128x256xbf16>, vector<4x256xf32> -> vector<4x256xf32>
    %178 = arith.addf %170, %177 : vector<4x256xf32>
    %c2_184 = arith.constant 2 : index
    %c0_185 = arith.constant 0 : index
    %c0_186 = arith.constant 0 : index
    %179 = vector.load %arg4[%c2_184, %c0_185, %c0_186] : memref<9x4x16xbf16, #tpu.memory_space<vmem>>, vector<1x4x16xbf16>
    %180 = vector.shape_cast %179 : vector<1x4x16xbf16> to vector<4x16xbf16>
    %cst_187 = arith.constant dense<0.000000e+00> : vector<4x128xf32>
    %181 = tpu.matmul %180, %161, %cst_187 {dimension_numbers = #tpu.dot_dimension_numbers<[1], [0], [0], [1], [0, 0, 1, 1], [], []>} : vector<4x16xbf16>, vector<16x128xbf16>, vector<4x128xf32> -> vector<4x128xf32>
    %182 = arith.truncf %181 : vector<4x128xf32> to vector<4x128xbf16>
    %c0_188 = arith.constant 0 : index
    %c2_189 = arith.constant 2 : index
    %c0_190 = arith.constant 0 : index
    %c0_191 = arith.constant 0 : index
    %183 = vector.load %arg7[%c0_188, %c2_189, %c0_190, %c0_191] : memref<1x9x128x256xbf16, #tpu.memory_space<vmem>>, vector<1x1x128x256xbf16>
    %184 = vector.shape_cast %183 : vector<1x1x128x256xbf16> to vector<128x256xbf16>
    %cst_192 = arith.constant dense<0.000000e+00> : vector<4x256xf32>
    %185 = tpu.matmul %182, %184, %cst_192 {dimension_numbers = #tpu.dot_dimension_numbers<[1], [0], [0], [1], [0, 0, 1, 1], [], []>} : vector<4x128xbf16>, vector<128x256xbf16>, vector<4x256xf32> -> vector<4x256xf32>
    %186 = arith.addf %178, %185 : vector<4x256xf32>
    %c3_193 = arith.constant 3 : index
    %c0_194 = arith.constant 0 : index
    %c0_195 = arith.constant 0 : index
    %187 = vector.load %arg4[%c3_193, %c0_194, %c0_195] : memref<9x4x16xbf16, #tpu.memory_space<vmem>>, vector<1x4x16xbf16>
    %188 = vector.shape_cast %187 : vector<1x4x16xbf16> to vector<4x16xbf16>
    %cst_196 = arith.constant dense<0.000000e+00> : vector<4x128xf32>
    %189 = tpu.matmul %188, %161, %cst_196 {dimension_numbers = #tpu.dot_dimension_numbers<[1], [0], [0], [1], [0, 0, 1, 1], [], []>} : vector<4x16xbf16>, vector<16x128xbf16>, vector<4x128xf32> -> vector<4x128xf32>
    %190 = arith.truncf %189 : vector<4x128xf32> to vector<4x128xbf16>
    %c0_197 = arith.constant 0 : index
    %c3_198 = arith.constant 3 : index
    %c0_199 = arith.constant 0 : index
    %c0_200 = arith.constant 0 : index
    %191 = vector.load %arg7[%c0_197, %c3_198, %c0_199, %c0_200] : memref<1x9x128x256xbf16, #tpu.memory_space<vmem>>, vector<1x1x128x256xbf16>
    %192 = vector.shape_cast %191 : vector<1x1x128x256xbf16> to vector<128x256xbf16>
    %cst_201 = arith.constant dense<0.000000e+00> : vector<4x256xf32>
    %193 = tpu.matmul %190, %192, %cst_201 {dimension_numbers = #tpu.dot_dimension_numbers<[1], [0], [0], [1], [0, 0, 1, 1], [], []>} : vector<4x128xbf16>, vector<128x256xbf16>, vector<4x256xf32> -> vector<4x256xf32>
    %194 = arith.addf %186, %193 : vector<4x256xf32>
    %c4_202 = arith.constant 4 : index
    %c0_203 = arith.constant 0 : index
    %c0_204 = arith.constant 0 : index
    %195 = vector.load %arg4[%c4_202, %c0_203, %c0_204] : memref<9x4x16xbf16, #tpu.memory_space<vmem>>, vector<1x4x16xbf16>
    %196 = vector.shape_cast %195 : vector<1x4x16xbf16> to vector<4x16xbf16>
    %cst_205 = arith.constant dense<0.000000e+00> : vector<4x128xf32>
    %197 = tpu.matmul %196, %161, %cst_205 {dimension_numbers = #tpu.dot_dimension_numbers<[1], [0], [0], [1], [0, 0, 1, 1], [], []>} : vector<4x16xbf16>, vector<16x128xbf16>, vector<4x128xf32> -> vector<4x128xf32>
    %198 = arith.truncf %197 : vector<4x128xf32> to vector<4x128xbf16>
    %c0_206 = arith.constant 0 : index
    %c4_207 = arith.constant 4 : index
    %c0_208 = arith.constant 0 : index
    %c0_209 = arith.constant 0 : index
    %199 = vector.load %arg7[%c0_206, %c4_207, %c0_208, %c0_209] : memref<1x9x128x256xbf16, #tpu.memory_space<vmem>>, vector<1x1x128x256xbf16>
    %200 = vector.shape_cast %199 : vector<1x1x128x256xbf16> to vector<128x256xbf16>
    %cst_210 = arith.constant dense<0.000000e+00> : vector<4x256xf32>
    %201 = tpu.matmul %198, %200, %cst_210 {dimension_numbers = #tpu.dot_dimension_numbers<[1], [0], [0], [1], [0, 0, 1, 1], [], []>} : vector<4x128xbf16>, vector<128x256xbf16>, vector<4x256xf32> -> vector<4x256xf32>
    %202 = arith.addf %194, %201 : vector<4x256xf32>
    %c5_211 = arith.constant 5 : index
    %c0_212 = arith.constant 0 : index
    %c0_213 = arith.constant 0 : index
    %203 = vector.load %arg4[%c5_211, %c0_212, %c0_213] : memref<9x4x16xbf16, #tpu.memory_space<vmem>>, vector<1x4x16xbf16>
    %204 = vector.shape_cast %203 : vector<1x4x16xbf16> to vector<4x16xbf16>
    %cst_214 = arith.constant dense<0.000000e+00> : vector<4x128xf32>
    %205 = tpu.matmul %204, %161, %cst_214 {dimension_numbers = #tpu.dot_dimension_numbers<[1], [0], [0], [1], [0, 0, 1, 1], [], []>} : vector<4x16xbf16>, vector<16x128xbf16>, vector<4x128xf32> -> vector<4x128xf32>
    %206 = arith.truncf %205 : vector<4x128xf32> to vector<4x128xbf16>
    %c0_215 = arith.constant 0 : index
    %c5_216 = arith.constant 5 : index
    %c0_217 = arith.constant 0 : index
    %c0_218 = arith.constant 0 : index
    %207 = vector.load %arg7[%c0_215, %c5_216, %c0_217, %c0_218] : memref<1x9x128x256xbf16, #tpu.memory_space<vmem>>, vector<1x1x128x256xbf16>
    %208 = vector.shape_cast %207 : vector<1x1x128x256xbf16> to vector<128x256xbf16>
    %cst_219 = arith.constant dense<0.000000e+00> : vector<4x256xf32>
    %209 = tpu.matmul %206, %208, %cst_219 {dimension_numbers = #tpu.dot_dimension_numbers<[1], [0], [0], [1], [0, 0, 1, 1], [], []>} : vector<4x128xbf16>, vector<128x256xbf16>, vector<4x256xf32> -> vector<4x256xf32>
    %210 = arith.addf %202, %209 : vector<4x256xf32>
    %c6_220 = arith.constant 6 : index
    %c0_221 = arith.constant 0 : index
    %c0_222 = arith.constant 0 : index
    %211 = vector.load %arg4[%c6_220, %c0_221, %c0_222] : memref<9x4x16xbf16, #tpu.memory_space<vmem>>, vector<1x4x16xbf16>
    %212 = vector.shape_cast %211 : vector<1x4x16xbf16> to vector<4x16xbf16>
    %cst_223 = arith.constant dense<0.000000e+00> : vector<4x128xf32>
    %213 = tpu.matmul %212, %161, %cst_223 {dimension_numbers = #tpu.dot_dimension_numbers<[1], [0], [0], [1], [0, 0, 1, 1], [], []>} : vector<4x16xbf16>, vector<16x128xbf16>, vector<4x128xf32> -> vector<4x128xf32>
    %214 = arith.truncf %213 : vector<4x128xf32> to vector<4x128xbf16>
    %c0_224 = arith.constant 0 : index
    %c6_225 = arith.constant 6 : index
    %c0_226 = arith.constant 0 : index
    %c0_227 = arith.constant 0 : index
    %215 = vector.load %arg7[%c0_224, %c6_225, %c0_226, %c0_227] : memref<1x9x128x256xbf16, #tpu.memory_space<vmem>>, vector<1x1x128x256xbf16>
    %216 = vector.shape_cast %215 : vector<1x1x128x256xbf16> to vector<128x256xbf16>
    %cst_228 = arith.constant dense<0.000000e+00> : vector<4x256xf32>
    %217 = tpu.matmul %214, %216, %cst_228 {dimension_numbers = #tpu.dot_dimension_numbers<[1], [0], [0], [1], [0, 0, 1, 1], [], []>} : vector<4x128xbf16>, vector<128x256xbf16>, vector<4x256xf32> -> vector<4x256xf32>
    %218 = arith.addf %210, %217 : vector<4x256xf32>
    %c7_229 = arith.constant 7 : index
    %c0_230 = arith.constant 0 : index
    %c0_231 = arith.constant 0 : index
    %219 = vector.load %arg4[%c7_229, %c0_230, %c0_231] : memref<9x4x16xbf16, #tpu.memory_space<vmem>>, vector<1x4x16xbf16>
    %220 = vector.shape_cast %219 : vector<1x4x16xbf16> to vector<4x16xbf16>
    %cst_232 = arith.constant dense<0.000000e+00> : vector<4x128xf32>
    %221 = tpu.matmul %220, %161, %cst_232 {dimension_numbers = #tpu.dot_dimension_numbers<[1], [0], [0], [1], [0, 0, 1, 1], [], []>} : vector<4x16xbf16>, vector<16x128xbf16>, vector<4x128xf32> -> vector<4x128xf32>
    %222 = arith.truncf %221 : vector<4x128xf32> to vector<4x128xbf16>
    %c0_233 = arith.constant 0 : index
    %c7_234 = arith.constant 7 : index
    %c0_235 = arith.constant 0 : index
    %c0_236 = arith.constant 0 : index
    %223 = vector.load %arg7[%c0_233, %c7_234, %c0_235, %c0_236] : memref<1x9x128x256xbf16, #tpu.memory_space<vmem>>, vector<1x1x128x256xbf16>
    %224 = vector.shape_cast %223 : vector<1x1x128x256xbf16> to vector<128x256xbf16>
    %cst_237 = arith.constant dense<0.000000e+00> : vector<4x256xf32>
    %225 = tpu.matmul %222, %224, %cst_237 {dimension_numbers = #tpu.dot_dimension_numbers<[1], [0], [0], [1], [0, 0, 1, 1], [], []>} : vector<4x128xbf16>, vector<128x256xbf16>, vector<4x256xf32> -> vector<4x256xf32>
    %226 = arith.addf %218, %225 : vector<4x256xf32>
    %c8_238 = arith.constant 8 : index
    %c0_239 = arith.constant 0 : index
    %c0_240 = arith.constant 0 : index
    %227 = vector.load %arg4[%c8_238, %c0_239, %c0_240] : memref<9x4x16xbf16, #tpu.memory_space<vmem>>, vector<1x4x16xbf16>
    %228 = vector.shape_cast %227 : vector<1x4x16xbf16> to vector<4x16xbf16>
    %cst_241 = arith.constant dense<0.000000e+00> : vector<4x128xf32>
    %229 = tpu.matmul %228, %161, %cst_241 {dimension_numbers = #tpu.dot_dimension_numbers<[1], [0], [0], [1], [0, 0, 1, 1], [], []>} : vector<4x16xbf16>, vector<16x128xbf16>, vector<4x128xf32> -> vector<4x128xf32>
    %230 = arith.truncf %229 : vector<4x128xf32> to vector<4x128xbf16>
    %c0_242 = arith.constant 0 : index
    %c8_243 = arith.constant 8 : index
    %c0_244 = arith.constant 0 : index
    %c0_245 = arith.constant 0 : index
    %231 = vector.load %arg7[%c0_242, %c8_243, %c0_244, %c0_245] : memref<1x9x128x256xbf16, #tpu.memory_space<vmem>>, vector<1x1x128x256xbf16>
    %232 = vector.shape_cast %231 : vector<1x1x128x256xbf16> to vector<128x256xbf16>
    %cst_246 = arith.constant dense<0.000000e+00> : vector<4x256xf32>
    %233 = tpu.matmul %230, %232, %cst_246 {dimension_numbers = #tpu.dot_dimension_numbers<[1], [0], [0], [1], [0, 0, 1, 1], [], []>} : vector<4x128xbf16>, vector<128x256xbf16>, vector<4x256xf32> -> vector<4x256xf32>
    %234 = arith.addf %226, %233 : vector<4x256xf32>
    %c0_247 = arith.constant 0 : index
    %c0_248 = arith.constant 0 : index
    %c0_249 = arith.constant 0 : index
    %235 = vector.load %arg10[%c0_247, %c0_248, %c0_249] : memref<1x1x256xf32, #tpu.memory_space<vmem>>, vector<1x1x256xf32>
    %236 = vector.shape_cast %235 : vector<1x1x256xf32> to vector<1x256xf32>
    %237 = vector.broadcast %236 : vector<1x256xf32> to vector<4x256xf32>
    %238 = arith.addf %234, %237 : vector<4x256xf32>
    %cst_250 = arith.constant 0.000000e+00 : f32
    %239 = vector.broadcast %cst_250 : f32 to vector<4x256xf32>
    %240 = arith.maximumf %238, %239 : vector<4x256xf32>
    %c0_251 = arith.constant 0 : index
    %c0_252 = arith.constant 0 : index
    %c0_253 = arith.constant 0 : index
    %241 = vector.load %arg11[%c0_251, %c0_252, %c0_253] : memref<1x4x256xf32, #tpu.memory_space<vmem>>, vector<1x4x256xf32>
    %242 = vector.shape_cast %241 : vector<1x4x256xf32> to vector<4x256xf32>
    %243 = vector.shape_cast %240 : vector<4x256xf32> to vector<1x4x256xf32>
    tpu.vector_store %arg11[%c0_251, %c0_252, %c0_253], %243 {strides = array<i32>} : memref<1x4x256xf32, #tpu.memory_space<vmem>>, vector<1x4x256xf32>,
    return
  }
  func.func @transform_0(%arg0: i32) -> (i32, i32, i32) {
    %c0_i32 = arith.constant 0 : i32
    %c0_i32_0 = arith.constant 0 : i32
    %c0_i32_1 = arith.constant 0 : i32
    return %arg0, %c0_i32, %c0_i32_0 : i32, i32, i32
  }
  func.func @transform_1(%arg0: i32) -> (i32, i32, i32) {
    %c0_i32 = arith.constant 0 : i32
    %c0_i32_0 = arith.constant 0 : i32
    %c0_i32_1 = arith.constant 0 : i32
    %c0_i32_2 = arith.constant 0 : i32
    return %c0_i32, %c0_i32_0, %c0_i32_1 : i32, i32, i32
  }
  func.func @transform_2(%arg0: i32) -> (i32, i32, i32) {
    %c0_i32 = arith.constant 0 : i32
    %c0_i32_0 = arith.constant 0 : i32
    %c0_i32_1 = arith.constant 0 : i32
    %c0_i32_2 = arith.constant 0 : i32
    return %c0_i32, %c0_i32_0, %c0_i32_1 : i32, i32, i32
  }
  func.func @transform_3(%arg0: i32) -> (i32, i32, i32) {
    %c0_i32 = arith.constant 0 : i32
    %c0_i32_0 = arith.constant 0 : i32
    %c0_i32_1 = arith.constant 0 : i32
    %c0_i32_2 = arith.constant 0 : i32
    return %c0_i32, %c0_i32_0, %c0_i32_1 : i32, i32, i32
  }
  func.func @transform_4(%arg0: i32) -> (i32, i32, i32, i32) {
    %c0_i32 = arith.constant 0 : i32
    %c0_i32_0 = arith.constant 0 : i32
    %c0_i32_1 = arith.constant 0 : i32
    %c0_i32_2 = arith.constant 0 : i32
    return %arg0, %c0_i32, %c0_i32_0, %c0_i32_1 : i32, i32, i32, i32
  }
  func.func @transform_5(%arg0: i32) -> (i32, i32, i32, i32) {
    %c0_i32 = arith.constant 0 : i32
    %c0_i32_0 = arith.constant 0 : i32
    %c0_i32_1 = arith.constant 0 : i32
    %c0_i32_2 = arith.constant 0 : i32
    return %arg0, %c0_i32, %c0_i32_0, %c0_i32_1 : i32, i32, i32, i32
  }
  func.func @transform_6(%arg0: i32) -> (i32, i32, i32, i32) {
    %c0_i32 = arith.constant 0 : i32
    %c0_i32_0 = arith.constant 0 : i32
    %c0_i32_1 = arith.constant 0 : i32
    %c0_i32_2 = arith.constant 0 : i32
    return %arg0, %c0_i32, %c0_i32_0, %c0_i32_1 : i32, i32, i32, i32
  }
  func.func @transform_7(%arg0: i32) -> (i32, i32, i32) {
    %c0_i32 = arith.constant 0 : i32
    %c0_i32_0 = arith.constant 0 : i32
    %c0_i32_1 = arith.constant 0 : i32
    return %arg0, %c0_i32, %c0_i32_0 : i32, i32, i32
  }
  func.func @transform_8(%arg0: i32) -> (i32, i32, i32) {
    %c0_i32 = arith.constant 0 : i32
    %c0_i32_0 = arith.constant 0 : i32
    %c0_i32_1 = arith.constant 0 : i32
    return %arg0, %c0_i32, %c0_i32_0 : i32, i32, i32
  }
  func.func @transform_9(%arg0: i32) -> (i32, i32, i32) {
    %c0_i32 = arith.constant 0 : i32
    %c0_i32_0 = arith.constant 0 : i32
    %c0_i32_1 = arith.constant 0 : i32
    return %arg0, %c0_i32, %c0_i32_0 : i32, i32, i32
  }
  func.func @transform_10(%arg0: i32) -> (i32, i32, i32) {
    %c0_i32 = arith.constant 0 : i32
    %c0_i32_0 = arith.constant 0 : i32
    %c0_i32_1 = arith.constant 0 : i32
    return %arg0, %c0_i32, %c0_i32_0 : i32, i32, i32
  }
}

module attributes {stable_mosaic.version = 11 : i64} {
  func.func @_mlp_kernel(%arg0: i32, %arg1: memref<4x512xf32, #tpu.memory_space<vmem>>, %arg2: memref<512x256xbf16, #tpu.memory_space<vmem>>, %arg3: memref<1x256xf32, #tpu.memory_space<vmem>>, %arg4: memref<1x256xf32, #tpu.memory_space<vmem>>, %arg5: memref<1x1xf32, #tpu.memory_space<vmem>>, %arg6: memref<4x1xf32, #tpu.memory_space<vmem>>) attributes {dimension_semantics = [#tpu.dimension_semantics<arbitrary>], iteration_bounds = array<i64: 1>, scalar_prefetch = 0 : i64, scratch_operands = 0 : i64, tpu.core_type = #tpu.core_type<tc>, window_params = [{pipeline_mode = #tpu.pipeline_mode<synchronous>, transform_indices = @transform_0, window_bounds = array<i64: 4, 512>}, {pipeline_mode = #tpu.pipeline_mode<synchronous>, transform_indices = @transform_1, window_bounds = array<i64: 512, 256>}, {pipeline_mode = #tpu.pipeline_mode<synchronous>, transform_indices = @transform_2, window_bounds = array<i64: 1, 256>}, {pipeline_mode = #tpu.pipeline_mode<synchronous>, transform_indices = @transform_3, window_bounds = array<i64: 1, 256>}, {pipeline_mode = #tpu.pipeline_mode<synchronous>, transform_indices = @transform_4, window_bounds = array<i64: 1, 1>}, {pipeline_mode = #tpu.pipeline_mode<synchronous>, transform_indices = @transform_5, window_bounds = array<i64: 4, 1>}]} {
    %c0 = arith.constant 0 : index
    %c0_0 = arith.constant 0 : index
    %0 = vector.load %arg1[%c0, %c0_0] : memref<4x512xf32, #tpu.memory_space<vmem>>, vector<4x512xf32>
    %1 = arith.truncf %0 : vector<4x512xf32> to vector<4x512xbf16>
    %c0_1 = arith.constant 0 : index
    %c0_2 = arith.constant 0 : index
    %2 = vector.load %arg2[%c0_1, %c0_2] : memref<512x256xbf16, #tpu.memory_space<vmem>>, vector<512x256xbf16>
    %cst = arith.constant dense<0.000000e+00> : vector<4x256xf32>
    %3 = tpu.matmul %1, %2, %cst {dimension_numbers = #tpu.dot_dimension_numbers<[1], [0], [0], [1], [0, 0, 1, 1], [], []>} : vector<4x512xbf16>, vector<512x256xbf16>, vector<4x256xf32> -> vector<4x256xf32>
    %c0_3 = arith.constant 0 : index
    %c0_4 = arith.constant 0 : index
    %4 = vector.load %arg3[%c0_3, %c0_4] : memref<1x256xf32, #tpu.memory_space<vmem>>, vector<1x256xf32>
    %5 = vector.broadcast %4 : vector<1x256xf32> to vector<4x256xf32>
    %6 = arith.addf %3, %5 : vector<4x256xf32>
    %cst_5 = arith.constant 0.000000e+00 : f32
    %7 = vector.broadcast %cst_5 : f32 to vector<4x256xf32>
    %8 = arith.maximumf %6, %7 : vector<4x256xf32>
    %c0_6 = arith.constant 0 : index
    %c0_7 = arith.constant 0 : index
    %9 = vector.load %arg4[%c0_6, %c0_7] : memref<1x256xf32, #tpu.memory_space<vmem>>, vector<1x256xf32>
    %10 = vector.broadcast %9 : vector<1x256xf32> to vector<4x256xf32>
    %11 = arith.mulf %8, %10 : vector<4x256xf32>
    %cst_8 = arith.constant dense<0.000000e+00> : vector<4xf32>
    %12 = vector.multi_reduction <add>, %11, %cst_8 [1] : vector<4x256xf32> to vector<4xf32>
    %13 = vector.shape_cast %12 : vector<4xf32> to vector<4x1xf32>
    %c0_9 = arith.constant 0 : index
    %c0_10 = arith.constant 0 : index
    %14 = vector.load %arg5[%c0_9, %c0_10] : memref<1x1xf32, #tpu.memory_space<vmem>>, vector<1x1xf32>
    %15 = vector.broadcast %14 : vector<1x1xf32> to vector<4x1xf32>
    %16 = arith.addf %13, %15 : vector<4x1xf32>
    %17 = arith.negf %16 : vector<4x1xf32>
    %18 = math.exp %17 : vector<4x1xf32>
    %cst_11 = arith.constant 1.000000e+00 : f32
    %19 = vector.broadcast %cst_11 : f32 to vector<4x1xf32>
    %20 = arith.addf %19, %18 : vector<4x1xf32>
    %21 = arith.divf %19, %20 : vector<4x1xf32>
    %c0_12 = arith.constant 0 : index
    %c0_13 = arith.constant 0 : index
    %22 = vector.load %arg6[%c0_12, %c0_13] : memref<4x1xf32, #tpu.memory_space<vmem>>, vector<4x1xf32>
    tpu.vector_store %arg6[%c0_12, %c0_13], %21 {strides = array<i32>} : memref<4x1xf32, #tpu.memory_space<vmem>>, vector<4x1xf32>,
    return
  }
  func.func @transform_0(%arg0: i32) -> (i32, i32) {
    %c0_i32 = arith.constant 0 : i32
    %c0_i32_0 = arith.constant 0 : i32
    %c0_i32_1 = arith.constant 0 : i32
    return %c0_i32, %c0_i32_0 : i32, i32
  }
  func.func @transform_1(%arg0: i32) -> (i32, i32) {
    %c0_i32 = arith.constant 0 : i32
    %c0_i32_0 = arith.constant 0 : i32
    %c0_i32_1 = arith.constant 0 : i32
    return %c0_i32, %c0_i32_0 : i32, i32
  }
  func.func @transform_2(%arg0: i32) -> (i32, i32) {
    %c0_i32 = arith.constant 0 : i32
    %c0_i32_0 = arith.constant 0 : i32
    %c0_i32_1 = arith.constant 0 : i32
    return %c0_i32, %c0_i32_0 : i32, i32
  }
  func.func @transform_3(%arg0: i32) -> (i32, i32) {
    %c0_i32 = arith.constant 0 : i32
    %c0_i32_0 = arith.constant 0 : i32
    %c0_i32_1 = arith.constant 0 : i32
    return %c0_i32, %c0_i32_0 : i32, i32
  }
  func.func @transform_4(%arg0: i32) -> (i32, i32) {
    %c0_i32 = arith.constant 0 : i32
    %c0_i32_0 = arith.constant 0 : i32
    %c0_i32_1 = arith.constant 0 : i32
    return %c0_i32, %c0_i32_0 : i32, i32
  }
  func.func @transform_5(%arg0: i32) -> (i32, i32) {
    %c0_i32 = arith.constant 0 : i32
    %c0_i32_0 = arith.constant 0 : i32
    %c0_i32_1 = arith.constant 0 : i32
    return %c0_i32, %c0_i32_0 : i32, i32
  }
}

</mosaic_0001>

<llo_original>
// kernel: _lambda_.3
$region0: #{_lambda_.3}
  #allocation0 [shape = 'u32[]', space=smem, size = 0x4, offset = 0x4, fixed_abs, tag = 'smem constant byte address 0x4 - core index']
  #allocation1 [shape = 'u32[144,128]{1,0:T(1,128)}', space=vmem, size = 0x12000, scoped, tag = 'internal scratch']
  #allocation2 [shape = 'f32[1,1]{1,0:T(1,128)S(1)}', space=vmem, size = 0x200, scoped, tag = 'scoped memory for _lambda_.3']
  %s0 = inlined_call_operand.vmem [shape: f32[4,512], index: 0, kind: input, shape index: {}]
  %s1 = inlined_call_operand.vmem [shape: bf16[512,256], index: 1, kind: input, shape index: {}]
  %s2 = inlined_call_operand.vmem [shape: f32[1,256], index: 2, kind: input, shape index: {}]
  %s3 = inlined_call_operand.vmem [shape: f32[1,256], index: 3, kind: input, shape index: {}]
  %s4 = inlined_call_operand.<no memory space> [shape: f32[1,1], index: 4, kind: input, shape index: {}]
  %s5 = inlined_call_operand.vmem [shape: f32[4,1], index: 5, kind: output, shape index: {}]
  %s6 = sld [smem:[#allocation0]]
  $region30: #{_lambda_.3} parent=0
    _
  %s8 = ssub.s32 1, %s6
  %s9 = scalar_select 0, %s8, %s6
  %v10 = vstv %s4
  %11 = vst [vmem:[#allocation2] sm:$0x1] %v10
  // Predicated region
  $region2: #{_lambda_.3} parent=0 // pred_check
    _
  $region3: #{_lambda_.3} parent=0 // pred_check_branch
    %13 = sbr.rel (0) target = $region5
  $region4: #{_lambda_.3} parent=0 // pred_region
    _
  $region5: #{_lambda_.3} parent=0 // pred_fallthru
    _
  // Predicated region
  $region6: #{_lambda_.3} parent=0 // pred_check
    _
  $region7: #{_lambda_.3} parent=0 // pred_check_branch
    %15 = sbr.rel (0) target = $region9
  $region8: #{_lambda_.3} parent=0 // pred_region
    _
  $region9: #{_lambda_.3} parent=0 // pred_fallthru
    _
  // Predicated region
  $region10: #{_lambda_.3} parent=0 // pred_check
    _
  $region11: #{_lambda_.3} parent=0 // pred_check_branch
    %17 = sbr.rel (0) target = $region13
  $region12: #{_lambda_.3} parent=0 // pred_region
    _
  $region13: #{_lambda_.3} parent=0 // pred_fallthru
    _
  // Predicated region
  $region14: #{_lambda_.3} parent=0 // pred_check
    _
  $region15: #{_lambda_.3} parent=0 // pred_check_branch
    %19 = sbr.rel (0) target = $region17
  $region16: #{_lambda_.3} parent=0 // pred_region
    _
  $region17: #{_lambda_.3} parent=0 // pred_fallthru
    _
  // Predicated region
  $region18: #{_lambda_.3} parent=0 // pred_check
    _
  $region19: #{_lambda_.3} parent=0 // pred_check_branch
    %21 = sbr.rel (0) target = $region21
  $region20: #{_lambda_.3} parent=0 // pred_region
    _
  $region21: #{_lambda_.3} parent=0 // pred_fallthru
    _
  %v22 = vld [vmem:[%s0] sm:$0xff]
  %v23 = vld [vmem:[%s0 + $0x8] sm:$0xff]
  %v26 = vcombine.high %v22, %v22
  %v27 = vcombine.high %v23, %v23
  %v30 = vpack.c.bf16 %v22, %v22
  %v31 = vpack.c.bf16 %v26, %v26
  %v32 = vpack.c.bf16 %v23, %v23
  %v33 = vpack.c.bf16 %v27, %v27
  %v34 = vld [vmem:[%s1] sm:$0xff]
  %v35 = vld [vmem:[%s1 + $0x8] sm:$0xff]
  %v36 = vld [vmem:[%s1 + $0x10] sm:$0xff]
  %v37 = vld [vmem:[%s1 + $0x18] sm:$0xff]
  %v38 = vld [vmem:[%s1 + $0x20] sm:$0xff]
  %v39 = vld [vmem:[%s1 + $0x28] sm:$0xff]
  %v40 = vld [vmem:[%s1 + $0x30] sm:$0xff]
  %v41 = vld [vmem:[%s1 + $0x38] sm:$0xff]
  %v42 = vld [vmem:[%s1 + $0x40] sm:$0xff]
  %v43 = vld [vmem:[%s1 + $0x48] sm:$0xff]
  %v44 = vld [vmem:[%s1 + $0x50] sm:$0xff]
  %v45 = vld [vmem:[%s1 + $0x58] sm:$0xff]
  %v46 = vld [vmem:[%s1 + $0x60] sm:$0xff]
  %v47 = vld [vmem:[%s1 + $0x68] sm:$0xff]
  %v48 = vld [vmem:[%s1 + $0x70] sm:$0xff]
  %v49 = vld [vmem:[%s1 + $0x78] sm:$0xff]
  %v50 = vld [vmem:[%s1 + $0x80] sm:$0xff]
  %v51 = vld [vmem:[%s1 + $0x88] sm:$0xff]
  %v52 = vld [vmem:[%s1 + $0x90] sm:$0xff]
  %v53 = vld [vmem:[%s1 + $0x98] sm:$0xff]
  %v54 = vld [vmem:[%s1 + $0xa0] sm:$0xff]
  %v55 = vld [vmem:[%s1 + $0xa8] sm:$0xff]
  %v56 = vld [vmem:[%s1 + $0xb0] sm:$0xff]
  %v57 = vld [vmem:[%s1 + $0xb8] sm:$0xff]
  %v58 = vld [vmem:[%s1 + $0xc0] sm:$0xff]
  %v59 = vld [vmem:[%s1 + $0xc8] sm:$0xff]
  %v60 = vld [vmem:[%s1 + $0xd0] sm:$0xff]
  %v61 = vld [vmem:[%s1 + $0xd8] sm:$0xff]
  %v62 = vld [vmem:[%s1 + $0xe0] sm:$0xff]
  %v63 = vld [vmem:[%s1 + $0xe8] sm:$0xff]
  %v64 = vld [vmem:[%s1 + $0xf0] sm:$0xff]
  %v65 = vld [vmem:[%s1 + $0xf8] sm:$0xff]
  %v66 = vld [vmem:[%s1 + $0x100] sm:$0xff]
  %v67 = vld [vmem:[%s1 + $0x108] sm:$0xff]
  %v68 = vld [vmem:[%s1 + $0x110] sm:$0xff]
  %v69 = vld [vmem:[%s1 + $0x118] sm:$0xff]
  %v70 = vld [vmem:[%s1 + $0x120] sm:$0xff]
  %v71 = vld [vmem:[%s1 + $0x128] sm:$0xff]
  %v72 = vld [vmem:[%s1 + $0x130] sm:$0xff]
  %v73 = vld [vmem:[%s1 + $0x138] sm:$0xff]
  %v74 = vld [vmem:[%s1 + $0x140] sm:$0xff]
  %v75 = vld [vmem:[%s1 + $0x148] sm:$0xff]
  %v76 = vld [vmem:[%s1 + $0x150] sm:$0xff]
  %v77 = vld [vmem:[%s1 + $0x158] sm:$0xff]
  %v78 = vld [vmem:[%s1 + $0x160] sm:$0xff]
  %v79 = vld [vmem:[%s1 + $0x168] sm:$0xff]
  %v80 = vld [vmem:[%s1 + $0x170] sm:$0xff]
  %v81 = vld [vmem:[%s1 + $0x178] sm:$0xff]
  %v82 = vld [vmem:[%s1 + $0x180] sm:$0xff]
  %v83 = vld [vmem:[%s1 + $0x188] sm:$0xff]
  %v84 = vld [vmem:[%s1 + $0x190] sm:$0xff]
  %v85 = vld [vmem:[%s1 + $0x198] sm:$0xff]
  %v86 = vld [vmem:[%s1 + $0x1a0] sm:$0xff]
  %v87 = vld [vmem:[%s1 + $0x1a8] sm:$0xff]
  %v88 = vld [vmem:[%s1 + $0x1b0] sm:$0xff]
  %v89 = vld [vmem:[%s1 + $0x1b8] sm:$0xff]
  %v90 = vld [vmem:[%s1 + $0x1c0] sm:$0xff]
  %v91 = vld [vmem:[%s1 + $0x1c8] sm:$0xff]
  %v92 = vld [vmem:[%s1 + $0x1d0] sm:$0xff]
  %v93 = vld [vmem:[%s1 + $0x1d8] sm:$0xff]
  %v94 = vld [vmem:[%s1 + $0x1e0] sm:$0xff]
  %v95 = vld [vmem:[%s1 + $0x1e8] sm:$0xff]
  %v96 = vld [vmem:[%s1 + $0x1f0] sm:$0xff]
  %v97 = vld [vmem:[%s1 + $0x1f8] sm:$0xff]
  %v98 = vld [vmem:[%s2] sm:$0x3]
  %v100 = vlaneseq
  %v101 = vshrl.u32 %v100, 7
  %v102 = vsub.s32 0, %v101
  %v103 = vrot.slane %v98, %v102
  %v104 = vlaneseq
  %v105 = vshrl.u32 %v104, 7
  %v106 = vsub.s32 1, %v105
  %v107 = vrot.slane %v98, %v106
  %v174 = vunpack.c.l.b16 %v34
  %v175 = vunpack.c.h.b16 %v34
  %v176 = vunpack.c.l.b16 %v35
  %v177 = vunpack.c.h.b16 %v35
  %v178 = vunpack.c.l.b16 %v36
  %v179 = vunpack.c.h.b16 %v36
  %v180 = vunpack.c.l.b16 %v37
  %v181 = vunpack.c.h.b16 %v37
  %v182 = vunpack.c.l.b16 %v38
  %v183 = vunpack.c.h.b16 %v38
  %v184 = vunpack.c.l.b16 %v39
  %v185 = vunpack.c.h.b16 %v39
  %v186 = vunpack.c.l.b16 %v40
  %v187 = vunpack.c.h.b16 %v40
  %v188 = vunpack.c.l.b16 %v41
  %v189 = vunpack.c.h.b16 %v41
  %v190 = vunpack.c.l.b16 %v42
  %v191 = vunpack.c.h.b16 %v42
  %v192 = vunpack.c.l.b16 %v43
  %v193 = vunpack.c.h.b16 %v43
  %v194 = vunpack.c.l.b16 %v44
  %v195 = vunpack.c.h.b16 %v44
  %v196 = vunpack.c.l.b16 %v45
  %v197 = vunpack.c.h.b16 %v45
  %v198 = vunpack.c.l.b16 %v46
  %v199 = vunpack.c.h.b16 %v46
  %v200 = vunpack.c.l.b16 %v47
  %v201 = vunpack.c.h.b16 %v47
  %v202 = vunpack.c.l.b16 %v48
  %v203 = vunpack.c.h.b16 %v48
  %v204 = vunpack.c.l.b16 %v49
  %v205 = vunpack.c.h.b16 %v49
  %v206 = vunpack.c.l.b16 %v50
  %v207 = vunpack.c.h.b16 %v50
  %v208 = vunpack.c.l.b16 %v51
  %v209 = vunpack.c.h.b16 %v51
  %v210 = vunpack.c.l.b16 %v52
  %v211 = vunpack.c.h.b16 %v52
  %v212 = vunpack.c.l.b16 %v53
  %v213 = vunpack.c.h.b16 %v53
  %v214 = vunpack.c.l.b16 %v54
  %v215 = vunpack.c.h.b16 %v54
  %v216 = vunpack.c.l.b16 %v55
  %v217 = vunpack.c.h.b16 %v55
  %v218 = vunpack.c.l.b16 %v56
  %v219 = vunpack.c.h.b16 %v56
  %v220 = vunpack.c.l.b16 %v57
  %v221 = vunpack.c.h.b16 %v57
  %v222 = vunpack.c.l.b16 %v58
  %v223 = vunpack.c.h.b16 %v58
  %v224 = vunpack.c.l.b16 %v59
  %v225 = vunpack.c.h.b16 %v59
  %v226 = vunpack.c.l.b16 %v60
  %v227 = vunpack.c.h.b16 %v60
  %v228 = vunpack.c.l.b16 %v61
  %v229 = vunpack.c.h.b16 %v61
  %v230 = vunpack.c.l.b16 %v62
  %v231 = vunpack.c.h.b16 %v62
  %v232 = vunpack.c.l.b16 %v63
  %v233 = vunpack.c.h.b16 %v63
  %v234 = vunpack.c.l.b16 %v64
  %v235 = vunpack.c.h.b16 %v64
  %v236 = vunpack.c.l.b16 %v65
  %v237 = vunpack.c.h.b16 %v65
  %v238 = vunpack.c.l.b16 %v66
  %v239 = vunpack.c.h.b16 %v66
  %v240 = vunpack.c.l.b16 %v67
  %v241 = vunpack.c.h.b16 %v67
  %v242 = vunpack.c.l.b16 %v68
  %v243 = vunpack.c.h.b16 %v68
  %v244 = vunpack.c.l.b16 %v69
  %v245 = vunpack.c.h.b16 %v69
  %v246 = vunpack.c.l.b16 %v70
  %v247 = vunpack.c.h.b16 %v70
  %v248 = vunpack.c.l.b16 %v71
  %v249 = vunpack.c.h.b16 %v71
  %v250 = vunpack.c.l.b16 %v72
  %v251 = vunpack.c.h.b16 %v72
  %v252 = vunpack.c.l.b16 %v73
  %v253 = vunpack.c.h.b16 %v73
  %v254 = vunpack.c.l.b16 %v74
  %v255 = vunpack.c.h.b16 %v74
  %v256 = vunpack.c.l.b16 %v75
  %v257 = vunpack.c.h.b16 %v75
  %v258 = vunpack.c.l.b16 %v76
  %v259 = vunpack.c.h.b16 %v76
  %v260 = vunpack.c.l.b16 %v77
  %v261 = vunpack.c.h.b16 %v77
  %v262 = vunpack.c.l.b16 %v78
  %v263 = vunpack.c.h.b16 %v78
  %v264 = vunpack.c.l.b16 %v79
  %v265 = vunpack.c.h.b16 %v79
  %v266 = vunpack.c.l.b16 %v80
  %v267 = vunpack.c.h.b16 %v80
  %v268 = vunpack.c.l.b16 %v81
  %v269 = vunpack.c.h.b16 %v81
  %v270 = vunpack.c.l.b16 %v82
  %v271 = vunpack.c.h.b16 %v82
  %v272 = vunpack.c.l.b16 %v83
  %v273 = vunpack.c.h.b16 %v83
  %v274 = vunpack.c.l.b16 %v84
  %v275 = vunpack.c.h.b16 %v84
  %v276 = vunpack.c.l.b16 %v85
  %v277 = vunpack.c.h.b16 %v85
  %v278 = vunpack.c.l.b16 %v86
  %v279 = vunpack.c.h.b16 %v86
  %v280 = vunpack.c.l.b16 %v87
  %v281 = vunpack.c.h.b16 %v87
  %v282 = vunpack.c.l.b16 %v88
  %v283 = vunpack.c.h.b16 %v88
  %v284 = vunpack.c.l.b16 %v89
  %v285 = vunpack.c.h.b16 %v89
  %v286 = vunpack.c.l.b16 %v90
  %v287 = vunpack.c.h.b16 %v90
  %v288 = vunpack.c.l.b16 %v91
  %v289 = vunpack.c.h.b16 %v91
  %v290 = vunpack.c.l.b16 %v92
  %v291 = vunpack.c.h.b16 %v92
  %v292 = vunpack.c.l.b16 %v93
  %v293 = vunpack.c.h.b16 %v93
  %v294 = vunpack.c.l.b16 %v94
  %v295 = vunpack.c.h.b16 %v94
  %v296 = vunpack.c.l.b16 %v95
  %v297 = vunpack.c.h.b16 %v95
  %v298 = vunpack.c.l.b16 %v96
  %v299 = vunpack.c.h.b16 %v96
  %v300 = vunpack.c.l.b16 %v97
  %v301 = vunpack.c.h.b16 %v97
  %v302 = vpack.c.b16 %v176, %v174
  %v303 = vpack.c.b16 %v177, %v175
  %v304 = vpack.c.b16 %v180, %v178
  %v305 = vpack.c.b16 %v181, %v179
  %v306 = vpack.c.b16 %v184, %v182
  %v307 = vpack.c.b16 %v185, %v183
  %v308 = vpack.c.b16 %v188, %v186
  %v309 = vpack.c.b16 %v189, %v187
  %v310 = vpack.c.b16 %v192, %v190
  %v311 = vpack.c.b16 %v193, %v191
  %v312 = vpack.c.b16 %v196, %v194
  %v313 = vpack.c.b16 %v197, %v195
  %v314 = vpack.c.b16 %v200, %v198
  %v315 = vpack.c.b16 %v201, %v199
  %v316 = vpack.c.b16 %v204, %v202
  %v317 = vpack.c.b16 %v205, %v203
  %v318 = vpack.c.b16 %v208, %v206
  %v319 = vpack.c.b16 %v209, %v207
  %v320 = vpack.c.b16 %v212, %v210
  %v321 = vpack.c.b16 %v213, %v211
  %v322 = vpack.c.b16 %v216, %v214
  %v323 = vpack.c.b16 %v217, %v215
  %v324 = vpack.c.b16 %v220, %v218
  %v325 = vpack.c.b16 %v221, %v219
  %v326 = vpack.c.b16 %v224, %v222
  %v327 = vpack.c.b16 %v225, %v223
  %v328 = vpack.c.b16 %v228, %v226
  %v329 = vpack.c.b16 %v229, %v227
  %v330 = vpack.c.b16 %v232, %v230
  %v331 = vpack.c.b16 %v233, %v231
  %v332 = vpack.c.b16 %v236, %v234
  %v333 = vpack.c.b16 %v237, %v235
  %v334 = vpack.c.b16 %v240, %v238
  %v335 = vpack.c.b16 %v241, %v239
  %v336 = vpack.c.b16 %v244, %v242
  %v337 = vpack.c.b16 %v245, %v243
  %v338 = vpack.c.b16 %v248, %v246
  %v339 = vpack.c.b16 %v249, %v247
  %v340 = vpack.c.b16 %v252, %v250
  %v341 = vpack.c.b16 %v253, %v251
  %v342 = vpack.c.b16 %v256, %v254
  %v343 = vpack.c.b16 %v257, %v255
  %v344 = vpack.c.b16 %v260, %v258
  %v345 = vpack.c.b16 %v261, %v259
  %v346 = vpack.c.b16 %v264, %v262
  %v347 = vpack.c.b16 %v265, %v263
  %v348 = vpack.c.b16 %v268, %v266
  %v349 = vpack.c.b16 %v269, %v267
  %v350 = vpack.c.b16 %v272, %v270
  %v351 = vpack.c.b16 %v273, %v271
  %v352 = vpack.c.b16 %v276, %v274
  %v353 = vpack.c.b16 %v277, %v275
  %v354 = vpack.c.b16 %v280, %v278
  %v355 = vpack.c.b16 %v281, %v279
  %v356 = vpack.c.b16 %v284, %v282
  %v357 = vpack.c.b16 %v285, %v283
  %v358 = vpack.c.b16 %v288, %v286
  %v359 = vpack.c.b16 %v289, %v287
  %v360 = vpack.c.b16 %v292, %v290
  %v361 = vpack.c.b16 %v293, %v291
  %v362 = vpack.c.b16 %v296, %v294
  %v363 = vpack.c.b16 %v297, %v295
  %v364 = vpack.c.b16 %v300, %v298
  %v365 = vpack.c.b16 %v301, %v299
  %430 = vmatprep.subr.bf16.mxu0 %v303
  %431 = vmatpush1.bf16.msra.mxu0 %v302
  %432 = vmatprep.subr.bf16.mxu0 %v305
  %433 = vmatpush1.bf16.msra.mxu0 %v304
  %434 = vmatprep.subr.bf16.mxu0 %v307
  %435 = vmatpush1.bf16.msra.mxu0 %v306
  %436 = vmatprep.subr.bf16.mxu0 %v309
  %437 = vmatpush1.bf16.msra.mxu0 %v308
  %438 = vmatprep.subr.bf16.mxu0 %v311
  %439 = vmatpush1.bf16.msra.mxu0 %v310
  %440 = vmatprep.subr.bf16.mxu0 %v313
  %441 = vmatpush1.bf16.msra.mxu0 %v312
  %442 = vmatprep.subr.bf16.mxu0 %v315
  %443 = vmatpush1.bf16.msra.mxu0 %v314
  %444 = vmatprep.subr.bf16.mxu0 %v317
  %445 = vmatpush1.bf16.msra.mxu0 %v316
  %446 = vmatprep.subr.bf16.mxu0 %v319
  %447 = vmatpush1.bf16.msra.mxu0 %v318
  %448 = vmatprep.subr.bf16.mxu0 %v321
  %449 = vmatpush1.bf16.msra.mxu0 %v320
  %450 = vmatprep.subr.bf16.mxu0 %v323
  %451 = vmatpush1.bf16.msra.mxu0 %v322
  %452 = vmatprep.subr.bf16.mxu0 %v325
  %453 = vmatpush1.bf16.msra.mxu0 %v324
  %454 = vmatprep.subr.bf16.mxu0 %v327
  %455 = vmatpush1.bf16.msra.mxu0 %v326
  %456 = vmatprep.subr.bf16.mxu0 %v329
  %457 = vmatpush1.bf16.msra.mxu0 %v328
  %458 = vmatprep.subr.bf16.mxu0 %v331
  %459 = vmatpush1.bf16.msra.mxu0 %v330
  %460 = vmatprep.subr.bf16.mxu0 %v333
  %461 = vmatpush1.bf16.msra.mxu0 %v332
  %462 = vmatprep.mubr.bf16.mxu0 %v31
  %463 = vmatmul.mubr.bf16.gmra.mrb[0].mxu0 %v30
  %v464 = vpop.f32.mrb[0].mxu0
  %v465 = vadd.f32 %v103, %v464
  %v466 = vpop.f32.mrb[0].mxu0
  %v467 = vadd.f32 %v107, %v466
  %v468 = vpop.f32.mrb[0].mxu0
  %v469 = vpop.f32.mrb[0].mxu0
  %470 = vdwg.mxu0
  %471 = vmatprep.subr.bf16.mxu0 %v335
  %472 = vmatpush1.bf16.msra.mxu0 %v334
  %473 = vmatprep.subr.bf16.mxu0 %v337
  %474 = vmatpush1.bf16.msra.mxu0 %v336
  %475 = vmatprep.subr.bf16.mxu0 %v339
  %476 = vmatpush1.bf16.msra.mxu0 %v338
  %477 = vmatprep.subr.bf16.mxu0 %v341
  %478 = vmatpush1.bf16.msra.mxu0 %v340
  %479 = vmatprep.subr.bf16.mxu0 %v343
  %480 = vmatpush1.bf16.msra.mxu0 %v342
  %481 = vmatprep.subr.bf16.mxu0 %v345
  %482 = vmatpush1.bf16.msra.mxu0 %v344
  %483 = vmatprep.subr.bf16.mxu0 %v347
  %484 = vmatpush1.bf16.msra.mxu0 %v346
  %485 = vmatprep.subr.bf16.mxu0 %v349
  %486 = vmatpush1.bf16.msra.mxu0 %v348
  %487 = vmatprep.subr.bf16.mxu0 %v351
  %488 = vmatpush1.bf16.msra.mxu0 %v350
  %489 = vmatprep.subr.bf16.mxu0 %v353
  %490 = vmatpush1.bf16.msra.mxu0 %v352
  %491 = vmatprep.subr.bf16.mxu0 %v355
  %492 = vmatpush1.bf16.msra.mxu0 %v354
  %493 = vmatprep.subr.bf16.mxu0 %v357
  %494 = vmatpush1.bf16.msra.mxu0 %v356
  %495 = vmatprep.subr.bf16.mxu0 %v359
  %496 = vmatpush1.bf16.msra.mxu0 %v358
  %497 = vmatprep.subr.bf16.mxu0 %v361
  %498 = vmatpush1.bf16.msra.mxu0 %v360
  %499 = vmatprep.subr.bf16.mxu0 %v363
  %500 = vmatpush1.bf16.msra.mxu0 %v362
  %501 = vmatprep.subr.bf16.mxu0 %v365
  %502 = vmatpush1.bf16.msra.mxu0 %v364
  %503 = vmatprep.mubr.bf16.mxu0 %v33
  %504 = vmatmul.mubr.bf16.gmra.mrb[0].mxu0 %v32
  %v505 = vpop.f32.mrb[0].mxu0
  %v506 = vadd.f32 %v465, %v505
  %v507 = vpop.f32.mrb[0].mxu0
  %v508 = vadd.f32 %v467, %v507
  %v509 = vpop.f32.mrb[0].mxu0
  %v510 = vpop.f32.mrb[0].mxu0
  %511 = vdwg.mxu0
  %v512 = vmax.f32 %v506, 0.0
  %v513 = vmax.f32 %v508, 0.0
  %v514 = vld [vmem:[%s3] sm:$0x3]
  %v516 = vlaneseq
  %v517 = vshrl.u32 %v516, 7
  %v518 = vsub.s32 0, %v517
  %v519 = vrot.slane %v514, %v518
  %v520 = vlaneseq
  %v521 = vshrl.u32 %v520, 7
  %v522 = vsub.s32 1, %v521
  %v523 = vrot.slane %v514, %v522
  %v526 = vmul.f32 %v512, %v519
  %v527 = vmul.f32 %v513, %v523
  %vm528 = vcmask 1043456
  %v529 = vsel %vm528, %v526, 0.0
  %v530 = vsel %vm528, %v527, 0.0
  %v531 = vadd.f32 %v529, %v530
  %532 = vadd.xlane.f32.xlu0 %v531
  %v533 = vpop.xlane.xlu0 %532
  %v534 = vld [vmem:[#allocation2] sm:$0x1]
  %v536 = vlaneseq
  %v537 = vshrl.u32 %v536, 7
  %v538 = vsub.s32 0, %v537
  %v539 = vrot.slane %v534, %v538
  %v541 = vadd.f32 %v533, %v539
  %v542 = vxor.u32 %v541, 2147483648
  %v543 = vmul.f32 %v542, 1.442695
  %v544 = vpow.pop %v543
  %v545 = vadd.f32 %v544, 1.0
  %v546 = vrcp.pop %v545
  %v547 = vmul.f32 1.0, %v546
  %vm548 = vcmask 3072
  %549 = vst.msk [vmem:[%s5] sm:$0xf] %vm548, %v547
  // Predicated region
  $region22: #{_lambda_.3} parent=0 // pred_check
    _
  $region23: #{_lambda_.3} parent=0 // pred_check_branch
    %551 = sbr.rel (0) target = $region25
  $region24: #{_lambda_.3} parent=0 // pred_region
    _
  $region25: #{_lambda_.3} parent=0 // pred_fallthru
    _
  // Predicated region
  $region26: #{_lambda_.3} parent=0 // pred_check
    _
  $region27: #{_lambda_.3} parent=0 // pred_check_branch
    %553 = sbr.rel (0) target = $region29
  $region28: #{_lambda_.3} parent=0 // pred_region
    _
  $region29: #{_lambda_.3} parent=0 // pred_fallthru
    _

// kernel: _lambda_.2
$region0: #{_lambda_.2}
  #allocation0 [shape = 'u32[]', space=smem, size = 0x4, offset = 0x4, fixed_abs, tag = 'smem constant byte address 0x4 - core index']
  #allocation1 [shape = 'u32[144,128]{1,0:T(1,128)}', space=vmem, size = 0x12000, scoped, tag = 'internal scratch']
  %s0 = inlined_call_operand.vmem [shape: bf16[2,256,4], index: 0, kind: input, shape index: {}]
  %s1 = inlined_call_operand.vmem [shape: bf16[9,64,256], index: 1, kind: input, shape index: {}]
  %s2 = inlined_call_operand.vmem [shape: bf16[9,16,64], index: 2, kind: input, shape index: {}]
  %s3 = inlined_call_operand.vmem [shape: bf16[9,4,16], index: 3, kind: input, shape index: {}]
  %s4 = inlined_call_operand.vmem [shape: bf16[2,9,4,64], index: 4, kind: input, shape index: {}]
  %s5 = inlined_call_operand.vmem [shape: bf16[2,9,64,128], index: 5, kind: input, shape index: {}]
  %s6 = inlined_call_operand.vmem [shape: bf16[2,9,128,256], index: 6, kind: input, shape index: {}]
  %s7 = inlined_call_operand.vmem [shape: f32[2,1,64], index: 7, kind: input, shape index: {}]
  %s8 = inlined_call_operand.vmem [shape: f32[2,1,128], index: 8, kind: input, shape index: {}]
  %s9 = inlined_call_operand.vmem [shape: f32[2,1,256], index: 9, kind: input, shape index: {}]
  %s10 = inlined_call_operand.vmem [shape: f32[2,4,256], index: 10, kind: output, shape index: {}]
  %s11 = sld [smem:[#allocation0]]
  $region73: #{_lambda_.2} parent=0
    _
  %s13 = ssub.s32 1, %s11
  %s14 = scalar_select 0, %s13, %s11
  loop: start=0, step=1, limit=4
  $region2: #{_lambda_.2} parent=0 // loop_pre_header
    _
  $region3: #{_lambda_.2} parent=0 // loop_header
    %s16 = sphi 0, %s20
    %p17 = scmp.ge.s32.totalorder %s16, 4
    %s26 = sphi 0, %s28
    %s29 = sphi 0, %s26
    %s30 = sphi 0, %s29
    %s46 = sphi 0, %s30
    %s50 = sphi 0, %s50
    %s52 = sphi 0, %s50
    %s53 = sphi 0, %s52
    %s67 = sphi 0, %s53
    %s71 = sphi 0, %s71
    %s73 = sphi 0, %s71
    %s74 = sphi 0, %s73
    %s88 = sphi 0, %s74
    %s92 = sphi 0, %s92
    %s94 = sphi 0, %s92
    %s95 = sphi 0, %s94
    %s109 = sphi 0, %s95
    %s115 = sphi 0, %s117
    %s118 = sphi 0, %s115
    %s119 = sphi 0, %s118
    %s135 = sphi 0, %s119
    %s141 = sphi 0, %s143
    %s144 = sphi 0, %s141
    %s145 = sphi 0, %s144
    %s161 = sphi 0, %s145
    %s167 = sphi 0, %s169
    %s170 = sphi 0, %s167
    %s171 = sphi 0, %s170
    %s187 = sphi 0, %s171
    %s193 = sphi 0, %s195
    %s196 = sphi 0, %s193
    %s197 = sphi 0, %s196
    %s213 = sphi 0, %s197
    %s219 = sphi 0, %s221
    %s222 = sphi 0, %s219
    %s223 = sphi 0, %s222
    %s239 = sphi 0, %s223
    %s245 = sphi 0, %s247
    %s248 = sphi 0, %s245
    %s249 = sphi 0, %s248
    %s265 = sphi 0, %s249
    %s271 = sphi 0, %s273
    %s274 = sphi 0, %s271
    %s275 = sphi 0, %s274
    %s291 = sphi 0, %s275
  $region4: #{_lambda_.2} parent=0 // loop_header_branch
    %19 = sbr.rel (%p17) target = $region8
  $region5: #{_lambda_.2} parent=0 // loop_body
    %s21 = ssub.s32 %s16, 1
    %s22 = ssub.s32 %s16, 2
    %s23 = sadd.s32 %s16, 1
    %s24 = ssub.s32 %s16, %s23
    %p25 = scmp.eq.s32.totalorder %s24, 0
    %s27 = sadd.s32 %s26, 1
    %s28 = scalar_select %p25, %s26, %s27
    %p31 = pneg %p25
    %p32 = scmp.eq.s32.totalorder %s16, 1
    %p33 = por %p31, %p32
    %p34 = scmp.ne.s32.totalorder %s26, %s29
    %p35 = scmp.eq.s32.totalorder %s16, 0
    %p36 = por %p34, %p35
    %p37 = scmp.ne.s32.totalorder %s26, %s29
    %p38 = scmp.eq.s32.totalorder %s21, 1
    %p39 = por %p37, %p38
    %p40 = scmp.ne.s32.totalorder %s29, %s30
    %p41 = scmp.eq.s32.totalorder %s21, 0
    %p42 = por %p40, %p41
    %p43 = scmp.ne.s32.totalorder %s29, %s30
    %p44 = scmp.eq.s32.totalorder %s22, 1
    %p45 = por %p43, %p44
    %p47 = scmp.ne.s32.totalorder %s30, %s46
    %p48 = scmp.eq.s32.totalorder %s22, 0
    %p49 = por %p47, %p48
    %s51 = sadd.s32 %s50, 1
    %p54 = scmp.eq.s32.totalorder %s16, 1
    %p55 = scmp.ne.s32.totalorder %s50, %s52
    %p56 = scmp.eq.s32.totalorder %s16, 0
    %p57 = por %p55, %p56
    %p58 = scmp.ne.s32.totalorder %s50, %s52
    %p59 = scmp.eq.s32.totalorder %s21, 1
    %p60 = por %p58, %p59
    %p61 = scmp.ne.s32.totalorder %s52, %s53
    %p62 = scmp.eq.s32.totalorder %s21, 0
    %p63 = por %p61, %p62
    %p64 = scmp.ne.s32.totalorder %s52, %s53
    %p65 = scmp.eq.s32.totalorder %s22, 1
    %p66 = por %p64, %p65
    %p68 = scmp.ne.s32.totalorder %s53, %s67
    %p69 = scmp.eq.s32.totalorder %s22, 0
    %p70 = por %p68, %p69
    %s72 = sadd.s32 %s71, 1
    %p75 = scmp.eq.s32.totalorder %s16, 1
    %p76 = scmp.ne.s32.totalorder %s71, %s73
    %p77 = scmp.eq.s32.totalorder %s16, 0
    %p78 = por %p76, %p77
    %p79 = scmp.ne.s32.totalorder %s71, %s73
    %p80 = scmp.eq.s32.totalorder %s21, 1
    %p81 = por %p79, %p80
    %p82 = scmp.ne.s32.totalorder %s73, %s74
    %p83 = scmp.eq.s32.totalorder %s21, 0
    %p84 = por %p82, %p83
    %p85 = scmp.ne.s32.totalorder %s73, %s74
    %p86 = scmp.eq.s32.totalorder %s22, 1
    %p87 = por %p85, %p86
    %p89 = scmp.ne.s32.totalorder %s74, %s88
    %p90 = scmp.eq.s32.totalorder %s22, 0
    %p91 = por %p89, %p90
    %s93 = sadd.s32 %s92, 1
    %p96 = scmp.eq.s32.totalorder %s16, 1
    %p97 = scmp.ne.s32.totalorder %s92, %s94
    %p98 = scmp.eq.s32.totalorder %s16, 0
    %p99 = por %p97, %p98
    %p100 = scmp.ne.s32.totalorder %s92, %s94
    %p101 = scmp.eq.s32.totalorder %s21, 1
    %p102 = por %p100, %p101
    %p103 = scmp.ne.s32.totalorder %s94, %s95
    %p104 = scmp.eq.s32.totalorder %s21, 0
    %p105 = por %p103, %p104
    %p106 = scmp.ne.s32.totalorder %s94, %s95
    %p107 = scmp.eq.s32.totalorder %s22, 1
    %p108 = por %p106, %p107
    %p110 = scmp.ne.s32.totalorder %s95, %s109
    %p111 = scmp.eq.s32.totalorder %s22, 0
    %p112 = por %p110, %p111
    %s113 = ssub.s32 %s16, %s23
    %p114 = scmp.eq.s32.totalorder %s113, 0
    %s116 = sadd.s32 %s115, 1
    %s117 = scalar_select %p114, %s115, %s116
    %p120 = pneg %p114
    %p121 = scmp.eq.s32.totalorder %s16, 1
    %p122 = por %p120, %p121
    %p123 = scmp.ne.s32.totalorder %s115, %s118
    %p124 = scmp.eq.s32.totalorder %s16, 0
    %p125 = por %p123, %p124
    %p126 = scmp.ne.s32.totalorder %s115, %s118
    %p127 = scmp.eq.s32.totalorder %s21, 1
    %p128 = por %p126, %p127
    %p129 = scmp.ne.s32.totalorder %s118, %s119
    %p130 = scmp.eq.s32.totalorder %s21, 0
    %p131 = por %p129, %p130
    %p132 = scmp.ne.s32.totalorder %s118, %s119
    %p133 = scmp.eq.s32.totalorder %s22, 1
    %p134 = por %p132, %p133
    %p136 = scmp.ne.s32.totalorder %s119, %s135
    %p137 = scmp.eq.s32.totalorder %s22, 0
    %p138 = por %p136, %p137
    %s139 = ssub.s32 %s16, %s23
    %p140 = scmp.eq.s32.totalorder %s139, 0
    %s142 = sadd.s32 %s141, 1
    %s143 = scalar_select %p140, %s141, %s142
    %p146 = pneg %p140
    %p147 = scmp.eq.s32.totalorder %s16, 1
    %p148 = por %p146, %p147
    %p149 = scmp.ne.s32.totalorder %s141, %s144
    %p150 = scmp.eq.s32.totalorder %s16, 0
    %p151 = por %p149, %p150
    %p152 = scmp.ne.s32.totalorder %s141, %s144
    %p153 = scmp.eq.s32.totalorder %s21, 1
    %p154 = por %p152, %p153
    %p155 = scmp.ne.s32.totalorder %s144, %s145
    %p156 = scmp.eq.s32.totalorder %s21, 0
    %p157 = por %p155, %p156
    %p158 = scmp.ne.s32.totalorder %s144, %s145
    %p159 = scmp.eq.s32.totalorder %s22, 1
    %p160 = por %p158, %p159
    %p162 = scmp.ne.s32.totalorder %s145, %s161
    %p163 = scmp.eq.s32.totalorder %s22, 0
    %p164 = por %p162, %p163
    %s165 = ssub.s32 %s16, %s23
    %p166 = scmp.eq.s32.totalorder %s165, 0
    %s168 = sadd.s32 %s167, 1
    %s169 = scalar_select %p166, %s167, %s168
    %p172 = pneg %p166
    %p173 = scmp.eq.s32.totalorder %s16, 1
    %p174 = por %p172, %p173
    %p175 = scmp.ne.s32.totalorder %s167, %s170
    %p176 = scmp.eq.s32.totalorder %s16, 0
    %p177 = por %p175, %p176
    %p178 = scmp.ne.s32.totalorder %s167, %s170
    %p179 = scmp.eq.s32.totalorder %s21, 1
    %p180 = por %p178, %p179
    %p181 = scmp.ne.s32.totalorder %s170, %s171
    %p182 = scmp.eq.s32.totalorder %s21, 0
    %p183 = por %p181, %p182
    %p184 = scmp.ne.s32.totalorder %s170, %s171
    %p185 = scmp.eq.s32.totalorder %s22, 1
    %p186 = por %p184, %p185
    %p188 = scmp.ne.s32.totalorder %s171, %s187
    %p189 = scmp.eq.s32.totalorder %s22, 0
    %p190 = por %p188, %p189
    %s191 = ssub.s32 %s16, %s23
    %p192 = scmp.eq.s32.totalorder %s191, 0
    %s194 = sadd.s32 %s193, 1
    %s195 = scalar_select %p192, %s193, %s194
    %p198 = pneg %p192
    %p199 = scmp.eq.s32.totalorder %s16, 1
    %p200 = por %p198, %p199
    %p201 = scmp.ne.s32.totalorder %s193, %s196
    %p202 = scmp.eq.s32.totalorder %s16, 0
    %p203 = por %p201, %p202
    %p204 = scmp.ne.s32.totalorder %s193, %s196
    %p205 = scmp.eq.s32.totalorder %s21, 1
    %p206 = por %p204, %p205
    %p207 = scmp.ne.s32.totalorder %s196, %s197
    %p208 = scmp.eq.s32.totalorder %s21, 0
    %p209 = por %p207, %p208
    %p210 = scmp.ne.s32.totalorder %s196, %s197
    %p211 = scmp.eq.s32.totalorder %s22, 1
    %p212 = por %p210, %p211
    %p214 = scmp.ne.s32.totalorder %s197, %s213
    %p215 = scmp.eq.s32.totalorder %s22, 0
    %p216 = por %p214, %p215
    %s217 = ssub.s32 %s16, %s23
    %p218 = scmp.eq.s32.totalorder %s217, 0
    %s220 = sadd.s32 %s219, 1
    %s221 = scalar_select %p218, %s219, %s220
    %p224 = pneg %p218
    %p225 = scmp.eq.s32.totalorder %s16, 1
    %p226 = por %p224, %p225
    %p227 = scmp.ne.s32.totalorder %s219, %s222
    %p228 = scmp.eq.s32.totalorder %s16, 0
    %p229 = por %p227, %p228
    %p230 = scmp.ne.s32.totalorder %s219, %s222
    %p231 = scmp.eq.s32.totalorder %s21, 1
    %p232 = por %p230, %p231
    %p233 = scmp.ne.s32.totalorder %s222, %s223
    %p234 = scmp.eq.s32.totalorder %s21, 0
    %p235 = por %p233, %p234
    %p236 = scmp.ne.s32.totalorder %s222, %s223
    %p237 = scmp.eq.s32.totalorder %s22, 1
    %p238 = por %p236, %p237
    %p240 = scmp.ne.s32.totalorder %s223, %s239
    %p241 = scmp.eq.s32.totalorder %s22, 0
    %p242 = por %p240, %p241
    %s243 = ssub.s32 %s16, %s23
    %p244 = scmp.eq.s32.totalorder %s243, 0
    %s246 = sadd.s32 %s245, 1
    %s247 = scalar_select %p244, %s245, %s246
    %p250 = pneg %p244
    %p251 = scmp.eq.s32.totalorder %s16, 1
    %p252 = por %p250, %p251
    %p253 = scmp.ne.s32.totalorder %s245, %s248
    %p254 = scmp.eq.s32.totalorder %s16, 0
    %p255 = por %p253, %p254
    %p256 = scmp.ne.s32.totalorder %s245, %s248
    %p257 = scmp.eq.s32.totalorder %s21, 1
    %p258 = por %p256, %p257
    %p259 = scmp.ne.s32.totalorder %s248, %s249
    %p260 = scmp.eq.s32.totalorder %s21, 0
    %p261 = por %p259, %p260
    %p262 = scmp.ne.s32.totalorder %s248, %s249
    %p263 = scmp.eq.s32.totalorder %s22, 1
    %p264 = por %p262, %p263
    %p266 = scmp.ne.s32.totalorder %s249, %s265
    %p267 = scmp.eq.s32.totalorder %s22, 0
    %p268 = por %p266, %p267
    %s269 = ssub.s32 %s16, %s23
    %p270 = scmp.eq.s32.totalorder %s269, 0
    %s272 = sadd.s32 %s271, 1
    %s273 = scalar_select %p270, %s271, %s272
    %p276 = pneg %p270
    %p277 = scmp.eq.s32.totalorder %s16, 1
    %p278 = por %p276, %p277
    %p279 = scmp.ne.s32.totalorder %s271, %s274
    %p280 = scmp.eq.s32.totalorder %s16, 0
    %p281 = por %p279, %p280
    %p282 = scmp.ne.s32.totalorder %s271, %s274
    %p283 = scmp.eq.s32.totalorder %s21, 1
    %p284 = por %p282, %p283
    %p285 = scmp.ne.s32.totalorder %s274, %s275
    %p286 = scmp.eq.s32.totalorder %s21, 0
    %p287 = por %p285, %p286
    %p288 = scmp.ne.s32.totalorder %s274, %s275
    %p289 = scmp.eq.s32.totalorder %s22, 1
    %p290 = por %p288, %p289
    %p292 = scmp.ne.s32.totalorder %s275, %s291
    %p293 = scmp.eq.s32.totalorder %s22, 0
    %p294 = por %p292, %p293
    %p295 = scmp.le.s32.totalorder 1, %s16
    %p296 = scmp.lt.s32.totalorder %s16, 3
    %p297 = pnand %p295, %p296
    %p298 = pneg %p297
    // Predicated region
    $region9: #{_lambda_.2} parent=5 // pred_check
      _
    $region10: #{_lambda_.2} parent=5 // pred_check_branch
      %300 = sbr.rel (%p297) target = $region12
    $region11: #{_lambda_.2} parent=5 // pred_region
      %s301 = ssub.s32 %s16, 1
      // Predicated region
      $region13: #{_lambda_.2} parent=11 // pred_check
        %p302 = pneg %p63
      $region14: #{_lambda_.2} parent=11 // pred_check_branch
        %304 = sbr.rel (%p302) target = $region16
      $region15: #{_lambda_.2} parent=11 // pred_region
        _
      $region16: #{_lambda_.2} parent=11 // pred_fallthru
        _
      // Predicated region
      $region17: #{_lambda_.2} parent=11 // pred_check
        %p305 = pneg %p84
      $region18: #{_lambda_.2} parent=11 // pred_check_branch
        %307 = sbr.rel (%p305) target = $region20
      $region19: #{_lambda_.2} parent=11 // pred_region
        _
      $region20: #{_lambda_.2} parent=11 // pred_fallthru
        _
      // Predicated region
      $region21: #{_lambda_.2} parent=11 // pred_check
        %p308 = pneg %p105
      $region22: #{_lambda_.2} parent=11 // pred_check_branch
        %310 = sbr.rel (%p308) target = $region24
      $region23: #{_lambda_.2} parent=11 // pred_region
        _
      $region24: #{_lambda_.2} parent=11 // pred_fallthru
        _
    $region12: #{_lambda_.2} parent=5 // pred_fallthru
      _
    %p311 = scmp.lt.s32.totalorder %s16, 2
    // Predicated region
    $region25: #{_lambda_.2} parent=5 // pred_check
      %p312 = pneg %p311
    $region26: #{_lambda_.2} parent=5 // pred_check_branch
      %314 = sbr.rel (%p312) target = $region28
    $region27: #{_lambda_.2} parent=5 // pred_region
      // Predicated region
      $region29: #{_lambda_.2} parent=27 // pred_check
        %p315 = pneg %p36
      $region30: #{_lambda_.2} parent=27 // pred_check_branch
        %317 = sbr.rel (%p315) target = $region32
      $region31: #{_lambda_.2} parent=27 // pred_region
        %p318 = scmp.lt.s32.totalorder %s16, 1
        %s319 = scalar_select %p318, %s16, 1
        %s320 = smul.addr %s319, 32
        %s321 = smul.addr %s320, 4
        %s322 = scalar_lea.vmem %s0, %s321
      $region32: #{_lambda_.2} parent=27 // pred_fallthru
        _
      // Predicated region
      $region33: #{_lambda_.2} parent=27 // pred_check
        %p323 = pneg %p125
      $region34: #{_lambda_.2} parent=27 // pred_check_branch
        %325 = sbr.rel (%p323) target = $region36
      $region35: #{_lambda_.2} parent=27 // pred_region
        %p326 = scmp.lt.s32.totalorder %s16, 1
        %s327 = scalar_select %p326, %s16, 1
        %s328 = smul.addr %s327, 9
        %s329 = smul.addr %s328, 2
        %s330 = scalar_lea.vmem %s4, %s329
      $region36: #{_lambda_.2} parent=27 // pred_fallthru
        _
      // Predicated region
      $region37: #{_lambda_.2} parent=27 // pred_check
        %p331 = pneg %p151
      $region38: #{_lambda_.2} parent=27 // pred_check_branch
        %333 = sbr.rel (%p331) target = $region40
      $region39: #{_lambda_.2} parent=27 // pred_region
        %p334 = scmp.lt.s32.totalorder %s16, 1
        %s335 = scalar_select %p334, %s16, 1
        %s336 = smul.addr %s335, 72
        %s337 = smul.addr %s336, 4
        %s338 = scalar_lea.vmem %s5, %s337
      $region40: #{_lambda_.2} parent=27 // pred_fallthru
        _
      // Predicated region
      $region41: #{_lambda_.2} parent=27 // pred_check
        %p339 = pneg %p177
      $region42: #{_lambda_.2} parent=27 // pred_check_branch
        %341 = sbr.rel (%p339) target = $region44
      $region43: #{_lambda_.2} parent=27 // pred_region
        %p342 = scmp.lt.s32.totalorder %s16, 1
        %s343 = scalar_select %p342, %s16, 1
        %s344 = smul.addr %s343, 288
        %s345 = smul.addr %s344, 4
        %s346 = scalar_lea.vmem %s6, %s345
      $region44: #{_lambda_.2} parent=27 // pred_fallthru
        _
      // Predicated region
      $region45: #{_lambda_.2} parent=27 // pred_check
        %p347 = pneg %p203
      $region46: #{_lambda_.2} parent=27 // pred_check_branch
        %349 = sbr.rel (%p347) target = $region48
      $region47: #{_lambda_.2} parent=27 // pred_region
        %p350 = scmp.lt.s32.totalorder %s16, 1
        %s351 = scalar_select %p350, %s16, 1
        %s352 = scalar_lea.vmem %s7, %s351
      $region48: #{_lambda_.2} parent=27 // pred_fallthru
        _
      // Predicated region
      $region49: #{_lambda_.2} parent=27 // pred_check
        %p353 = pneg %p229
      $region50: #{_lambda_.2} parent=27 // pred_check_branch
        %355 = sbr.rel (%p353) target = $region52
      $region51: #{_lambda_.2} parent=27 // pred_region
        %p356 = scmp.lt.s32.totalorder %s16, 1
        %s357 = scalar_select %p356, %s16, 1
        %s358 = scalar_lea.vmem %s8, %s357
      $region52: #{_lambda_.2} parent=27 // pred_fallthru
        _
      // Predicated region
      $region53: #{_lambda_.2} parent=27 // pred_check
        %p359 = pneg %p255
      $region54: #{_lambda_.2} parent=27 // pred_check_branch
        %361 = sbr.rel (%p359) target = $region56
      $region55: #{_lambda_.2} parent=27 // pred_region
        %p362 = scmp.lt.s32.totalorder %s16, 1
        %s363 = scalar_select %p362, %s16, 1
        %s364 = smul.addr %s363, 2
        %s365 = scalar_lea.vmem %s9, %s364
      $region56: #{_lambda_.2} parent=27 // pred_fallthru
        _
    $region28: #{_lambda_.2} parent=5 // pred_fallthru
      _
    %p366 = scmp.le.s32.totalorder 1, %s16
    %p367 = scmp.lt.s32.totalorder %s16, 3
    %p368 = pnand %p366, %p367
    %p369 = pneg %p368
    // Predicated region
    $region57: #{_lambda_.2} parent=5 // pred_check
      _
    $region58: #{_lambda_.2} parent=5 // pred_check_branch
      %371 = sbr.rel (%p368) target = $region60
    $region59: #{_lambda_.2} parent=5 // pred_region
      %s372 = ssub.s32 %s16, 1
      %p373 = scmp.lt.s32.totalorder %s21, 1
      %s374 = scalar_select %p373, %s21, 1
      %s375 = smul.addr %s374, 32
      %s376 = smul.addr %s375, 4
      %s377 = scalar_lea.vmem %s0, %s376
      %p378 = pneg %p42
      %p379 = pneg %p39
      %p380 = pneg %p63
      %p381 = pneg %p60
      %p382 = pneg %p84
      %p383 = pneg %p81
      %p384 = pneg %p105
      %p385 = pneg %p102
      %p386 = scmp.lt.s32.totalorder %s21, 1
      %s387 = scalar_select %p386, %s21, 1
      %s388 = smul.addr %s387, 9
      %s389 = smul.addr %s388, 2
      %s390 = scalar_lea.vmem %s4, %s389
      %p391 = pneg %p131
      %p392 = pneg %p128
      %p393 = scmp.lt.s32.totalorder %s21, 1
      %s394 = scalar_select %p393, %s21, 1
      %s395 = smul.addr %s394, 72
      %s396 = smul.addr %s395, 4
      %s397 = scalar_lea.vmem %s5, %s396
      %p398 = pneg %p157
      %p399 = pneg %p154
      %p400 = scmp.lt.s32.totalorder %s21, 1
      %s401 = scalar_select %p400, %s21, 1
      %s402 = smul.addr %s401, 288
      %s403 = smul.addr %s402, 4
      %s404 = scalar_lea.vmem %s6, %s403
      %p405 = pneg %p183
      %p406 = pneg %p180
      %p407 = scmp.lt.s32.totalorder %s21, 1
      %s408 = scalar_select %p407, %s21, 1
      %s409 = scalar_lea.vmem %s7, %s408
      %p410 = pneg %p209
      %p411 = pneg %p206
      %p412 = scmp.lt.s32.totalorder %s21, 1
      %s413 = scalar_select %p412, %s21, 1
      %s414 = scalar_lea.vmem %s8, %s413
      %p415 = pneg %p235
      %p416 = pneg %p232
      %p417 = scmp.lt.s32.totalorder %s21, 1
      %s418 = scalar_select %p417, %s21, 1
      %s419 = smul.addr %s418, 2
      %s420 = scalar_lea.vmem %s9, %s419
      %p421 = pneg %p261
      %p422 = pneg %p258
      %p423 = pneg %p287
      %p424 = pneg %p284
      %p425 = scmp.lt.s32.totalorder %s21, 1
      %s426 = scalar_select %p425, %s21, 1
      %s427 = smul.addr %s426, 2
      %s428 = smul.addr %s427, 4
      %s429 = scalar_lea.vmem %s10, %s428
      %p430 = scmp.lt.s32.totalorder %s21, 1
      %s431 = scalar_select %p430, %s21, 1
      %s432 = smul.addr %s431, 32
      %s433 = smul.addr %s432, 4
      %s434 = scalar_lea.vmem %s0, %s433
      %p435 = scmp.lt.s32.totalorder %s21, 1
      %s436 = scalar_select %p435, %s21, 1
      %s437 = smul.addr %s436, 9
      %s438 = smul.addr %s437, 2
      %s439 = scalar_lea.vmem %s4, %s438
      %p440 = scmp.lt.s32.totalorder %s21, 1
      %s441 = scalar_select %p440, %s21, 1
      %s442 = smul.addr %s441, 72
      %s443 = smul.addr %s442, 4
      %s444 = scalar_lea.vmem %s5, %s443
      %p445 = scmp.lt.s32.totalorder %s21, 1
      %s446 = scalar_select %p445, %s21, 1
      %s447 = smul.addr %s446, 288
      %s448 = smul.addr %s447, 4
      %s449 = scalar_lea.vmem %s6, %s448
      %p450 = scmp.lt.s32.totalorder %s21, 1
      %s451 = scalar_select %p450, %s21, 1
      %s452 = scalar_lea.vmem %s7, %s451
      %p453 = scmp.lt.s32.totalorder %s21, 1
      %s454 = scalar_select %p453, %s21, 1
      %s455 = scalar_lea.vmem %s8, %s454
      %p456 = scmp.lt.s32.totalorder %s21, 1
      %s457 = scalar_select %p456, %s21, 1
      %s458 = smul.addr %s457, 2
      %s459 = scalar_lea.vmem %s9, %s458
      %p460 = scmp.lt.s32.totalorder %s21, 1
      %s461 = scalar_select %p460, %s21, 1
      %s462 = smul.addr %s461, 2
      %s463 = smul.addr %s462, 4
      %s464 = scalar_lea.vmem %s10, %s463
      %v466 = vld [vmem:[%s434] sm:$0xf]
      %v467 = vld [vmem:[%s434 + $0x4] sm:$0xf]
      %v468 = vld [vmem:[%s434 + $0x8] sm:$0xf]
      %v469 = vld [vmem:[%s434 + $0xc] sm:$0xf]
      %v470 = vld [vmem:[%s434 + $0x10] sm:$0xf]
      %v471 = vld [vmem:[%s434 + $0x14] sm:$0xf]
      %v472 = vld [vmem:[%s434 + $0x18] sm:$0xf]
      %v473 = vld [vmem:[%s434 + $0x1c] sm:$0xf]
      %v474 = vld [vmem:[%s434 + $0x20] sm:$0xf]
      %v475 = vld [vmem:[%s434 + $0x24] sm:$0xf]
      %v476 = vld [vmem:[%s434 + $0x28] sm:$0xf]
      %v477 = vld [vmem:[%s434 + $0x2c] sm:$0xf]
      %v478 = vld [vmem:[%s434 + $0x30] sm:$0xf]
      %v479 = vld [vmem:[%s434 + $0x34] sm:$0xf]
      %v480 = vld [vmem:[%s434 + $0x38] sm:$0xf]
      %v481 = vld [vmem:[%s434 + $0x3c] sm:$0xf]
      %v482 = vld [vmem:[%s434 + $0x40] sm:$0xf]
      %v483 = vld [vmem:[%s434 + $0x44] sm:$0xf]
      %v484 = vld [vmem:[%s434 + $0x48] sm:$0xf]
      %v485 = vld [vmem:[%s434 + $0x4c] sm:$0xf]
      %v486 = vld [vmem:[%s434 + $0x50] sm:$0xf]
      %v487 = vld [vmem:[%s434 + $0x54] sm:$0xf]
      %v488 = vld [vmem:[%s434 + $0x58] sm:$0xf]
      %v489 = vld [vmem:[%s434 + $0x5c] sm:$0xf]
      %v490 = vld [vmem:[%s434 + $0x60] sm:$0xf]
      %v491 = vld [vmem:[%s434 + $0x64] sm:$0xf]
      %v492 = vld [vmem:[%s434 + $0x68] sm:$0xf]
      %v493 = vld [vmem:[%s434 + $0x6c] sm:$0xf]
      %v494 = vld [vmem:[%s434 + $0x70] sm:$0xf]
      %v495 = vld [vmem:[%s434 + $0x74] sm:$0xf]
      %v496 = vld [vmem:[%s434 + $0x78] sm:$0xf]
      %v497 = vld [vmem:[%s434 + $0x7c] sm:$0xf]
      %v498 = vld [vmem:[%s1] sm:$0xff]
      %v499 = vld [vmem:[%s1 + $0x8] sm:$0xff]
      %v500 = vld [vmem:[%s1 + $0x10] sm:$0xff]
      %v501 = vld [vmem:[%s1 + $0x18] sm:$0xff]
      %v502 = vld [vmem:[%s1 + $0x20] sm:$0xff]
      %v503 = vld [vmem:[%s1 + $0x28] sm:$0xff]
      %v504 = vld [vmem:[%s1 + $0x30] sm:$0xff]
      %v505 = vld [vmem:[%s1 + $0x38] sm:$0xff]
      %v514 = vunpack.c.l.b16 %v498
      %v515 = vunpack.c.h.b16 %v498
      %v516 = vunpack.c.l.b16 %v499
      %v517 = vunpack.c.h.b16 %v499
      %v518 = vunpack.c.l.b16 %v500
      %v519 = vunpack.c.h.b16 %v500
      %v520 = vunpack.c.l.b16 %v501
      %v521 = vunpack.c.h.b16 %v501
      %v522 = vunpack.c.l.b16 %v502
      %v523 = vunpack.c.h.b16 %v502
      %v524 = vunpack.c.l.b16 %v503
      %v525 = vunpack.c.h.b16 %v503
      %v526 = vunpack.c.l.b16 %v504
      %v527 = vunpack.c.h.b16 %v504
      %v528 = vunpack.c.l.b16 %v505
      %v529 = vunpack.c.h.b16 %v505
      %v530 = vpack.c.b16 %v516, %v514
      %v531 = vpack.c.b16 %v517, %v515
      %v532 = vpack.c.b16 %v520, %v518
      %v533 = vpack.c.b16 %v521, %v519
      %v534 = vpack.c.b16 %v524, %v522
      %v535 = vpack.c.b16 %v525, %v523
      %v536 = vpack.c.b16 %v528, %v526
      %v537 = vpack.c.b16 %v529, %v527
      %v578 = vunpack.c.l.b16 %v466
      %v579 = vunpack.c.l.b16 %v467
      %v580 = vunpack.c.l.b16 %v468
      %v581 = vunpack.c.l.b16 %v469
      %v582 = vunpack.c.l.b16 %v470
      %v583 = vunpack.c.l.b16 %v471
      %v584 = vunpack.c.l.b16 %v472
      %v585 = vunpack.c.l.b16 %v473
      %v586 = vunpack.c.l.b16 %v474
      %v587 = vunpack.c.l.b16 %v475
      %v588 = vunpack.c.l.b16 %v476
      %v589 = vunpack.c.l.b16 %v477
      %v590 = vunpack.c.l.b16 %v478
      %v591 = vunpack.c.l.b16 %v479
      %v592 = vunpack.c.l.b16 %v480
      %v593 = vunpack.c.l.b16 %v481
      %v594 = vunpack.c.l.b16 %v482
      %v595 = vunpack.c.l.b16 %v483
      %v596 = vunpack.c.l.b16 %v484
      %v597 = vunpack.c.l.b16 %v485
      %v598 = vunpack.c.l.b16 %v486
      %v599 = vunpack.c.l.b16 %v487
      %v600 = vunpack.c.l.b16 %v488
      %v601 = vunpack.c.l.b16 %v489
      %v602 = vunpack.c.l.b16 %v490
      %v603 = vunpack.c.l.b16 %v491
      %v604 = vunpack.c.l.b16 %v492
      %v605 = vunpack.c.l.b16 %v493
      %v606 = vunpack.c.l.b16 %v494
      %v607 = vunpack.c.l.b16 %v495
      %v608 = vunpack.c.l.b16 %v496
      %v609 = vunpack.c.l.b16 %v497
      %v610 = vpack.c.b16 %v579, %v578
      %v611 = vpack.c.b16 %v581, %v580
      %v612 = vpack.c.b16 %v583, %v582
      %v613 = vpack.c.b16 %v585, %v584
      %v614 = vpack.c.b16 %v587, %v586
      %v615 = vpack.c.b16 %v589, %v588
      %v616 = vpack.c.b16 %v591, %v590
      %v617 = vpack.c.b16 %v593, %v592
      %v618 = vpack.c.b16 %v595, %v594
      %v619 = vpack.c.b16 %v597, %v596
      %v620 = vpack.c.b16 %v599, %v598
      %v621 = vpack.c.b16 %v601, %v600
      %v622 = vpack.c.b16 %v603, %v602
      %v623 = vpack.c.b16 %v605, %v604
      %v624 = vpack.c.b16 %v607, %v606
      %v625 = vpack.c.b16 %v609, %v608
      %642 = vmatprep.subr.bf16.mxu0 0
      %643 = vmatpush1.bf16.msra.mxu0 %v610
      %644 = vmatprep.subr.bf16.mxu0 0
      %645 = vmatpush1.bf16.msra.mxu0 %v611
      %646 = vmatprep.subr.bf16.mxu0 0
      %647 = vmatpush1.bf16.msra.mxu0 %v612
      %648 = vmatprep.subr.bf16.mxu0 0
      %649 = vmatpush1.bf16.msra.mxu0 %v613
      %650 = vmatprep.subr.bf16.mxu0 0
      %651 = vmatpush1.bf16.msra.mxu0 %v614
      %652 = vmatprep.subr.bf16.mxu0 0
      %653 = vmatpush1.bf16.msra.mxu0 %v615
      %654 = vmatprep.subr.bf16.mxu0 0
      %655 = vmatpush1.bf16.msra.mxu0 %v616
      %656 = vmatprep.subr.bf16.mxu0 0
      %657 = vmatpush1.bf16.msra.mxu0 %v617
      %658 = vmatprep.subr.bf16.mxu0 0
      %659 = vmatpush1.bf16.msra.mxu0 %v618
      %660 = vmatprep.subr.bf16.mxu0 0
      %661 = vmatpush1.bf16.msra.mxu0 %v619
      %662 = vmatprep.subr.bf16.mxu0 0
      %663 = vmatpush1.bf16.msra.mxu0 %v620
      %664 = vmatprep.subr.bf16.mxu0 0
      %665 = vmatpush1.bf16.msra.mxu0 %v621
      %666 = vmatprep.subr.bf16.mxu0 0
      %667 = vmatpush1.bf16.msra.mxu0 %v622
      %668 = vmatprep.subr.bf16.mxu0 0
      %669 = vmatpush1.bf16.msra.mxu0 %v623
      %670 = vmatprep.subr.bf16.mxu0 0
      %671 = vmatpush1.bf16.msra.mxu0 %v624
      %672 = vmatprep.subr.bf16.mxu0 0
      %673 = vmatpush1.bf16.msra.mxu0 %v625
      %674 = vmatprep.mubr.bf16.mxu0 %v531
      %675 = vmatmul.mubr.bf16.gmra.mrb[0].mxu0 %v530
      %v676 = vpop.f32.mrb[0].mxu0
      %v677 = vadd.f32 0.0, %v676
      %v678 = vpop.f32.mrb[0].mxu0
      %v679 = vpop.f32.mrb[0].mxu0
      %v680 = vadd.f32 0.0, %v679
      %v681 = vpop.f32.mrb[0].mxu0
      %682 = vmatprep.mubr.bf16.mxu0 %v533
      %683 = vmatmul.mubr.bf16.gmra.mrb[0].mxu0 %v532
      %v684 = vpop.f32.mrb[0].mxu0
      %v685 = vadd.f32 0.0, %v684
      %v686 = vpop.f32.mrb[0].mxu0
      %v687 = vpop.f32.mrb[0].mxu0
      %v688 = vadd.f32 0.0, %v687
      %v689 = vpop.f32.mrb[0].mxu0
      %690 = vmatprep.mubr.bf16.mxu0 %v535
      %691 = vmatmul.mubr.bf16.gmra.mrb[0].mxu0 %v534
      %v692 = vpop.f32.mrb[0].mxu0
      %v693 = vadd.f32 0.0, %v692
      %v694 = vpop.f32.mrb[0].mxu0
      %v695 = vpop.f32.mrb[0].mxu0
      %v696 = vadd.f32 0.0, %v695
      %v697 = vpop.f32.mrb[0].mxu0
      %698 = vmatprep.mubr.bf16.mxu0 %v537
      %699 = vmatmul.mubr.bf16.gmra.mrb[0].mxu0 %v536
      %v700 = vpop.f32.mrb[0].mxu0
      %v701 = vadd.f32 0.0, %v700
      %v702 = vpop.f32.mrb[0].mxu0
      %v703 = vpop.f32.mrb[0].mxu0
      %v704 = vadd.f32 0.0, %v703
      %v705 = vpop.f32.mrb[0].mxu0
      %706 = vdwg.mxu0
      %v707 = vpack.c.bf16 %v680, %v677
      %v708 = vpack.c.bf16 %v688, %v685
      %v709 = vpack.c.bf16 %v696, %v693
      %v710 = vpack.c.bf16 %v704, %v701
      %v711 = vld [vmem:[%s439] sm:$0x3]
      %s712 = scalar_lea.vmem %s1, 64
      %v713 = vld [vmem:[%s712] sm:$0xff]
      %v714 = vld [vmem:[%s712 + $0x8] sm:$0xff]
      %v715 = vld [vmem:[%s712 + $0x10] sm:$0xff]
      %v716 = vld [vmem:[%s712 + $0x18] sm:$0xff]
      %v717 = vld [vmem:[%s712 + $0x20] sm:$0xff]
      %v718 = vld [vmem:[%s712 + $0x28] sm:$0xff]
      %v719 = vld [vmem:[%s712 + $0x30] sm:$0xff]
      %v720 = vld [vmem:[%s712 + $0x38] sm:$0xff]
      %v729 = vunpack.c.l.b16 %v713
      %v730 = vunpack.c.h.b16 %v713
      %v731 = vunpack.c.l.b16 %v714
      %v732 = vunpack.c.h.b16 %v714
      %v733 = vunpack.c.l.b16 %v715
      %v734 = vunpack.c.h.b16 %v715
      %v735 = vunpack.c.l.b16 %v716
      %v736 = vunpack.c.h.b16 %v716
      %v737 = vunpack.c.l.b16 %v717
      %v738 = vunpack.c.h.b16 %v717
      %v739 = vunpack.c.l.b16 %v718
      %v740 = vunpack.c.h.b16 %v718
      %v741 = vunpack.c.l.b16 %v719
      %v742 = vunpack.c.h.b16 %v719
      %v743 = vunpack.c.l.b16 %v720
      %v744 = vunpack.c.h.b16 %v720
      %v745 = vpack.c.b16 %v731, %v729
      %v746 = vpack.c.b16 %v732, %v730
      %v747 = vpack.c.b16 %v735, %v733
      %v748 = vpack.c.b16 %v736, %v734
      %v749 = vpack.c.b16 %v739, %v737
      %v750 = vpack.c.b16 %v740, %v738
      %v751 = vpack.c.b16 %v743, %v741
      %v752 = vpack.c.b16 %v744, %v742
      %761 = vmatprep.subr.bf16.mxu0 0
      %762 = vmatpush1.bf16.msra.mxu0 %v610
      %763 = vmatprep.subr.bf16.mxu0 0
      %764 = vmatpush1.bf16.msra.mxu0 %v611
      %765 = vmatprep.subr.bf16.mxu0 0
      %766 = vmatpush1.bf16.msra.mxu0 %v612
      %767 = vmatprep.subr.bf16.mxu0 0
      %768 = vmatpush1.bf16.msra.mxu0 %v613
      %769 = vmatprep.subr.bf16.mxu0 0
      %770 = vmatpush1.bf16.msra.mxu0 %v614
      %771 = vmatprep.subr.bf16.mxu0 0
      %772 = vmatpush1.bf16.msra.mxu0 %v615
      %773 = vmatprep.subr.bf16.mxu0 0
      %774 = vmatpush1.bf16.msra.mxu0 %v616
      %775 = vmatprep.subr.bf16.mxu0 0
      %776 = vmatpush1.bf16.msra.mxu0 %v617
      %777 = vmatprep.subr.bf16.mxu0 0
      %778 = vmatpush1.bf16.msra.mxu0 %v618
      %779 = vmatprep.subr.bf16.mxu0 0
      %780 = vmatpush1.bf16.msra.mxu0 %v619
      %781 = vmatprep.subr.bf16.mxu0 0
      %782 = vmatpush1.bf16.msra.mxu0 %v620
      %783 = vmatprep.subr.bf16.mxu0 0
      %784 = vmatpush1.bf16.msra.mxu0 %v621
      %785 = vmatprep.subr.bf16.mxu0 0
      %786 = vmatpush1.bf16.msra.mxu0 %v622
      %787 = vmatprep.subr.bf16.mxu0 0
      %788 = vmatpush1.bf16.msra.mxu0 %v623
      %789 = vmatprep.subr.bf16.mxu0 0
      %790 = vmatpush1.bf16.msra.mxu0 %v624
      %791 = vmatprep.subr.bf16.mxu0 0
      %792 = vmatpush1.bf16.msra.mxu0 %v625
      %793 = vmatprep.mubr.bf16.mxu0 %v746
      %794 = vmatmul.mubr.bf16.gmra.mrb[0].mxu0 %v745
      %v795 = vpop.f32.mrb[0].mxu0
      %v796 = vadd.f32 0.0, %v795
      %v797 = vpop.f32.mrb[0].mxu0
      %v798 = vpop.f32.mrb[0].mxu0
      %v799 = vadd.f32 0.0, %v798
      %v800 = vpop.f32.mrb[0].mxu0
      %801 = vmatprep.mubr.bf16.mxu0 %v748
      %802 = vmatmul.mubr.bf16.gmra.mrb[0].mxu0 %v747
      %v803 = vpop.f32.mrb[0].mxu0
      %v804 = vadd.f32 0.0, %v803
      %v805 = vpop.f32.mrb[0].mxu0
      %v806 = vpop.f32.mrb[0].mxu0
      %v807 = vadd.f32 0.0, %v806
      %v808 = vpop.f32.mrb[0].mxu0
      %809 = vmatprep.mubr.bf16.mxu0 %v750
      %810 = vmatmul.mubr.bf16.gmra.mrb[0].mxu0 %v749
      %v811 = vpop.f32.mrb[0].mxu0
      %v812 = vadd.f32 0.0, %v811
      %v813 = vpop.f32.mrb[0].mxu0
      %v814 = vpop.f32.mrb[0].mxu0
      %v815 = vadd.f32 0.0, %v814
      %v816 = vpop.f32.mrb[0].mxu0
      %817 = vmatprep.mubr.bf16.mxu0 %v752
      %818 = vmatmul.mubr.bf16.gmra.mrb[0].mxu0 %v751
      %v819 = vpop.f32.mrb[0].mxu0
      %v820 = vadd.f32 0.0, %v819
      %v821 = vpop.f32.mrb[0].mxu0
      %v822 = vpop.f32.mrb[0].mxu0
      %v823 = vadd.f32 0.0, %v822
      %v824 = vpop.f32.mrb[0].mxu0
      %825 = vdwg.mxu0
      %v826 = vpack.c.bf16 %v799, %v796
      %v827 = vpack.c.bf16 %v807, %v804
      %v828 = vpack.c.bf16 %v815, %v812
      %v829 = vpack.c.bf16 %v823, %v820
      %s830 = scalar_lea.vmem %s439, 2
      %v831 = vld [vmem:[%s830] sm:$0x3]
      %vm832 = vcmask 31744
      %v834 = vsel %vm832, %v826, 0
      %v837 = vsel %vm832, %v827, 0
      %v840 = vsel %vm832, %v828, 0
      %v843 = vsel %vm832, %v829, 0
      %vm845 = vcmask 1041408
      %v847 = vsel %vm845, %v831, 0
      %849 = vmatprep.subr.bf16.mxu0 0
      %850 = vmatpush1.bf16.msra.mxu0 %v847
      %851 = vmatprep.subr.bf16.mxu0 0
      %852 = vmatpush1.bf16.msra.mxu0 0
      %853 = vmatprep.subr.bf16.mxu0 0
      %854 = vmatpush1.bf16.msra.mxu0 0
      %855 = vmatprep.subr.bf16.mxu0 0
      %856 = vmatpush1.bf16.msra.mxu0 0
      %857 = vmatprep.subr.bf16.mxu0 0
      %858 = vmatpush1.bf16.msra.mxu0 0
      %859 = vmatprep.subr.bf16.mxu0 0
      %860 = vmatpush1.bf16.msra.mxu0 0
      %861 = vmatprep.subr.bf16.mxu0 0
      %862 = vmatpush1.bf16.msra.mxu0 0
      %863 = vmatprep.subr.bf16.mxu0 0
      %864 = vmatpush1.bf16.msra.mxu0 0
      %865 = vmatprep.subr.bf16.mxu0 0
      %866 = vmatpush1.bf16.msra.mxu0 0
      %867 = vmatprep.subr.bf16.mxu0 0
      %868 = vmatpush1.bf16.msra.mxu0 0
      %869 = vmatprep.subr.bf16.mxu0 0
      %870 = vmatpush1.bf16.msra.mxu0 0
      %871 = vmatprep.subr.bf16.mxu0 0
      %872 = vmatpush1.bf16.msra.mxu0 0
      %873 = vmatprep.subr.bf16.mxu0 0
      %874 = vmatpush1.bf16.msra.mxu0 0
      %875 = vmatprep.subr.bf16.mxu0 0
      %876 = vmatpush1.bf16.msra.mxu0 0
      %877 = vmatprep.subr.bf16.mxu0 0
      %878 = vmatpush1.bf16.msra.mxu0 0
      %879 = vmatprep.subr.bf16.mxu0 0
      %880 = vmatpush1.bf16.msra.mxu0 0
      %881 = vmatprep.mubr.bf16.mxu0 0
      %882 = vmatmul.mubr.bf16.gmra.mrb[0].mxu0 %v834
      %v883 = vpop.f32.mrb[0].mxu0
      %v884 = vadd.f32 0.0, %v883
      %v885 = vpop.f32.mrb[0].mxu0
      %v886 = vpop.f32.mrb[0].mxu0
      %v887 = vadd.f32 0.0, %v886
      %v888 = vpop.f32.mrb[0].mxu0
      %889 = vmatprep.mubr.bf16.mxu0 0
      %890 = vmatmul.mubr.bf16.gmra.mrb[0].mxu0 %v837
      %v891 = vpop.f32.mrb[0].mxu0
      %v892 = vadd.f32 0.0, %v891
      %v893 = vpop.f32.mrb[0].mxu0
      %v894 = vpop.f32.mrb[0].mxu0
      %v895 = vadd.f32 0.0, %v894
      %v896 = vpop.f32.mrb[0].mxu0
      %897 = vmatprep.mubr.bf16.mxu0 0
      %898 = vmatmul.mubr.bf16.gmra.mrb[0].mxu0 %v840
      %v899 = vpop.f32.mrb[0].mxu0
      %v900 = vadd.f32 0.0, %v899
      %v901 = vpop.f32.mrb[0].mxu0
      %v902 = vpop.f32.mrb[0].mxu0
      %v903 = vadd.f32 0.0, %v902
      %v904 = vpop.f32.mrb[0].mxu0
      %905 = vmatprep.mubr.bf16.mxu0 0
      %906 = vmatmul.mubr.bf16.gmra.mrb[0].mxu0 %v843
      %v907 = vpop.f32.mrb[0].mxu0
      %v908 = vadd.f32 0.0, %v907
      %v909 = vpop.f32.mrb[0].mxu0
      %v910 = vpop.f32.mrb[0].mxu0
      %v911 = vadd.f32 0.0, %v910
      %v912 = vpop.f32.mrb[0].mxu0
      %913 = vdwg.mxu0
      %v915 = vsel %vm832, %v707, 0
      %v918 = vsel %vm832, %v708, 0
      %v921 = vsel %vm832, %v709, 0
      %v924 = vsel %vm832, %v710, 0
      %v927 = vsel %vm845, %v711, 0
      %929 = vmatprep.subr.bf16.mxu0 0
      %930 = vmatpush1.bf16.msra.mxu0 %v927
      %931 = vmatprep.subr.bf16.mxu0 0
      %932 = vmatpush1.bf16.msra.mxu0 0
      %933 = vmatprep.subr.bf16.mxu0 0
      %934 = vmatpush1.bf16.msra.mxu0 0
      %935 = vmatprep.subr.bf16.mxu0 0
      %936 = vmatpush1.bf16.msra.mxu0 0
      %937 = vmatprep.subr.bf16.mxu0 0
      %938 = vmatpush1.bf16.msra.mxu0 0
      %939 = vmatprep.subr.bf16.mxu0 0
      %940 = vmatpush1.bf16.msra.mxu0 0
      %941 = vmatprep.subr.bf16.mxu0 0
      %942 = vmatpush1.bf16.msra.mxu0 0
      %943 = vmatprep.subr.bf16.mxu0 0
      %944 = vmatpush1.bf16.msra.mxu0 0
      %945 = vmatprep.subr.bf16.mxu0 0
      %946 = vmatpush1.bf16.msra.mxu0 0
      %947 = vmatprep.subr.bf16.mxu0 0
      %948 = vmatpush1.bf16.msra.mxu0 0
      %949 = vmatprep.subr.bf16.mxu0 0
      %950 = vmatpush1.bf16.msra.mxu0 0
      %951 = vmatprep.subr.bf16.mxu0 0
      %952 = vmatpush1.bf16.msra.mxu0 0
      %953 = vmatprep.subr.bf16.mxu0 0
      %954 = vmatpush1.bf16.msra.mxu0 0
      %955 = vmatprep.subr.bf16.mxu0 0
      %956 = vmatpush1.bf16.msra.mxu0 0
      %957 = vmatprep.subr.bf16.mxu0 0
      %958 = vmatpush1.bf16.msra.mxu0 0
      %959 = vmatprep.subr.bf16.mxu0 0
      %960 = vmatpush1.bf16.msra.mxu0 0
      %961 = vmatprep.mubr.bf16.mxu0 0
      %962 = vmatmul.mubr.bf16.gmra.mrb[0].mxu0 %v915
      %v963 = vpop.f32.mrb[0].mxu0
      %v964 = vadd.f32 %v884, %v963
      %v965 = vpop.f32.mrb[0].mxu0
      %v966 = vpop.f32.mrb[0].mxu0
      %v967 = vadd.f32 %v887, %v966
      %v968 = vpop.f32.mrb[0].mxu0
      %969 = vmatprep.mubr.bf16.mxu0 0
      %970 = vmatmul.mubr.bf16.gmra.mrb[0].mxu0 %v918
      %v971 = vpop.f32.mrb[0].mxu0
      %v972 = vadd.f32 %v892, %v971
      %v973 = vpop.f32.mrb[0].mxu0
      %v974 = vpop.f32.mrb[0].mxu0
      %v975 = vadd.f32 %v895, %v974
      %v976 = vpop.f32.mrb[0].mxu0
      %977 = vmatprep.mubr.bf16.mxu0 0
      %978 = vmatmul.mubr.bf16.gmra.mrb[0].mxu0 %v921
      %v979 = vpop.f32.mrb[0].mxu0
      %v980 = vadd.f32 %v900, %v979
      %v981 = vpop.f32.mrb[0].mxu0
      %v982 = vpop.f32.mrb[0].mxu0
      %v983 = vadd.f32 %v903, %v982
      %v984 = vpop.f32.mrb[0].mxu0
      %985 = vmatprep.mubr.bf16.mxu0 0
      %986 = vmatmul.mubr.bf16.gmra.mrb[0].mxu0 %v924
      %v987 = vpop.f32.mrb[0].mxu0
      %v988 = vadd.f32 %v908, %v987
      %v989 = vpop.f32.mrb[0].mxu0
      %v990 = vpop.f32.mrb[0].mxu0
      %v991 = vadd.f32 %v911, %v990
      %v992 = vpop.f32.mrb[0].mxu0
      %993 = vdwg.mxu0
      %s994 = scalar_lea.vmem %s1, 128
      %v995 = vld [vmem:[%s994] sm:$0xff]
      %v996 = vld [vmem:[%s994 + $0x8] sm:$0xff]
      %v997 = vld [vmem:[%s994 + $0x10] sm:$0xff]
      %v998 = vld [vmem:[%s994 + $0x18] sm:$0xff]
      %v999 = vld [vmem:[%s994 + $0x20] sm:$0xff]
      %v1000 = vld [vmem:[%s994 + $0x28] sm:$0xff]
      %v1001 = vld [vmem:[%s994 + $0x30] sm:$0xff]
      %v1002 = vld [vmem:[%s994 + $0x38] sm:$0xff]
      %v1011 = vunpack.c.l.b16 %v995
      %v1012 = vunpack.c.h.b16 %v995
      %v1013 = vunpack.c.l.b16 %v996
      %v1014 = vunpack.c.h.b16 %v996
      %v1015 = vunpack.c.l.b16 %v997
      %v1016 = vunpack.c.h.b16 %v997
      %v1017 = vunpack.c.l.b16 %v998
      %v1018 = vunpack.c.h.b16 %v998
      %v1019 = vunpack.c.l.b16 %v999
      %v1020 = vunpack.c.h.b16 %v999
      %v1021 = vunpack.c.l.b16 %v1000
      %v1022 = vunpack.c.h.b16 %v1000
      %v1023 = vunpack.c.l.b16 %v1001
      %v1024 = vunpack.c.h.b16 %v1001
      %v1025 = vunpack.c.l.b16 %v1002
      %v1026 = vunpack.c.h.b16 %v1002
      %v1027 = vpack.c.b16 %v1013, %v1011
      %v1028 = vpack.c.b16 %v1014, %v1012
      %v1029 = vpack.c.b16 %v1017, %v1015
      %v1030 = vpack.c.b16 %v1018, %v1016
      %v1031 = vpack.c.b16 %v1021, %v1019
      %v1032 = vpack.c.b16 %v1022, %v1020
      %v1033 = vpack.c.b16 %v1025, %v1023
      %v1034 = vpack.c.b16 %v1026, %v1024
      %1043 = vmatprep.subr.bf16.mxu0 0
      %1044 = vmatpush1.bf16.msra.mxu0 %v610
      %1045 = vmatprep.subr.bf16.mxu0 0
      %1046 = vmatpush1.bf16.msra.mxu0 %v611
      %1047 = vmatprep.subr.bf16.mxu0 0
      %1048 = vmatpush1.bf16.msra.mxu0 %v612
      %1049 = vmatprep.subr.bf16.mxu0 0
      %1050 = vmatpush1.bf16.msra.mxu0 %v613
      %1051 = vmatprep.subr.bf16.mxu0 0
      %1052 = vmatpush1.bf16.msra.mxu0 %v614
      %1053 = vmatprep.subr.bf16.mxu0 0
      %1054 = vmatpush1.bf16.msra.mxu0 %v615
      %1055 = vmatprep.subr.bf16.mxu0 0
      %1056 = vmatpush1.bf16.msra.mxu0 %v616
      %1057 = vmatprep.subr.bf16.mxu0 0
      %1058 = vmatpush1.bf16.msra.mxu0 %v617
      %1059 = vmatprep.subr.bf16.mxu0 0
      %1060 = vmatpush1.bf16.msra.mxu0 %v618
      %1061 = vmatprep.subr.bf16.mxu0 0
      %1062 = vmatpush1.bf16.msra.mxu0 %v619
      %1063 = vmatprep.subr.bf16.mxu0 0
      %1064 = vmatpush1.bf16.msra.mxu0 %v620
      %1065 = vmatprep.subr.bf16.mxu0 0
      %1066 = vmatpush1.bf16.msra.mxu0 %v621
      %1067 = vmatprep.subr.bf16.mxu0 0
      %1068 = vmatpush1.bf16.msra.mxu0 %v622
      %1069 = vmatprep.subr.bf16.mxu0 0
      %1070 = vmatpush1.bf16.msra.mxu0 %v623
      %1071 = vmatprep.subr.bf16.mxu0 0
      %1072 = vmatpush1.bf16.msra.mxu0 %v624
      %1073 = vmatprep.subr.bf16.mxu0 0
      %1074 = vmatpush1.bf16.msra.mxu0 %v625
      %1075 = vmatprep.mubr.bf16.mxu0 %v1028
      %1076 = vmatmul.mubr.bf16.gmra.mrb[0].mxu0 %v1027
      %v1077 = vpop.f32.mrb[0].mxu0
      %v1078 = vadd.f32 0.0, %v1077
      %v1079 = vpop.f32.mrb[0].mxu0
      %v1080 = vpop.f32.mrb[0].mxu0
      %v1081 = vadd.f32 0.0, %v1080
      %v1082 = vpop.f32.mrb[0].mxu0
      %1083 = vmatprep.mubr.bf16.mxu0 %v1030
      %1084 = vmatmul.mubr.bf16.gmra.mrb[0].mxu0 %v1029
      %v1085 = vpop.f32.mrb[0].mxu0
      %v1086 = vadd.f32 0.0, %v1085
      %v1087 = vpop.f32.mrb[0].mxu0
      %v1088 = vpop.f32.mrb[0].mxu0
      %v1089 = vadd.f32 0.0, %v1088
      %v1090 = vpop.f32.mrb[0].mxu0
      %1091 = vmatprep.mubr.bf16.mxu0 %v1032
      %1092 = vmatmul.mubr.bf16.gmra.mrb[0].mxu0 %v1031
      %v1093 = vpop.f32.mrb[0].mxu0
      %v1094 = vadd.f32 0.0, %v1093
      %v1095 = vpop.f32.mrb[0].mxu0
      %v1096 = vpop.f32.mrb[0].mxu0
      %v1097 = vadd.f32 0.0, %v1096
      %v1098 = vpop.f32.mrb[0].mxu0
      %1099 = vmatprep.mubr.bf16.mxu0 %v1034
      %1100 = vmatmul.mubr.bf16.gmra.mrb[0].mxu0 %v1033
      %v1101 = vpop.f32.mrb[0].mxu0
      %v1102 = vadd.f32 0.0, %v1101
      %v1103 = vpop.f32.mrb[0].mxu0
      %v1104 = vpop.f32.mrb[0].mxu0
      %v1105 = vadd.f32 0.0, %v1104
      %v1106 = vpop.f32.mrb[0].mxu0
      %1107 = vdwg.mxu0
      %v1108 = vpack.c.bf16 %v1081, %v1078
      %v1109 = vpack.c.bf16 %v1089, %v1086
      %v1110 = vpack.c.bf16 %v1097, %v1094
      %v1111 = vpack.c.bf16 %v1105, %v1102
      %s1112 = scalar_lea.vmem %s439, 4
      %v1113 = vld [vmem:[%s1112] sm:$0x3]
      %v1115 = vsel %vm832, %v1108, 0
      %v1118 = vsel %vm832, %v1109, 0
      %v1121 = vsel %vm832, %v1110, 0
      %v1124 = vsel %vm832, %v1111, 0
      %v1127 = vsel %vm845, %v1113, 0
      %1129 = vmatprep.subr.bf16.mxu0 0
      %1130 = vmatpush1.bf16.msra.mxu0 %v1127
      %1131 = vmatprep.subr.bf16.mxu0 0
      %1132 = vmatpush1.bf16.msra.mxu0 0
      %1133 = vmatprep.subr.bf16.mxu0 0
      %1134 = vmatpush1.bf16.msra.mxu0 0
      %1135 = vmatprep.subr.bf16.mxu0 0
      %1136 = vmatpush1.bf16.msra.mxu0 0
      %1137 = vmatprep.subr.bf16.mxu0 0
      %1138 = vmatpush1.bf16.msra.mxu0 0
      %1139 = vmatprep.subr.bf16.mxu0 0
      %1140 = vmatpush1.bf16.msra.mxu0 0
      %1141 = vmatprep.subr.bf16.mxu0 0
      %1142 = vmatpush1.bf16.msra.mxu0 0
      %1143 = vmatprep.subr.bf16.mxu0 0
      %1144 = vmatpush1.bf16.msra.mxu0 0
      %1145 = vmatprep.subr.bf16.mxu0 0
      %1146 = vmatpush1.bf16.msra.mxu0 0
      %1147 = vmatprep.subr.bf16.mxu0 0
      %1148 = vmatpush1.bf16.msra.mxu0 0
      %1149 = vmatprep.subr.bf16.mxu0 0
      %1150 = vmatpush1.bf16.msra.mxu0 0
      %1151 = vmatprep.subr.bf16.mxu0 0
      %1152 = vmatpush1.bf16.msra.mxu0 0
      %1153 = vmatprep.subr.bf16.mxu0 0
      %1154 = vmatpush1.bf16.msra.mxu0 0
      %1155 = vmatprep.subr.bf16.mxu0 0
      %1156 = vmatpush1.bf16.msra.mxu0 0
      %1157 = vmatprep.subr.bf16.mxu0 0
      %1158 = vmatpush1.bf16.msra.mxu0 0
      %1159 = vmatprep.subr.bf16.mxu0 0
      %1160 = vmatpush1.bf16.msra.mxu0 0
      %1161 = vmatprep.mubr.bf16.mxu0 0
      %1162 = vmatmul.mubr.bf16.gmra.mrb[0].mxu0 %v1115
      %v1163 = vpop.f32.mrb[0].mxu0
      %v1164 = vadd.f32 0.0, %v1163
      %v1165 = vpop.f32.mrb[0].mxu0
      %v1166 = vpop.f32.mrb[0].mxu0
      %v1167 = vadd.f32 0.0, %v1166
      %v1168 = vpop.f32.mrb[0].mxu0
      %1169 = vmatprep.mubr.bf16.mxu0 0
      %1170 = vmatmul.mubr.bf16.gmra.mrb[0].mxu0 %v1118
      %v1171 = vpop.f32.mrb[0].mxu0
      %v1172 = vadd.f32 0.0, %v1171
      %v1173 = vpop.f32.mrb[0].mxu0
      %v1174 = vpop.f32.mrb[0].mxu0
      %v1175 = vadd.f32 0.0, %v1174
      %v1176 = vpop.f32.mrb[0].mxu0
      %1177 = vmatprep.mubr.bf16.mxu0 0
      %1178 = vmatmul.mubr.bf16.gmra.mrb[0].mxu0 %v1121
      %v1179 = vpop.f32.mrb[0].mxu0
      %v1180 = vadd.f32 0.0, %v1179
      %v1181 = vpop.f32.mrb[0].mxu0
      %v1182 = vpop.f32.mrb[0].mxu0
      %v1183 = vadd.f32 0.0, %v1182
      %v1184 = vpop.f32.mrb[0].mxu0
      %1185 = vmatprep.mubr.bf16.mxu0 0
      %1186 = vmatmul.mubr.bf16.gmra.mrb[0].mxu0 %v1124
      %v1187 = vpop.f32.mrb[0].mxu0
      %v1188 = vadd.f32 0.0, %v1187
      %v1189 = vpop.f32.mrb[0].mxu0
      %v1190 = vpop.f32.mrb[0].mxu0
      %v1191 = vadd.f32 0.0, %v1190
      %v1192 = vpop.f32.mrb[0].mxu0
      %1193 = vdwg.mxu0
      %v1194 = vadd.f32 %v964, %v1164
      %v1195 = vadd.f32 %v967, %v1167
      %v1196 = vadd.f32 %v972, %v1172
      %v1197 = vadd.f32 %v975, %v1175
      %v1198 = vadd.f32 %v980, %v1180
      %v1199 = vadd.f32 %v983, %v1183
      %v1200 = vadd.f32 %v988, %v1188
      %v1201 = vadd.f32 %v991, %v1191
      %s1202 = scalar_lea.vmem %s1, 192
      %v1203 = vld [vmem:[%s1202] sm:$0xff]
      %v1204 = vld [vmem:[%s1202 + $0x8] sm:$0xff]
      %v1205 = vld [vmem:[%s1202 + $0x10] sm:$0xff]
      %v1206 = vld [vmem:[%s1202 + $0x18] sm:$0xff]
      %v1207 = vld [vmem:[%s1202 + $0x20] sm:$0xff]
      %v1208 = vld [vmem:[%s1202 + $0x28] sm:$0xff]
      %v1209 = vld [vmem:[%s1202 + $0x30] sm:$0xff]
      %v1210 = vld [vmem:[%s1202 + $0x38] sm:$0xff]
      %v1219 = vunpack.c.l.b16 %v1203
      %v1220 = vunpack.c.h.b16 %v1203
      %v1221 = vunpack.c.l.b16 %v1204
      %v1222 = vunpack.c.h.b16 %v1204
      %v1223 = vunpack.c.l.b16 %v1205
      %v1224 = vunpack.c.h.b16 %v1205
      %v1225 = vunpack.c.l.b16 %v1206
      %v1226 = vunpack.c.h.b16 %v1206
      %v1227 = vunpack.c.l.b16 %v1207
      %v1228 = vunpack.c.h.b16 %v1207
      %v1229 = vunpack.c.l.b16 %v1208
      %v1230 = vunpack.c.h.b16 %v1208
      %v1231 = vunpack.c.l.b16 %v1209
      %v1232 = vunpack.c.h.b16 %v1209
      %v1233 = vunpack.c.l.b16 %v1210
      %v1234 = vunpack.c.h.b16 %v1210
      %v1235 = vpack.c.b16 %v1221, %v1219
      %v1236 = vpack.c.b16 %v1222, %v1220
      %v1237 = vpack.c.b16 %v1225, %v1223
      %v1238 = vpack.c.b16 %v1226, %v1224
      %v1239 = vpack.c.b16 %v1229, %v1227
      %v1240 = vpack.c.b16 %v1230, %v1228
      %v1241 = vpack.c.b16 %v1233, %v1231
      %v1242 = vpack.c.b16 %v1234, %v1232
      %1251 = vmatprep.subr.bf16.mxu0 0
      %1252 = vmatpush1.bf16.msra.mxu0 %v610
      %1253 = vmatprep.subr.bf16.mxu0 0
      %1254 = vmatpush1.bf16.msra.mxu0 %v611
      %1255 = vmatprep.subr.bf16.mxu0 0
      %1256 = vmatpush1.bf16.msra.mxu0 %v612
      %1257 = vmatprep.subr.bf16.mxu0 0
      %1258 = vmatpush1.bf16.msra.mxu0 %v613
      %1259 = vmatprep.subr.bf16.mxu0 0
      %1260 = vmatpush1.bf16.msra.mxu0 %v614
      %1261 = vmatprep.subr.bf16.mxu0 0
      %1262 = vmatpush1.bf16.msra.mxu0 %v615
      %1263 = vmatprep.subr.bf16.mxu0 0
      %1264 = vmatpush1.bf16.msra.mxu0 %v616
      %1265 = vmatprep.subr.bf16.mxu0 0
      %1266 = vmatpush1.bf16.msra.mxu0 %v617
      %1267 = vmatprep.subr.bf16.mxu0 0
      %1268 = vmatpush1.bf16.msra.mxu0 %v618
      %1269 = vmatprep.subr.bf16.mxu0 0
      %1270 = vmatpush1.bf16.msra.mxu0 %v619
      %1271 = vmatprep.subr.bf16.mxu0 0
      %1272 = vmatpush1.bf16.msra.mxu0 %v620
      %1273 = vmatprep.subr.bf16.mxu0 0
      %1274 = vmatpush1.bf16.msra.mxu0 %v621
      %1275 = vmatprep.subr.bf16.mxu0 0
      %1276 = vmatpush1.bf16.msra.mxu0 %v622
      %1277 = vmatprep.subr.bf16.mxu0 0
      %1278 = vmatpush1.bf16.msra.mxu0 %v623
      %1279 = vmatprep.subr.bf16.mxu0 0
      %1280 = vmatpush1.bf16.msra.mxu0 %v624
      %1281 = vmatprep.subr.bf16.mxu0 0
      %1282 = vmatpush1.bf16.msra.mxu0 %v625
      %1283 = vmatprep.mubr.bf16.mxu0 %v1236
      %1284 = vmatmul.mubr.bf16.gmra.mrb[0].mxu0 %v1235
      %v1285 = vpop.f32.mrb[0].mxu0
      %v1286 = vadd.f32 0.0, %v1285
      %v1287 = vpop.f32.mrb[0].mxu0
      %v1288 = vpop.f32.mrb[0].mxu0
      %v1289 = vadd.f32 0.0, %v1288
      %v1290 = vpop.f32.mrb[0].mxu0
      %1291 = vmatprep.mubr.bf16.mxu0 %v1238
      %1292 = vmatmul.mubr.bf16.gmra.mrb[0].mxu0 %v1237
      %v1293 = vpop.f32.mrb[0].mxu0
      %v1294 = vadd.f32 0.0, %v1293
      %v1295 = vpop.f32.mrb[0].mxu0
      %v1296 = vpop.f32.mrb[0].mxu0
      %v1297 = vadd.f32 0.0, %v1296
      %v1298 = vpop.f32.mrb[0].mxu0
      %1299 = vmatprep.mubr.bf16.mxu0 %v1240
      %1300 = vmatmul.mubr.bf16.gmra.mrb[0].mxu0 %v1239
      %v1301 = vpop.f32.mrb[0].mxu0
      %v1302 = vadd.f32 0.0, %v1301
      %v1303 = vpop.f32.mrb[0].mxu0
      %v1304 = vpop.f32.mrb[0].mxu0
      %v1305 = vadd.f32 0.0, %v1304
      %v1306 = vpop.f32.mrb[0].mxu0
      %1307 = vmatprep.mubr.bf16.mxu0 %v1242
      %1308 = vmatmul.mubr.bf16.gmra.mrb[0].mxu0 %v1241
      %v1309 = vpop.f32.mrb[0].mxu0
      %v1310 = vadd.f32 0.0, %v1309
      %v1311 = vpop.f32.mrb[0].mxu0
      %v1312 = vpop.f32.mrb[0].mxu0
      %v1313 = vadd.f32 0.0, %v1312
      %v1314 = vpop.f32.mrb[0].mxu0
      %1315 = vdwg.mxu0
      %v1316 = vpack.c.bf16 %v1289, %v1286
      %v1317 = vpack.c.bf16 %v1297, %v1294
      %v1318 = vpack.c.bf16 %v1305, %v1302
      %v1319 = vpack.c.bf16 %v1313, %v1310
      %s1320 = scalar_lea.vmem %s439, 6
      %v1321 = vld [vmem:[%s1320] sm:$0x3]
      %v1323 = vsel %vm832, %v1316, 0
      %v1326 = vsel %vm832, %v1317, 0
      %v1329 = vsel %vm832, %v1318, 0
      %v1332 = vsel %vm832, %v1319, 0
      %v1335 = vsel %vm845, %v1321, 0
      %1337 = vmatprep.subr.bf16.mxu0 0
      %1338 = vmatpush1.bf16.msra.mxu0 %v1335
      %1339 = vmatprep.subr.bf16.mxu0 0
      %1340 = vmatpush1.bf16.msra.mxu0 0
      %1341 = vmatprep.subr.bf16.mxu0 0
      %1342 = vmatpush1.bf16.msra.mxu0 0
      %1343 = vmatprep.subr.bf16.mxu0 0
      %1344 = vmatpush1.bf16.msra.mxu0 0
      %1345 = vmatprep.subr.bf16.mxu0 0
      %1346 = vmatpush1.bf16.msra.mxu0 0
      %1347 = vmatprep.subr.bf16.mxu0 0
      %1348 = vmatpush1.bf16.msra.mxu0 0
      %1349 = vmatprep.subr.bf16.mxu0 0
      %1350 = vmatpush1.bf16.msra.mxu0 0
      %1351 = vmatprep.subr.bf16.mxu0 0
      %1352 = vmatpush1.bf16.msra.mxu0 0
      %1353 = vmatprep.subr.bf16.mxu0 0
      %1354 = vmatpush1.bf16.msra.mxu0 0
      %1355 = vmatprep.subr.bf16.mxu0 0
      %1356 = vmatpush1.bf16.msra.mxu0 0
      %1357 = vmatprep.subr.bf16.mxu0 0
      %1358 = vmatpush1.bf16.msra.mxu0 0
      %1359 = vmatprep.subr.bf16.mxu0 0
      %1360 = vmatpush1.bf16.msra.mxu0 0
      %1361 = vmatprep.subr.bf16.mxu0 0
      %1362 = vmatpush1.bf16.msra.mxu0 0
      %1363 = vmatprep.subr.bf16.mxu0 0
      %1364 = vmatpush1.bf16.msra.mxu0 0
      %1365 = vmatprep.subr.bf16.mxu0 0
      %1366 = vmatpush1.bf16.msra.mxu0 0
      %1367 = vmatprep.subr.bf16.mxu0 0
      %1368 = vmatpush1.bf16.msra.mxu0 0
      %1369 = vmatprep.mubr.bf16.mxu0 0
      %1370 = vmatmul.mubr.bf16.gmra.mrb[0].mxu0 %v1323
      %v1371 = vpop.f32.mrb[0].mxu0
      %v1372 = vadd.f32 0.0, %v1371
      %v1373 = vpop.f32.mrb[0].mxu0
      %v1374 = vpop.f32.mrb[0].mxu0
      %v1375 = vadd.f32 0.0, %v1374
      %v1376 = vpop.f32.mrb[0].mxu0
      %1377 = vmatprep.mubr.bf16.mxu0 0
      %1378 = vmatmul.mubr.bf16.gmra.mrb[0].mxu0 %v1326
      %v1379 = vpop.f32.mrb[0].mxu0
      %v1380 = vadd.f32 0.0, %v1379
      %v1381 = vpop.f32.mrb[0].mxu0
      %v1382 = vpop.f32.mrb[0].mxu0
      %v1383 = vadd.f32 0.0, %v1382
      %v1384 = vpop.f32.mrb[0].mxu0
      %1385 = vmatprep.mubr.bf16.mxu0 0
      %1386 = vmatmul.mubr.bf16.gmra.mrb[0].mxu0 %v1329
      %v1387 = vpop.f32.mrb[0].mxu0
      %v1388 = vadd.f32 0.0, %v1387
      %v1389 = vpop.f32.mrb[0].mxu0
      %v1390 = vpop.f32.mrb[0].mxu0
      %v1391 = vadd.f32 0.0, %v1390
      %v1392 = vpop.f32.mrb[0].mxu0
      %1393 = vmatprep.mubr.bf16.mxu0 0
      %1394 = vmatmul.mubr.bf16.gmra.mrb[0].mxu0 %v1332
      %v1395 = vpop.f32.mrb[0].mxu0
      %v1396 = vadd.f32 0.0, %v1395
      %v1397 = vpop.f32.mrb[0].mxu0
      %v1398 = vpop.f32.mrb[0].mxu0
      %v1399 = vadd.f32 0.0, %v1398
      %v1400 = vpop.f32.mrb[0].mxu0
      %1401 = vdwg.mxu0
      %v1402 = vadd.f32 %v1194, %v1372
      %v1403 = vadd.f32 %v1195, %v1375
      %v1404 = vadd.f32 %v1196, %v1380
      %v1405 = vadd.f32 %v1197, %v1383
      %v1406 = vadd.f32 %v1198, %v1388
      %v1407 = vadd.f32 %v1199, %v1391
      %v1408 = vadd.f32 %v1200, %v1396
      %v1409 = vadd.f32 %v1201, %v1399
      %s1410 = scalar_lea.vmem %s1, 256
      %v1411 = vld [vmem:[%s1410] sm:$0xff]
      %v1412 = vld [vmem:[%s1410 + $0x8] sm:$0xff]
      %v1413 = vld [vmem:[%s1410 + $0x10] sm:$0xff]
      %v1414 = vld [vmem:[%s1410 + $0x18] sm:$0xff]
      %v1415 = vld [vmem:[%s1410 + $0x20] sm:$0xff]
      %v1416 = vld [vmem:[%s1410 + $0x28] sm:$0xff]
      %v1417 = vld [vmem:[%s1410 + $0x30] sm:$0xff]
      %v1418 = vld [vmem:[%s1410 + $0x38] sm:$0xff]
      %v1427 = vunpack.c.l.b16 %v1411
      %v1428 = vunpack.c.h.b16 %v1411
      %v1429 = vunpack.c.l.b16 %v1412
      %v1430 = vunpack.c.h.b16 %v1412
      %v1431 = vunpack.c.l.b16 %v1413
      %v1432 = vunpack.c.h.b16 %v1413
      %v1433 = vunpack.c.l.b16 %v1414
      %v1434 = vunpack.c.h.b16 %v1414
      %v1435 = vunpack.c.l.b16 %v1415
      %v1436 = vunpack.c.h.b16 %v1415
      %v1437 = vunpack.c.l.b16 %v1416
      %v1438 = vunpack.c.h.b16 %v1416
      %v1439 = vunpack.c.l.b16 %v1417
      %v1440 = vunpack.c.h.b16 %v1417
      %v1441 = vunpack.c.l.b16 %v1418
      %v1442 = vunpack.c.h.b16 %v1418
      %v1443 = vpack.c.b16 %v1429, %v1427
      %v1444 = vpack.c.b16 %v1430, %v1428
      %v1445 = vpack.c.b16 %v1433, %v1431
      %v1446 = vpack.c.b16 %v1434, %v1432
      %v1447 = vpack.c.b16 %v1437, %v1435
      %v1448 = vpack.c.b16 %v1438, %v1436
      %v1449 = vpack.c.b16 %v1441, %v1439
      %v1450 = vpack.c.b16 %v1442, %v1440
      %1459 = vmatprep.subr.bf16.mxu0 0
      %1460 = vmatpush1.bf16.msra.mxu0 %v610
      %1461 = vmatprep.subr.bf16.mxu0 0
      %1462 = vmatpush1.bf16.msra.mxu0 %v611
      %1463 = vmatprep.subr.bf16.mxu0 0
      %1464 = vmatpush1.bf16.msra.mxu0 %v612
      %1465 = vmatprep.subr.bf16.mxu0 0
      %1466 = vmatpush1.bf16.msra.mxu0 %v613
      %1467 = vmatprep.subr.bf16.mxu0 0
      %1468 = vmatpush1.bf16.msra.mxu0 %v614
      %1469 = vmatprep.subr.bf16.mxu0 0
      %1470 = vmatpush1.bf16.msra.mxu0 %v615
      %1471 = vmatprep.subr.bf16.mxu0 0
      %1472 = vmatpush1.bf16.msra.mxu0 %v616
      %1473 = vmatprep.subr.bf16.mxu0 0
      %1474 = vmatpush1.bf16.msra.mxu0 %v617
      %1475 = vmatprep.subr.bf16.mxu0 0
      %1476 = vmatpush1.bf16.msra.mxu0 %v618
      %1477 = vmatprep.subr.bf16.mxu0 0
      %1478 = vmatpush1.bf16.msra.mxu0 %v619
      %1479 = vmatprep.subr.bf16.mxu0 0
      %1480 = vmatpush1.bf16.msra.mxu0 %v620
      %1481 = vmatprep.subr.bf16.mxu0 0
      %1482 = vmatpush1.bf16.msra.mxu0 %v621
      %1483 = vmatprep.subr.bf16.mxu0 0
      %1484 = vmatpush1.bf16.msra.mxu0 %v622
      %1485 = vmatprep.subr.bf16.mxu0 0
      %1486 = vmatpush1.bf16.msra.mxu0 %v623
      %1487 = vmatprep.subr.bf16.mxu0 0
      %1488 = vmatpush1.bf16.msra.mxu0 %v624
      %1489 = vmatprep.subr.bf16.mxu0 0
      %1490 = vmatpush1.bf16.msra.mxu0 %v625
      %1491 = vmatprep.mubr.bf16.mxu0 %v1444
      %1492 = vmatmul.mubr.bf16.gmra.mrb[0].mxu0 %v1443
      %v1493 = vpop.f32.mrb[0].mxu0
      %v1494 = vadd.f32 0.0, %v1493
      %v1495 = vpop.f32.mrb[0].mxu0
      %v1496 = vpop.f32.mrb[0].mxu0
      %v1497 = vadd.f32 0.0, %v1496
      %v1498 = vpop.f32.mrb[0].mxu0
      %1499 = vmatprep.mubr.bf16.mxu0 %v1446
      %1500 = vmatmul.mubr.bf16.gmra.mrb[0].mxu0 %v1445
      %v1501 = vpop.f32.mrb[0].mxu0
      %v1502 = vadd.f32 0.0, %v1501
      %v1503 = vpop.f32.mrb[0].mxu0
      %v1504 = vpop.f32.mrb[0].mxu0
      %v1505 = vadd.f32 0.0, %v1504
      %v1506 = vpop.f32.mrb[0].mxu0
      %1507 = vmatprep.mubr.bf16.mxu0 %v1448
      %1508 = vmatmul.mubr.bf16.gmra.mrb[0].mxu0 %v1447
      %v1509 = vpop.f32.mrb[0].mxu0
      %v1510 = vadd.f32 0.0, %v1509
      %v1511 = vpop.f32.mrb[0].mxu0
      %v1512 = vpop.f32.mrb[0].mxu0
      %v1513 = vadd.f32 0.0, %v1512
      %v1514 = vpop.f32.mrb[0].mxu0
      %1515 = vmatprep.mubr.bf16.mxu0 %v1450
      %1516 = vmatmul.mubr.bf16.gmra.mrb[0].mxu0 %v1449
      %v1517 = vpop.f32.mrb[0].mxu0
      %v1518 = vadd.f32 0.0, %v1517
      %v1519 = vpop.f32.mrb[0].mxu0
      %v1520 = vpop.f32.mrb[0].mxu0
      %v1521 = vadd.f32 0.0, %v1520
      %v1522 = vpop.f32.mrb[0].mxu0
      %1523 = vdwg.mxu0
      %v1524 = vpack.c.bf16 %v1497, %v1494
      %v1525 = vpack.c.bf16 %v1505, %v1502
      %v1526 = vpack.c.bf16 %v1513, %v1510
      %v1527 = vpack.c.bf16 %v1521, %v1518
      %s1528 = scalar_lea.vmem %s439, 8
      %v1529 = vld [vmem:[%s1528] sm:$0x3]
      %v1531 = vsel %vm832, %v1524, 0
      %v1534 = vsel %vm832, %v1525, 0
      %v1537 = vsel %vm832, %v1526, 0
      %v1540 = vsel %vm832, %v1527, 0
      %v1543 = vsel %vm845, %v1529, 0
      %1545 = vmatprep.subr.bf16.mxu0 0
      %1546 = vmatpush1.bf16.msra.mxu0 %v1543
      %1547 = vmatprep.subr.bf16.mxu0 0
      %1548 = vmatpush1.bf16.msra.mxu0 0
      %1549 = vmatprep.subr.bf16.mxu0 0
      %1550 = vmatpush1.bf16.msra.mxu0 0
      %1551 = vmatprep.subr.bf16.mxu0 0
      %1552 = vmatpush1.bf16.msra.mxu0 0
      %1553 = vmatprep.subr.bf16.mxu0 0
      %1554 = vmatpush1.bf16.msra.mxu0 0
      %1555 = vmatprep.subr.bf16.mxu0 0
      %1556 = vmatpush1.bf16.msra.mxu0 0
      %1557 = vmatprep.subr.bf16.mxu0 0
      %1558 = vmatpush1.bf16.msra.mxu0 0
      %1559 = vmatprep.subr.bf16.mxu0 0
      %1560 = vmatpush1.bf16.msra.mxu0 0
      %1561 = vmatprep.subr.bf16.mxu0 0
      %1562 = vmatpush1.bf16.msra.mxu0 0
      %1563 = vmatprep.subr.bf16.mxu0 0
      %1564 = vmatpush1.bf16.msra.mxu0 0
      %1565 = vmatprep.subr.bf16.mxu0 0
      %1566 = vmatpush1.bf16.msra.mxu0 0
      %1567 = vmatprep.subr.bf16.mxu0 0
      %1568 = vmatpush1.bf16.msra.mxu0 0
      %1569 = vmatprep.subr.bf16.mxu0 0
      %1570 = vmatpush1.bf16.msra.mxu0 0
      %1571 = vmatprep.subr.bf16.mxu0 0
      %1572 = vmatpush1.bf16.msra.mxu0 0
      %1573 = vmatprep.subr.bf16.mxu0 0
      %1574 = vmatpush1.bf16.msra.mxu0 0
      %1575 = vmatprep.subr.bf16.mxu0 0
      %1576 = vmatpush1.bf16.msra.mxu0 0
      %1577 = vmatprep.mubr.bf16.mxu0 0
      %1578 = vmatmul.mubr.bf16.gmra.mrb[0].mxu0 %v1531
      %v1579 = vpop.f32.mrb[0].mxu0
      %v1580 = vadd.f32 0.0, %v1579
      %v1581 = vpop.f32.mrb[0].mxu0
      %v1582 = vpop.f32.mrb[0].mxu0
      %v1583 = vadd.f32 0.0, %v1582
      %v1584 = vpop.f32.mrb[0].mxu0
      %1585 = vmatprep.mubr.bf16.mxu0 0
      %1586 = vmatmul.mubr.bf16.gmra.mrb[0].mxu0 %v1534
      %v1587 = vpop.f32.mrb[0].mxu0
      %v1588 = vadd.f32 0.0, %v1587
      %v1589 = vpop.f32.mrb[0].mxu0
      %v1590 = vpop.f32.mrb[0].mxu0
      %v1591 = vadd.f32 0.0, %v1590
      %v1592 = vpop.f32.mrb[0].mxu0
      %1593 = vmatprep.mubr.bf16.mxu0 0
      %1594 = vmatmul.mubr.bf16.gmra.mrb[0].mxu0 %v1537
      %v1595 = vpop.f32.mrb[0].mxu0
      %v1596 = vadd.f32 0.0, %v1595
      %v1597 = vpop.f32.mrb[0].mxu0
      %v1598 = vpop.f32.mrb[0].mxu0
      %v1599 = vadd.f32 0.0, %v1598
      %v1600 = vpop.f32.mrb[0].mxu0
      %1601 = vmatprep.mubr.bf16.mxu0 0
      %1602 = vmatmul.mubr.bf16.gmra.mrb[0].mxu0 %v1540
      %v1603 = vpop.f32.mrb[0].mxu0
      %v1604 = vadd.f32 0.0, %v1603
      %v1605 = vpop.f32.mrb[0].mxu0
      %v1606 = vpop.f32.mrb[0].mxu0
      %v1607 = vadd.f32 0.0, %v1606
      %v1608 = vpop.f32.mrb[0].mxu0
      %1609 = vdwg.mxu0
      %v1610 = vadd.f32 %v1402, %v1580
      %v1611 = vadd.f32 %v1403, %v1583
      %v1612 = vadd.f32 %v1404, %v1588
      %v1613 = vadd.f32 %v1405, %v1591
      %v1614 = vadd.f32 %v1406, %v1596
      %v1615 = vadd.f32 %v1407, %v1599
      %v1616 = vadd.f32 %v1408, %v1604
      %v1617 = vadd.f32 %v1409, %v1607
      %s1618 = scalar_lea.vmem %s1, 320
      %v1619 = vld [vmem:[%s1618] sm:$0xff]
      %v1620 = vld [vmem:[%s1618 + $0x8] sm:$0xff]
      %v1621 = vld [vmem:[%s1618 + $0x10] sm:$0xff]
      %v1622 = vld [vmem:[%s1618 + $0x18] sm:$0xff]
      %v1623 = vld [vmem:[%s1618 + $0x20] sm:$0xff]
      %v1624 = vld [vmem:[%s1618 + $0x28] sm:$0xff]
      %v1625 = vld [vmem:[%s1618 + $0x30] sm:$0xff]
      %v1626 = vld [vmem:[%s1618 + $0x38] sm:$0xff]
      %v1635 = vunpack.c.l.b16 %v1619
      %v1636 = vunpack.c.h.b16 %v1619
      %v1637 = vunpack.c.l.b16 %v1620
      %v1638 = vunpack.c.h.b16 %v1620
      %v1639 = vunpack.c.l.b16 %v1621
      %v1640 = vunpack.c.h.b16 %v1621
      %v1641 = vunpack.c.l.b16 %v1622
      %v1642 = vunpack.c.h.b16 %v1622
      %v1643 = vunpack.c.l.b16 %v1623
      %v1644 = vunpack.c.h.b16 %v1623
      %v1645 = vunpack.c.l.b16 %v1624
      %v1646 = vunpack.c.h.b16 %v1624
      %v1647 = vunpack.c.l.b16 %v1625
      %v1648 = vunpack.c.h.b16 %v1625
      %v1649 = vunpack.c.l.b16 %v1626
      %v1650 = vunpack.c.h.b16 %v1626
      %v1651 = vpack.c.b16 %v1637, %v1635
      %v1652 = vpack.c.b16 %v1638, %v1636
      %v1653 = vpack.c.b16 %v1641, %v1639
      %v1654 = vpack.c.b16 %v1642, %v1640
      %v1655 = vpack.c.b16 %v1645, %v1643
      %v1656 = vpack.c.b16 %v1646, %v1644
      %v1657 = vpack.c.b16 %v1649, %v1647
      %v1658 = vpack.c.b16 %v1650, %v1648
      %1667 = vmatprep.subr.bf16.mxu0 0
      %1668 = vmatpush1.bf16.msra.mxu0 %v610
      %1669 = vmatprep.subr.bf16.mxu0 0
      %1670 = vmatpush1.bf16.msra.mxu0 %v611
      %1671 = vmatprep.subr.bf16.mxu0 0
      %1672 = vmatpush1.bf16.msra.mxu0 %v612
      %1673 = vmatprep.subr.bf16.mxu0 0
      %1674 = vmatpush1.bf16.msra.mxu0 %v613
      %1675 = vmatprep.subr.bf16.mxu0 0
      %1676 = vmatpush1.bf16.msra.mxu0 %v614
      %1677 = vmatprep.subr.bf16.mxu0 0
      %1678 = vmatpush1.bf16.msra.mxu0 %v615
      %1679 = vmatprep.subr.bf16.mxu0 0
      %1680 = vmatpush1.bf16.msra.mxu0 %v616
      %1681 = vmatprep.subr.bf16.mxu0 0
      %1682 = vmatpush1.bf16.msra.mxu0 %v617
      %1683 = vmatprep.subr.bf16.mxu0 0
      %1684 = vmatpush1.bf16.msra.mxu0 %v618
      %1685 = vmatprep.subr.bf16.mxu0 0
      %1686 = vmatpush1.bf16.msra.mxu0 %v619
      %1687 = vmatprep.subr.bf16.mxu0 0
      %1688 = vmatpush1.bf16.msra.mxu0 %v620
      %1689 = vmatprep.subr.bf16.mxu0 0
      %1690 = vmatpush1.bf16.msra.mxu0 %v621
      %1691 = vmatprep.subr.bf16.mxu0 0
      %1692 = vmatpush1.bf16.msra.mxu0 %v622
      %1693 = vmatprep.subr.bf16.mxu0 0
      %1694 = vmatpush1.bf16.msra.mxu0 %v623
      %1695 = vmatprep.subr.bf16.mxu0 0
      %1696 = vmatpush1.bf16.msra.mxu0 %v624
      %1697 = vmatprep.subr.bf16.mxu0 0
      %1698 = vmatpush1.bf16.msra.mxu0 %v625
      %1699 = vmatprep.mubr.bf16.mxu0 %v1652
      %1700 = vmatmul.mubr.bf16.gmra.mrb[0].mxu0 %v1651
      %v1701 = vpop.f32.mrb[0].mxu0
      %v1702 = vadd.f32 0.0, %v1701
      %v1703 = vpop.f32.mrb[0].mxu0
      %v1704 = vpop.f32.mrb[0].mxu0
      %v1705 = vadd.f32 0.0, %v1704
      %v1706 = vpop.f32.mrb[0].mxu0
      %1707 = vmatprep.mubr.bf16.mxu0 %v1654
      %1708 = vmatmul.mubr.bf16.gmra.mrb[0].mxu0 %v1653
      %v1709 = vpop.f32.mrb[0].mxu0
      %v1710 = vadd.f32 0.0, %v1709
      %v1711 = vpop.f32.mrb[0].mxu0
      %v1712 = vpop.f32.mrb[0].mxu0
      %v1713 = vadd.f32 0.0, %v1712
      %v1714 = vpop.f32.mrb[0].mxu0
      %1715 = vmatprep.mubr.bf16.mxu0 %v1656
      %1716 = vmatmul.mubr.bf16.gmra.mrb[0].mxu0 %v1655
      %v1717 = vpop.f32.mrb[0].mxu0
      %v1718 = vadd.f32 0.0, %v1717
      %v1719 = vpop.f32.mrb[0].mxu0
      %v1720 = vpop.f32.mrb[0].mxu0
      %v1721 = vadd.f32 0.0, %v1720
      %v1722 = vpop.f32.mrb[0].mxu0
      %1723 = vmatprep.mubr.bf16.mxu0 %v1658
      %1724 = vmatmul.mubr.bf16.gmra.mrb[0].mxu0 %v1657
      %v1725 = vpop.f32.mrb[0].mxu0
      %v1726 = vadd.f32 0.0, %v1725
      %v1727 = vpop.f32.mrb[0].mxu0
      %v1728 = vpop.f32.mrb[0].mxu0
      %v1729 = vadd.f32 0.0, %v1728
      %v1730 = vpop.f32.mrb[0].mxu0
      %1731 = vdwg.mxu0
      %v1732 = vpack.c.bf16 %v1705, %v1702
      %v1733 = vpack.c.bf16 %v1713, %v1710
      %v1734 = vpack.c.bf16 %v1721, %v1718
      %v1735 = vpack.c.bf16 %v1729, %v1726
      %s1736 = scalar_lea.vmem %s439, 10
      %v1737 = vld [vmem:[%s1736] sm:$0x3]
      %v1739 = vsel %vm832, %v1732, 0
      %v1742 = vsel %vm832, %v1733, 0
      %v1745 = vsel %vm832, %v1734, 0
      %v1748 = vsel %vm832, %v1735, 0
      %v1751 = vsel %vm845, %v1737, 0
      %1753 = vmatprep.subr.bf16.mxu0 0
      %1754 = vmatpush1.bf16.msra.mxu0 %v1751
      %1755 = vmatprep.subr.bf16.mxu0 0
      %1756 = vmatpush1.bf16.msra.mxu0 0
      %1757 = vmatprep.subr.bf16.mxu0 0
      %1758 = vmatpush1.bf16.msra.mxu0 0
      %1759 = vmatprep.subr.bf16.mxu0 0
      %1760 = vmatpush1.bf16.msra.mxu0 0
      %1761 = vmatprep.subr.bf16.mxu0 0
      %1762 = vmatpush1.bf16.msra.mxu0 0
      %1763 = vmatprep.subr.bf16.mxu0 0
      %1764 = vmatpush1.bf16.msra.mxu0 0
      %1765 = vmatprep.subr.bf16.mxu0 0
      %1766 = vmatpush1.bf16.msra.mxu0 0
      %1767 = vmatprep.subr.bf16.mxu0 0
      %1768 = vmatpush1.bf16.msra.mxu0 0
      %1769 = vmatprep.subr.bf16.mxu0 0
      %1770 = vmatpush1.bf16.msra.mxu0 0
      %1771 = vmatprep.subr.bf16.mxu0 0
      %1772 = vmatpush1.bf16.msra.mxu0 0
      %1773 = vmatprep.subr.bf16.mxu0 0
      %1774 = vmatpush1.bf16.msra.mxu0 0
      %1775 = vmatprep.subr.bf16.mxu0 0
      %1776 = vmatpush1.bf16.msra.mxu0 0
      %1777 = vmatprep.subr.bf16.mxu0 0
      %1778 = vmatpush1.bf16.msra.mxu0 0
      %1779 = vmatprep.subr.bf16.mxu0 0
      %1780 = vmatpush1.bf16.msra.mxu0 0
      %1781 = vmatprep.subr.bf16.mxu0 0
      %1782 = vmatpush1.bf16.msra.mxu0 0
      %1783 = vmatprep.subr.bf16.mxu0 0
      %1784 = vmatpush1.bf16.msra.mxu0 0
      %1785 = vmatprep.mubr.bf16.mxu0 0
      %1786 = vmatmul.mubr.bf16.gmra.mrb[0].mxu0 %v1739
      %v1787 = vpop.f32.mrb[0].mxu0
      %v1788 = vadd.f32 0.0, %v1787
      %v1789 = vpop.f32.mrb[0].mxu0
      %v1790 = vpop.f32.mrb[0].mxu0
      %v1791 = vadd.f32 0.0, %v1790
      %v1792 = vpop.f32.mrb[0].mxu0
      %1793 = vmatprep.mubr.bf16.mxu0 0
      %1794 = vmatmul.mubr.bf16.gmra.mrb[0].mxu0 %v1742
      %v1795 = vpop.f32.mrb[0].mxu0
      %v1796 = vadd.f32 0.0, %v1795
      %v1797 = vpop.f32.mrb[0].mxu0
      %v1798 = vpop.f32.mrb[0].mxu0
      %v1799 = vadd.f32 0.0, %v1798
      %v1800 = vpop.f32.mrb[0].mxu0
      %1801 = vmatprep.mubr.bf16.mxu0 0
      %1802 = vmatmul.mubr.bf16.gmra.mrb[0].mxu0 %v1745
      %v1803 = vpop.f32.mrb[0].mxu0
      %v1804 = vadd.f32 0.0, %v1803
      %v1805 = vpop.f32.mrb[0].mxu0
      %v1806 = vpop.f32.mrb[0].mxu0
      %v1807 = vadd.f32 0.0, %v1806
      %v1808 = vpop.f32.mrb[0].mxu0
      %1809 = vmatprep.mubr.bf16.mxu0 0
      %1810 = vmatmul.mubr.bf16.gmra.mrb[0].mxu0 %v1748
      %v1811 = vpop.f32.mrb[0].mxu0
      %v1812 = vadd.f32 0.0, %v1811
      %v1813 = vpop.f32.mrb[0].mxu0
      %v1814 = vpop.f32.mrb[0].mxu0
      %v1815 = vadd.f32 0.0, %v1814
      %v1816 = vpop.f32.mrb[0].mxu0
      %1817 = vdwg.mxu0
      %v1818 = vadd.f32 %v1610, %v1788
      %v1819 = vadd.f32 %v1611, %v1791
      %v1820 = vadd.f32 %v1612, %v1796
      %v1821 = vadd.f32 %v1613, %v1799
      %v1822 = vadd.f32 %v1614, %v1804
      %v1823 = vadd.f32 %v1615, %v1807
      %v1824 = vadd.f32 %v1616, %v1812
      %v1825 = vadd.f32 %v1617, %v1815
      %s1826 = scalar_lea.vmem %s1, 384
      %v1827 = vld [vmem:[%s1826] sm:$0xff]
      %v1828 = vld [vmem:[%s1826 + $0x8] sm:$0xff]
      %v1829 = vld [vmem:[%s1826 + $0x10] sm:$0xff]
      %v1830 = vld [vmem:[%s1826 + $0x18] sm:$0xff]
      %v1831 = vld [vmem:[%s1826 + $0x20] sm:$0xff]
      %v1832 = vld [vmem:[%s1826 + $0x28] sm:$0xff]
      %v1833 = vld [vmem:[%s1826 + $0x30] sm:$0xff]
      %v1834 = vld [vmem:[%s1826 + $0x38] sm:$0xff]
      %v1843 = vunpack.c.l.b16 %v1827
      %v1844 = vunpack.c.h.b16 %v1827
      %v1845 = vunpack.c.l.b16 %v1828
      %v1846 = vunpack.c.h.b16 %v1828
      %v1847 = vunpack.c.l.b16 %v1829
      %v1848 = vunpack.c.h.b16 %v1829
      %v1849 = vunpack.c.l.b16 %v1830
      %v1850 = vunpack.c.h.b16 %v1830
      %v1851 = vunpack.c.l.b16 %v1831
      %v1852 = vunpack.c.h.b16 %v1831
      %v1853 = vunpack.c.l.b16 %v1832
      %v1854 = vunpack.c.h.b16 %v1832
      %v1855 = vunpack.c.l.b16 %v1833
      %v1856 = vunpack.c.h.b16 %v1833
      %v1857 = vunpack.c.l.b16 %v1834
      %v1858 = vunpack.c.h.b16 %v1834
      %v1859 = vpack.c.b16 %v1845, %v1843
      %v1860 = vpack.c.b16 %v1846, %v1844
      %v1861 = vpack.c.b16 %v1849, %v1847
      %v1862 = vpack.c.b16 %v1850, %v1848
      %v1863 = vpack.c.b16 %v1853, %v1851
      %v1864 = vpack.c.b16 %v1854, %v1852
      %v1865 = vpack.c.b16 %v1857, %v1855
      %v1866 = vpack.c.b16 %v1858, %v1856
      %1875 = vmatprep.subr.bf16.mxu0 0
      %1876 = vmatpush1.bf16.msra.mxu0 %v610
      %1877 = vmatprep.subr.bf16.mxu0 0
      %1878 = vmatpush1.bf16.msra.mxu0 %v611
      %1879 = vmatprep.subr.bf16.mxu0 0
      %1880 = vmatpush1.bf16.msra.mxu0 %v612
      %1881 = vmatprep.subr.bf16.mxu0 0
      %1882 = vmatpush1.bf16.msra.mxu0 %v613
      %1883 = vmatprep.subr.bf16.mxu0 0
      %1884 = vmatpush1.bf16.msra.mxu0 %v614
      %1885 = vmatprep.subr.bf16.mxu0 0
      %1886 = vmatpush1.bf16.msra.mxu0 %v615
      %1887 = vmatprep.subr.bf16.mxu0 0
      %1888 = vmatpush1.bf16.msra.mxu0 %v616
      %1889 = vmatprep.subr.bf16.mxu0 0
      %1890 = vmatpush1.bf16.msra.mxu0 %v617
      %1891 = vmatprep.subr.bf16.mxu0 0
      %1892 = vmatpush1.bf16.msra.mxu0 %v618
      %1893 = vmatprep.subr.bf16.mxu0 0
      %1894 = vmatpush1.bf16.msra.mxu0 %v619
      %1895 = vmatprep.subr.bf16.mxu0 0
      %1896 = vmatpush1.bf16.msra.mxu0 %v620
      %1897 = vmatprep.subr.bf16.mxu0 0
      %1898 = vmatpush1.bf16.msra.mxu0 %v621
      %1899 = vmatprep.subr.bf16.mxu0 0
      %1900 = vmatpush1.bf16.msra.mxu0 %v622
      %1901 = vmatprep.subr.bf16.mxu0 0
      %1902 = vmatpush1.bf16.msra.mxu0 %v623
      %1903 = vmatprep.subr.bf16.mxu0 0
      %1904 = vmatpush1.bf16.msra.mxu0 %v624
      %1905 = vmatprep.subr.bf16.mxu0 0
      %1906 = vmatpush1.bf16.msra.mxu0 %v625
      %1907 = vmatprep.mubr.bf16.mxu0 %v1860
      %1908 = vmatmul.mubr.bf16.gmra.mrb[0].mxu0 %v1859
      %v1909 = vpop.f32.mrb[0].mxu0
      %v1910 = vadd.f32 0.0, %v1909
      %v1911 = vpop.f32.mrb[0].mxu0
      %v1912 = vpop.f32.mrb[0].mxu0
      %v1913 = vadd.f32 0.0, %v1912
      %v1914 = vpop.f32.mrb[0].mxu0
      %1915 = vmatprep.mubr.bf16.mxu0 %v1862
      %1916 = vmatmul.mubr.bf16.gmra.mrb[0].mxu0 %v1861
      %v1917 = vpop.f32.mrb[0].mxu0
      %v1918 = vadd.f32 0.0, %v1917
      %v1919 = vpop.f32.mrb[0].mxu0
      %v1920 = vpop.f32.mrb[0].mxu0
      %v1921 = vadd.f32 0.0, %v1920
      %v1922 = vpop.f32.mrb[0].mxu0
      %1923 = vmatprep.mubr.bf16.mxu0 %v1864
      %1924 = vmatmul.mubr.bf16.gmra.mrb[0].mxu0 %v1863
      %v1925 = vpop.f32.mrb[0].mxu0
      %v1926 = vadd.f32 0.0, %v1925
      %v1927 = vpop.f32.mrb[0].mxu0
      %v1928 = vpop.f32.mrb[0].mxu0
      %v1929 = vadd.f32 0.0, %v1928
      %v1930 = vpop.f32.mrb[0].mxu0
      %1931 = vmatprep.mubr.bf16.mxu0 %v1866
      %1932 = vmatmul.mubr.bf16.gmra.mrb[0].mxu0 %v1865
      %v1933 = vpop.f32.mrb[0].mxu0
      %v1934 = vadd.f32 0.0, %v1933
      %v1935 = vpop.f32.mrb[0].mxu0
      %v1936 = vpop.f32.mrb[0].mxu0
      %v1937 = vadd.f32 0.0, %v1936
      %v1938 = vpop.f32.mrb[0].mxu0
      %1939 = vdwg.mxu0
      %v1940 = vpack.c.bf16 %v1913, %v1910
      %v1941 = vpack.c.bf16 %v1921, %v1918
      %v1942 = vpack.c.bf16 %v1929, %v1926
      %v1943 = vpack.c.bf16 %v1937, %v1934
      %s1944 = scalar_lea.vmem %s439, 12
      %v1945 = vld [vmem:[%s1944] sm:$0x3]
      %v1947 = vsel %vm832, %v1940, 0
      %v1950 = vsel %vm832, %v1941, 0
      %v1953 = vsel %vm832, %v1942, 0
      %v1956 = vsel %vm832, %v1943, 0
      %v1959 = vsel %vm845, %v1945, 0
      %1961 = vmatprep.subr.bf16.mxu0 0
      %1962 = vmatpush1.bf16.msra.mxu0 %v1959
      %1963 = vmatprep.subr.bf16.mxu0 0
      %1964 = vmatpush1.bf16.msra.mxu0 0
      %1965 = vmatprep.subr.bf16.mxu0 0
      %1966 = vmatpush1.bf16.msra.mxu0 0
      %1967 = vmatprep.subr.bf16.mxu0 0
      %1968 = vmatpush1.bf16.msra.mxu0 0
      %1969 = vmatprep.subr.bf16.mxu0 0
      %1970 = vmatpush1.bf16.msra.mxu0 0
      %1971 = vmatprep.subr.bf16.mxu0 0
      %1972 = vmatpush1.bf16.msra.mxu0 0
      %1973 = vmatprep.subr.bf16.mxu0 0
      %1974 = vmatpush1.bf16.msra.mxu0 0
      %1975 = vmatprep.subr.bf16.mxu0 0
      %1976 = vmatpush1.bf16.msra.mxu0 0
      %1977 = vmatprep.subr.bf16.mxu0 0
      %1978 = vmatpush1.bf16.msra.mxu0 0
      %1979 = vmatprep.subr.bf16.mxu0 0
      %1980 = vmatpush1.bf16.msra.mxu0 0
      %1981 = vmatprep.subr.bf16.mxu0 0
      %1982 = vmatpush1.bf16.msra.mxu0 0
      %1983 = vmatprep.subr.bf16.mxu0 0
      %1984 = vmatpush1.bf16.msra.mxu0 0
      %1985 = vmatprep.subr.bf16.mxu0 0
      %1986 = vmatpush1.bf16.msra.mxu0 0
      %1987 = vmatprep.subr.bf16.mxu0 0
      %1988 = vmatpush1.bf16.msra.mxu0 0
      %1989 = vmatprep.subr.bf16.mxu0 0
      %1990 = vmatpush1.bf16.msra.mxu0 0
      %1991 = vmatprep.subr.bf16.mxu0 0
      %1992 = vmatpush1.bf16.msra.mxu0 0
      %1993 = vmatprep.mubr.bf16.mxu0 0
      %1994 = vmatmul.mubr.bf16.gmra.mrb[0].mxu0 %v1947
      %v1995 = vpop.f32.mrb[0].mxu0
      %v1996 = vadd.f32 0.0, %v1995
      %v1997 = vpop.f32.mrb[0].mxu0
      %v1998 = vpop.f32.mrb[0].mxu0
      %v1999 = vadd.f32 0.0, %v1998
      %v2000 = vpop.f32.mrb[0].mxu0
      %2001 = vmatprep.mubr.bf16.mxu0 0
      %2002 = vmatmul.mubr.bf16.gmra.mrb[0].mxu0 %v1950
      %v2003 = vpop.f32.mrb[0].mxu0
      %v2004 = vadd.f32 0.0, %v2003
      %v2005 = vpop.f32.mrb[0].mxu0
      %v2006 = vpop.f32.mrb[0].mxu0
      %v2007 = vadd.f32 0.0, %v2006
      %v2008 = vpop.f32.mrb[0].mxu0
      %2009 = vmatprep.mubr.bf16.mxu0 0
      %2010 = vmatmul.mubr.bf16.gmra.mrb[0].mxu0 %v1953
      %v2011 = vpop.f32.mrb[0].mxu0
      %v2012 = vadd.f32 0.0, %v2011
      %v2013 = vpop.f32.mrb[0].mxu0
      %v2014 = vpop.f32.mrb[0].mxu0
      %v2015 = vadd.f32 0.0, %v2014
      %v2016 = vpop.f32.mrb[0].mxu0
      %2017 = vmatprep.mubr.bf16.mxu0 0
      %2018 = vmatmul.mubr.bf16.gmra.mrb[0].mxu0 %v1956
      %v2019 = vpop.f32.mrb[0].mxu0
      %v2020 = vadd.f32 0.0, %v2019
      %v2021 = vpop.f32.mrb[0].mxu0
      %v2022 = vpop.f32.mrb[0].mxu0
      %v2023 = vadd.f32 0.0, %v2022
      %v2024 = vpop.f32.mrb[0].mxu0
      %2025 = vdwg.mxu0
      %v2026 = vadd.f32 %v1818, %v1996
      %v2027 = vadd.f32 %v1819, %v1999
      %v2028 = vadd.f32 %v1820, %v2004
      %v2029 = vadd.f32 %v1821, %v2007
      %v2030 = vadd.f32 %v1822, %v2012
      %v2031 = vadd.f32 %v1823, %v2015
      %v2032 = vadd.f32 %v1824, %v2020
      %v2033 = vadd.f32 %v1825, %v2023
      %s2034 = scalar_lea.vmem %s1, 448
      %v2035 = vld [vmem:[%s2034] sm:$0xff]
      %v2036 = vld [vmem:[%s2034 + $0x8] sm:$0xff]
      %v2037 = vld [vmem:[%s2034 + $0x10] sm:$0xff]
      %v2038 = vld [vmem:[%s2034 + $0x18] sm:$0xff]
      %v2039 = vld [vmem:[%s2034 + $0x20] sm:$0xff]
      %v2040 = vld [vmem:[%s2034 + $0x28] sm:$0xff]
      %v2041 = vld [vmem:[%s2034 + $0x30] sm:$0xff]
      %v2042 = vld [vmem:[%s2034 + $0x38] sm:$0xff]
      %v2051 = vunpack.c.l.b16 %v2035
      %v2052 = vunpack.c.h.b16 %v2035
      %v2053 = vunpack.c.l.b16 %v2036
      %v2054 = vunpack.c.h.b16 %v2036
      %v2055 = vunpack.c.l.b16 %v2037
      %v2056 = vunpack.c.h.b16 %v2037
      %v2057 = vunpack.c.l.b16 %v2038
      %v2058 = vunpack.c.h.b16 %v2038
      %v2059 = vunpack.c.l.b16 %v2039
      %v2060 = vunpack.c.h.b16 %v2039
      %v2061 = vunpack.c.l.b16 %v2040
      %v2062 = vunpack.c.h.b16 %v2040
      %v2063 = vunpack.c.l.b16 %v2041
      %v2064 = vunpack.c.h.b16 %v2041
      %v2065 = vunpack.c.l.b16 %v2042
      %v2066 = vunpack.c.h.b16 %v2042
      %v2067 = vpack.c.b16 %v2053, %v2051
      %v2068 = vpack.c.b16 %v2054, %v2052
      %v2069 = vpack.c.b16 %v2057, %v2055
      %v2070 = vpack.c.b16 %v2058, %v2056
      %v2071 = vpack.c.b16 %v2061, %v2059
      %v2072 = vpack.c.b16 %v2062, %v2060
      %v2073 = vpack.c.b16 %v2065, %v2063
      %v2074 = vpack.c.b16 %v2066, %v2064
      %2083 = vmatprep.subr.bf16.mxu0 0
      %2084 = vmatpush1.bf16.msra.mxu0 %v610
      %2085 = vmatprep.subr.bf16.mxu0 0
      %2086 = vmatpush1.bf16.msra.mxu0 %v611
      %2087 = vmatprep.subr.bf16.mxu0 0
      %2088 = vmatpush1.bf16.msra.mxu0 %v612
      %2089 = vmatprep.subr.bf16.mxu0 0
      %2090 = vmatpush1.bf16.msra.mxu0 %v613
      %2091 = vmatprep.subr.bf16.mxu0 0
      %2092 = vmatpush1.bf16.msra.mxu0 %v614
      %2093 = vmatprep.subr.bf16.mxu0 0
      %2094 = vmatpush1.bf16.msra.mxu0 %v615
      %2095 = vmatprep.subr.bf16.mxu0 0
      %2096 = vmatpush1.bf16.msra.mxu0 %v616
      %2097 = vmatprep.subr.bf16.mxu0 0
      %2098 = vmatpush1.bf16.msra.mxu0 %v617
      %2099 = vmatprep.subr.bf16.mxu0 0
      %2100 = vmatpush1.bf16.msra.mxu0 %v618
      %2101 = vmatprep.subr.bf16.mxu0 0
      %2102 = vmatpush1.bf16.msra.mxu0 %v619
      %2103 = vmatprep.subr.bf16.mxu0 0
      %2104 = vmatpush1.bf16.msra.mxu0 %v620
      %2105 = vmatprep.subr.bf16.mxu0 0
      %2106 = vmatpush1.bf16.msra.mxu0 %v621
      %2107 = vmatprep.subr.bf16.mxu0 0
      %2108 = vmatpush1.bf16.msra.mxu0 %v622
      %2109 = vmatprep.subr.bf16.mxu0 0
      %2110 = vmatpush1.bf16.msra.mxu0 %v623
      %2111 = vmatprep.subr.bf16.mxu0 0
      %2112 = vmatpush1.bf16.msra.mxu0 %v624
      %2113 = vmatprep.subr.bf16.mxu0 0
      %2114 = vmatpush1.bf16.msra.mxu0 %v625
      %2115 = vmatprep.mubr.bf16.mxu0 %v2068
      %2116 = vmatmul.mubr.bf16.gmra.mrb[0].mxu0 %v2067
      %v2117 = vpop.f32.mrb[0].mxu0
      %v2118 = vadd.f32 0.0, %v2117
      %v2119 = vpop.f32.mrb[0].mxu0
      %v2120 = vpop.f32.mrb[0].mxu0
      %v2121 = vadd.f32 0.0, %v2120
      %v2122 = vpop.f32.mrb[0].mxu0
      %2123 = vmatprep.mubr.bf16.mxu0 %v2070
      %2124 = vmatmul.mubr.bf16.gmra.mrb[0].mxu0 %v2069
      %v2125 = vpop.f32.mrb[0].mxu0
      %v2126 = vadd.f32 0.0, %v2125
      %v2127 = vpop.f32.mrb[0].mxu0
      %v2128 = vpop.f32.mrb[0].mxu0
      %v2129 = vadd.f32 0.0, %v2128
      %v2130 = vpop.f32.mrb[0].mxu0
      %2131 = vmatprep.mubr.bf16.mxu0 %v2072
      %2132 = vmatmul.mubr.bf16.gmra.mrb[0].mxu0 %v2071
      %v2133 = vpop.f32.mrb[0].mxu0
      %v2134 = vadd.f32 0.0, %v2133
      %v2135 = vpop.f32.mrb[0].mxu0
      %v2136 = vpop.f32.mrb[0].mxu0
      %v2137 = vadd.f32 0.0, %v2136
      %v2138 = vpop.f32.mrb[0].mxu0
      %2139 = vmatprep.mubr.bf16.mxu0 %v2074
      %2140 = vmatmul.mubr.bf16.gmra.mrb[0].mxu0 %v2073
      %v2141 = vpop.f32.mrb[0].mxu0
      %v2142 = vadd.f32 0.0, %v2141
      %v2143 = vpop.f32.mrb[0].mxu0
      %v2144 = vpop.f32.mrb[0].mxu0
      %v2145 = vadd.f32 0.0, %v2144
      %v2146 = vpop.f32.mrb[0].mxu0
      %2147 = vdwg.mxu0
      %v2148 = vpack.c.bf16 %v2121, %v2118
      %v2149 = vpack.c.bf16 %v2129, %v2126
      %v2150 = vpack.c.bf16 %v2137, %v2134
      %v2151 = vpack.c.bf16 %v2145, %v2142
      %s2152 = scalar_lea.vmem %s439, 14
      %v2153 = vld [vmem:[%s2152] sm:$0x3]
      %v2155 = vsel %vm832, %v2148, 0
      %v2158 = vsel %vm832, %v2149, 0
      %v2161 = vsel %vm832, %v2150, 0
      %v2164 = vsel %vm832, %v2151, 0
      %v2167 = vsel %vm845, %v2153, 0
      %2169 = vmatprep.subr.bf16.mxu0 0
      %2170 = vmatpush1.bf16.msra.mxu0 %v2167
      %2171 = vmatprep.subr.bf16.mxu0 0
      %2172 = vmatpush1.bf16.msra.mxu0 0
      %2173 = vmatprep.subr.bf16.mxu0 0
      %2174 = vmatpush1.bf16.msra.mxu0 0
      %2175 = vmatprep.subr.bf16.mxu0 0
      %2176 = vmatpush1.bf16.msra.mxu0 0
      %2177 = vmatprep.subr.bf16.mxu0 0
      %2178 = vmatpush1.bf16.msra.mxu0 0
      %2179 = vmatprep.subr.bf16.mxu0 0
      %2180 = vmatpush1.bf16.msra.mxu0 0
      %2181 = vmatprep.subr.bf16.mxu0 0
      %2182 = vmatpush1.bf16.msra.mxu0 0
      %2183 = vmatprep.subr.bf16.mxu0 0
      %2184 = vmatpush1.bf16.msra.mxu0 0
      %2185 = vmatprep.subr.bf16.mxu0 0
      %2186 = vmatpush1.bf16.msra.mxu0 0
      %2187 = vmatprep.subr.bf16.mxu0 0
      %2188 = vmatpush1.bf16.msra.mxu0 0
      %2189 = vmatprep.subr.bf16.mxu0 0
      %2190 = vmatpush1.bf16.msra.mxu0 0
      %2191 = vmatprep.subr.bf16.mxu0 0
      %2192 = vmatpush1.bf16.msra.mxu0 0
      %2193 = vmatprep.subr.bf16.mxu0 0
      %2194 = vmatpush1.bf16.msra.mxu0 0
      %2195 = vmatprep.subr.bf16.mxu0 0
      %2196 = vmatpush1.bf16.msra.mxu0 0
      %2197 = vmatprep.subr.bf16.mxu0 0
      %2198 = vmatpush1.bf16.msra.mxu0 0
      %2199 = vmatprep.subr.bf16.mxu0 0
      %2200 = vmatpush1.bf16.msra.mxu0 0
      %2201 = vmatprep.mubr.bf16.mxu0 0
      %2202 = vmatmul.mubr.bf16.gmra.mrb[0].mxu0 %v2155
      %v2203 = vpop.f32.mrb[0].mxu0
      %v2204 = vadd.f32 0.0, %v2203
      %v2205 = vpop.f32.mrb[0].mxu0
      %v2206 = vpop.f32.mrb[0].mxu0
      %v2207 = vadd.f32 0.0, %v2206
      %v2208 = vpop.f32.mrb[0].mxu0
      %2209 = vmatprep.mubr.bf16.mxu0 0
      %2210 = vmatmul.mubr.bf16.gmra.mrb[0].mxu0 %v2158
      %v2211 = vpop.f32.mrb[0].mxu0
      %v2212 = vadd.f32 0.0, %v2211
      %v2213 = vpop.f32.mrb[0].mxu0
      %v2214 = vpop.f32.mrb[0].mxu0
      %v2215 = vadd.f32 0.0, %v2214
      %v2216 = vpop.f32.mrb[0].mxu0
      %2217 = vmatprep.mubr.bf16.mxu0 0
      %2218 = vmatmul.mubr.bf16.gmra.mrb[0].mxu0 %v2161
      %v2219 = vpop.f32.mrb[0].mxu0
      %v2220 = vadd.f32 0.0, %v2219
      %v2221 = vpop.f32.mrb[0].mxu0
      %v2222 = vpop.f32.mrb[0].mxu0
      %v2223 = vadd.f32 0.0, %v2222
      %v2224 = vpop.f32.mrb[0].mxu0
      %2225 = vmatprep.mubr.bf16.mxu0 0
      %2226 = vmatmul.mubr.bf16.gmra.mrb[0].mxu0 %v2164
      %v2227 = vpop.f32.mrb[0].mxu0
      %v2228 = vadd.f32 0.0, %v2227
      %v2229 = vpop.f32.mrb[0].mxu0
      %v2230 = vpop.f32.mrb[0].mxu0
      %v2231 = vadd.f32 0.0, %v2230
      %v2232 = vpop.f32.mrb[0].mxu0
      %2233 = vdwg.mxu0
      %v2234 = vadd.f32 %v2026, %v2204
      %v2235 = vadd.f32 %v2027, %v2207
      %v2236 = vadd.f32 %v2028, %v2212
      %v2237 = vadd.f32 %v2029, %v2215
      %v2238 = vadd.f32 %v2030, %v2220
      %v2239 = vadd.f32 %v2031, %v2223
      %v2240 = vadd.f32 %v2032, %v2228
      %v2241 = vadd.f32 %v2033, %v2231
      %s2242 = scalar_lea.vmem %s1, 512
      %v2243 = vld [vmem:[%s2242] sm:$0xff]
      %v2244 = vld [vmem:[%s2242 + $0x8] sm:$0xff]
      %v2245 = vld [vmem:[%s2242 + $0x10] sm:$0xff]
      %v2246 = vld [vmem:[%s2242 + $0x18] sm:$0xff]
      %v2247 = vld [vmem:[%s2242 + $0x20] sm:$0xff]
      %v2248 = vld [vmem:[%s2242 + $0x28] sm:$0xff]
      %v2249 = vld [vmem:[%s2242 + $0x30] sm:$0xff]
      %v2250 = vld [vmem:[%s2242 + $0x38] sm:$0xff]
      %v2259 = vunpack.c.l.b16 %v2243
      %v2260 = vunpack.c.h.b16 %v2243
      %v2261 = vunpack.c.l.b16 %v2244
      %v2262 = vunpack.c.h.b16 %v2244
      %v2263 = vunpack.c.l.b16 %v2245
      %v2264 = vunpack.c.h.b16 %v2245
      %v2265 = vunpack.c.l.b16 %v2246
      %v2266 = vunpack.c.h.b16 %v2246
      %v2267 = vunpack.c.l.b16 %v2247
      %v2268 = vunpack.c.h.b16 %v2247
      %v2269 = vunpack.c.l.b16 %v2248
      %v2270 = vunpack.c.h.b16 %v2248
      %v2271 = vunpack.c.l.b16 %v2249
      %v2272 = vunpack.c.h.b16 %v2249
      %v2273 = vunpack.c.l.b16 %v2250
      %v2274 = vunpack.c.h.b16 %v2250
      %v2275 = vpack.c.b16 %v2261, %v2259
      %v2276 = vpack.c.b16 %v2262, %v2260
      %v2277 = vpack.c.b16 %v2265, %v2263
      %v2278 = vpack.c.b16 %v2266, %v2264
      %v2279 = vpack.c.b16 %v2269, %v2267
      %v2280 = vpack.c.b16 %v2270, %v2268
      %v2281 = vpack.c.b16 %v2273, %v2271
      %v2282 = vpack.c.b16 %v2274, %v2272
      %2291 = vmatprep.subr.bf16.mxu0 0
      %2292 = vmatpush1.bf16.msra.mxu0 %v610
      %2293 = vmatprep.subr.bf16.mxu0 0
      %2294 = vmatpush1.bf16.msra.mxu0 %v611
      %2295 = vmatprep.subr.bf16.mxu0 0
      %2296 = vmatpush1.bf16.msra.mxu0 %v612
      %2297 = vmatprep.subr.bf16.mxu0 0
      %2298 = vmatpush1.bf16.msra.mxu0 %v613
      %2299 = vmatprep.subr.bf16.mxu0 0
      %2300 = vmatpush1.bf16.msra.mxu0 %v614
      %2301 = vmatprep.subr.bf16.mxu0 0
      %2302 = vmatpush1.bf16.msra.mxu0 %v615
      %2303 = vmatprep.subr.bf16.mxu0 0
      %2304 = vmatpush1.bf16.msra.mxu0 %v616
      %2305 = vmatprep.subr.bf16.mxu0 0
      %2306 = vmatpush1.bf16.msra.mxu0 %v617
      %2307 = vmatprep.subr.bf16.mxu0 0
      %2308 = vmatpush1.bf16.msra.mxu0 %v618
      %2309 = vmatprep.subr.bf16.mxu0 0
      %2310 = vmatpush1.bf16.msra.mxu0 %v619
      %2311 = vmatprep.subr.bf16.mxu0 0
      %2312 = vmatpush1.bf16.msra.mxu0 %v620
      %2313 = vmatprep.subr.bf16.mxu0 0
      %2314 = vmatpush1.bf16.msra.mxu0 %v621
      %2315 = vmatprep.subr.bf16.mxu0 0
      %2316 = vmatpush1.bf16.msra.mxu0 %v622
      %2317 = vmatprep.subr.bf16.mxu0 0
      %2318 = vmatpush1.bf16.msra.mxu0 %v623
      %2319 = vmatprep.subr.bf16.mxu0 0
      %2320 = vmatpush1.bf16.msra.mxu0 %v624
      %2321 = vmatprep.subr.bf16.mxu0 0
      %2322 = vmatpush1.bf16.msra.mxu0 %v625
      %2323 = vmatprep.mubr.bf16.mxu0 %v2276
      %2324 = vmatmul.mubr.bf16.gmra.mrb[0].mxu0 %v2275
      %v2325 = vpop.f32.mrb[0].mxu0
      %v2326 = vadd.f32 0.0, %v2325
      %v2327 = vpop.f32.mrb[0].mxu0
      %v2328 = vpop.f32.mrb[0].mxu0
      %v2329 = vadd.f32 0.0, %v2328
      %v2330 = vpop.f32.mrb[0].mxu0
      %2331 = vmatprep.mubr.bf16.mxu0 %v2278
      %2332 = vmatmul.mubr.bf16.gmra.mrb[0].mxu0 %v2277
      %v2333 = vpop.f32.mrb[0].mxu0
      %v2334 = vadd.f32 0.0, %v2333
      %v2335 = vpop.f32.mrb[0].mxu0
      %v2336 = vpop.f32.mrb[0].mxu0
      %v2337 = vadd.f32 0.0, %v2336
      %v2338 = vpop.f32.mrb[0].mxu0
      %2339 = vmatprep.mubr.bf16.mxu0 %v2280
      %2340 = vmatmul.mubr.bf16.gmra.mrb[0].mxu0 %v2279
      %v2341 = vpop.f32.mrb[0].mxu0
      %v2342 = vadd.f32 0.0, %v2341
      %v2343 = vpop.f32.mrb[0].mxu0
      %v2344 = vpop.f32.mrb[0].mxu0
      %v2345 = vadd.f32 0.0, %v2344
      %v2346 = vpop.f32.mrb[0].mxu0
      %2347 = vmatprep.mubr.bf16.mxu0 %v2282
      %2348 = vmatmul.mubr.bf16.gmra.mrb[0].mxu0 %v2281
      %v2349 = vpop.f32.mrb[0].mxu0
      %v2350 = vadd.f32 0.0, %v2349
      %v2351 = vpop.f32.mrb[0].mxu0
      %v2352 = vpop.f32.mrb[0].mxu0
      %v2353 = vadd.f32 0.0, %v2352
      %v2354 = vpop.f32.mrb[0].mxu0
      %2355 = vdwg.mxu0
      %v2356 = vpack.c.bf16 %v2329, %v2326
      %v2357 = vpack.c.bf16 %v2337, %v2334
      %v2358 = vpack.c.bf16 %v2345, %v2342
      %v2359 = vpack.c.bf16 %v2353, %v2350
      %s2360 = scalar_lea.vmem %s439, 16
      %v2361 = vld [vmem:[%s2360] sm:$0x3]
      %v2363 = vsel %vm832, %v2356, 0
      %v2366 = vsel %vm832, %v2357, 0
      %v2369 = vsel %vm832, %v2358, 0
      %v2372 = vsel %vm832, %v2359, 0
      %v2375 = vsel %vm845, %v2361, 0
      %2377 = vmatprep.subr.bf16.mxu0 0
      %2378 = vmatpush1.bf16.msra.mxu0 %v2375
      %2379 = vmatprep.subr.bf16.mxu0 0
      %2380 = vmatpush1.bf16.msra.mxu0 0
      %2381 = vmatprep.subr.bf16.mxu0 0
      %2382 = vmatpush1.bf16.msra.mxu0 0
      %2383 = vmatprep.subr.bf16.mxu0 0
      %2384 = vmatpush1.bf16.msra.mxu0 0
      %2385 = vmatprep.subr.bf16.mxu0 0
      %2386 = vmatpush1.bf16.msra.mxu0 0
      %2387 = vmatprep.subr.bf16.mxu0 0
      %2388 = vmatpush1.bf16.msra.mxu0 0
      %2389 = vmatprep.subr.bf16.mxu0 0
      %2390 = vmatpush1.bf16.msra.mxu0 0
      %2391 = vmatprep.subr.bf16.mxu0 0
      %2392 = vmatpush1.bf16.msra.mxu0 0
      %2393 = vmatprep.subr.bf16.mxu0 0
      %2394 = vmatpush1.bf16.msra.mxu0 0
      %2395 = vmatprep.subr.bf16.mxu0 0
      %2396 = vmatpush1.bf16.msra.mxu0 0
      %2397 = vmatprep.subr.bf16.mxu0 0
      %2398 = vmatpush1.bf16.msra.mxu0 0
      %2399 = vmatprep.subr.bf16.mxu0 0
      %2400 = vmatpush1.bf16.msra.mxu0 0
      %2401 = vmatprep.subr.bf16.mxu0 0
      %2402 = vmatpush1.bf16.msra.mxu0 0
      %2403 = vmatprep.subr.bf16.mxu0 0
      %2404 = vmatpush1.bf16.msra.mxu0 0
      %2405 = vmatprep.subr.bf16.mxu0 0
      %2406 = vmatpush1.bf16.msra.mxu0 0
      %2407 = vmatprep.subr.bf16.mxu0 0
      %2408 = vmatpush1.bf16.msra.mxu0 0
      %2409 = vmatprep.mubr.bf16.mxu0 0
      %2410 = vmatmul.mubr.bf16.gmra.mrb[0].mxu0 %v2363
      %v2411 = vpop.f32.mrb[0].mxu0
      %v2412 = vadd.f32 0.0, %v2411
      %v2413 = vpop.f32.mrb[0].mxu0
      %v2414 = vpop.f32.mrb[0].mxu0
      %v2415 = vadd.f32 0.0, %v2414
      %v2416 = vpop.f32.mrb[0].mxu0
      %2417 = vmatprep.mubr.bf16.mxu0 0
      %2418 = vmatmul.mubr.bf16.gmra.mrb[0].mxu0 %v2366
      %v2419 = vpop.f32.mrb[0].mxu0
      %v2420 = vadd.f32 0.0, %v2419
      %v2421 = vpop.f32.mrb[0].mxu0
      %v2422 = vpop.f32.mrb[0].mxu0
      %v2423 = vadd.f32 0.0, %v2422
      %v2424 = vpop.f32.mrb[0].mxu0
      %2425 = vmatprep.mubr.bf16.mxu0 0
      %2426 = vmatmul.mubr.bf16.gmra.mrb[0].mxu0 %v2369
      %v2427 = vpop.f32.mrb[0].mxu0
      %v2428 = vadd.f32 0.0, %v2427
      %v2429 = vpop.f32.mrb[0].mxu0
      %v2430 = vpop.f32.mrb[0].mxu0
      %v2431 = vadd.f32 0.0, %v2430
      %v2432 = vpop.f32.mrb[0].mxu0
      %2433 = vmatprep.mubr.bf16.mxu0 0
      %2434 = vmatmul.mubr.bf16.gmra.mrb[0].mxu0 %v2372
      %v2435 = vpop.f32.mrb[0].mxu0
      %v2436 = vadd.f32 0.0, %v2435
      %v2437 = vpop.f32.mrb[0].mxu0
      %v2438 = vpop.f32.mrb[0].mxu0
      %v2439 = vadd.f32 0.0, %v2438
      %v2440 = vpop.f32.mrb[0].mxu0
      %2441 = vdwg.mxu0
      %v2442 = vadd.f32 %v2234, %v2412
      %v2443 = vadd.f32 %v2235, %v2415
      %v2444 = vadd.f32 %v2236, %v2420
      %v2445 = vadd.f32 %v2237, %v2423
      %v2446 = vadd.f32 %v2238, %v2428
      %v2447 = vadd.f32 %v2239, %v2431
      %v2448 = vadd.f32 %v2240, %v2436
      %v2449 = vadd.f32 %v2241, %v2439
      %v2450 = vld [vmem:[%s452] sm:$0x1]
      %v2452 = vlaneseq
      %v2453 = vshrl.u32 %v2452, 7
      %v2454 = vsub.s32 0, %v2453
      %v2455 = vrot.slane %v2450, %v2454
      %v2457 = vadd.f32 %v2442, %v2455
      %v2458 = vadd.f32 %v2443, %v2455
      %v2459 = vadd.f32 %v2444, %v2455
      %v2460 = vadd.f32 %v2445, %v2455
      %v2461 = vadd.f32 %v2446, %v2455
      %v2462 = vadd.f32 %v2447, %v2455
      %v2463 = vadd.f32 %v2448, %v2455
      %v2464 = vadd.f32 %v2449, %v2455
      %v2465 = vmax.f32 %v2457, 0.0
      %v2466 = vmax.f32 %v2458, 0.0
      %v2467 = vmax.f32 %v2459, 0.0
      %v2468 = vmax.f32 %v2460, 0.0
      %v2469 = vmax.f32 %v2461, 0.0
      %v2470 = vmax.f32 %v2462, 0.0
      %v2471 = vmax.f32 %v2463, 0.0
      %v2472 = vmax.f32 %v2464, 0.0
      %v2473 = vpack.c.bf16 %v2466, %v2465
      %v2474 = vpack.c.bf16 %v2468, %v2467
      %v2475 = vpack.c.bf16 %v2470, %v2469
      %v2476 = vpack.c.bf16 %v2472, %v2471
      %v2477 = vld [vmem:[%s2] sm:$0xf]
      %v2478 = vld [vmem:[%s2 + $0x4] sm:$0xf]
      %v2481 = vunpack.c.l.b16 %v2477
      %v2482 = vunpack.c.l.b16 %v2478
      %v2483 = vpack.c.b16 %v2482, %v2481
      %vm2484 = vcmask 523264
      %v2486 = vsel %vm2484, %v2483, 0
      %2488 = vmatprep.subr.bf16.mxu0 0
      %2489 = vmatpush1.bf16.msra.mxu0 %v2473
      %2490 = vmatprep.subr.bf16.mxu0 0
      %2491 = vmatpush1.bf16.msra.mxu0 %v2474
      %2492 = vmatprep.subr.bf16.mxu0 0
      %2493 = vmatpush1.bf16.msra.mxu0 %v2475
      %2494 = vmatprep.subr.bf16.mxu0 0
      %2495 = vmatpush1.bf16.msra.mxu0 %v2476
      %2496 = vmatprep.subr.bf16.mxu0 0
      %2497 = vmatpush1.bf16.msra.mxu0 0
      %2498 = vmatprep.subr.bf16.mxu0 0
      %2499 = vmatpush1.bf16.msra.mxu0 0
      %2500 = vmatprep.subr.bf16.mxu0 0
      %2501 = vmatpush1.bf16.msra.mxu0 0
      %2502 = vmatprep.subr.bf16.mxu0 0
      %2503 = vmatpush1.bf16.msra.mxu0 0
      %2504 = vmatprep.subr.bf16.mxu0 0
      %2505 = vmatpush1.bf16.msra.mxu0 0
      %2506 = vmatprep.subr.bf16.mxu0 0
      %2507 = vmatpush1.bf16.msra.mxu0 0
      %2508 = vmatprep.subr.bf16.mxu0 0
      %2509 = vmatpush1.bf16.msra.mxu0 0
      %2510 = vmatprep.subr.bf16.mxu0 0
      %2511 = vmatpush1.bf16.msra.mxu0 0
      %2512 = vmatprep.subr.bf16.mxu0 0
      %2513 = vmatpush1.bf16.msra.mxu0 0
      %2514 = vmatprep.subr.bf16.mxu0 0
      %2515 = vmatpush1.bf16.msra.mxu0 0
      %2516 = vmatprep.subr.bf16.mxu0 0
      %2517 = vmatpush1.bf16.msra.mxu0 0
      %2518 = vmatprep.subr.bf16.mxu0 0
      %2519 = vmatpush1.bf16.msra.mxu0 0
      %2520 = vmatprep.mubr.bf16.mxu0 0
      %2521 = vmatmul.mubr.bf16.gmra.mrb[0].mxu0 %v2486
      %v2522 = vpop.f32.mrb[0].mxu0
      %v2523 = vadd.f32 0.0, %v2522
      %v2524 = vpop.f32.mrb[0].mxu0
      %v2525 = vpop.f32.mrb[0].mxu0
      %v2526 = vadd.f32 0.0, %v2525
      %v2527 = vpop.f32.mrb[0].mxu0
      %2528 = vdwg.mxu0
      %v2529 = vpack.c.bf16 %v2526, %v2523
      %v2530 = vld [vmem:[%s444] sm:$0xf]
      %v2531 = vld [vmem:[%s444 + $0x4] sm:$0xf]
      %v2532 = vld [vmem:[%s444 + $0x8] sm:$0xf]
      %v2533 = vld [vmem:[%s444 + $0xc] sm:$0xf]
      %v2534 = vld [vmem:[%s444 + $0x10] sm:$0xf]
      %v2535 = vld [vmem:[%s444 + $0x14] sm:$0xf]
      %v2536 = vld [vmem:[%s444 + $0x18] sm:$0xf]
      %v2537 = vld [vmem:[%s444 + $0x1c] sm:$0xf]
      %s2538 = scalar_lea.vmem %s2, 8
      %v2539 = vld [vmem:[%s2538] sm:$0xf]
      %v2540 = vld [vmem:[%s2538 + $0x4] sm:$0xf]
      %v2543 = vunpack.c.l.b16 %v2539
      %v2544 = vunpack.c.l.b16 %v2540
      %v2545 = vpack.c.b16 %v2544, %v2543
      %v2547 = vsel %vm2484, %v2545, 0
      %2549 = vmatprep.subr.bf16.mxu0 0
      %2550 = vmatpush1.bf16.msra.mxu0 %v2473
      %2551 = vmatprep.subr.bf16.mxu0 0
      %2552 = vmatpush1.bf16.msra.mxu0 %v2474
      %2553 = vmatprep.subr.bf16.mxu0 0
      %2554 = vmatpush1.bf16.msra.mxu0 %v2475
      %2555 = vmatprep.subr.bf16.mxu0 0
      %2556 = vmatpush1.bf16.msra.mxu0 %v2476
      %2557 = vmatprep.subr.bf16.mxu0 0
      %2558 = vmatpush1.bf16.msra.mxu0 0
      %2559 = vmatprep.subr.bf16.mxu0 0
      %2560 = vmatpush1.bf16.msra.mxu0 0
      %2561 = vmatprep.subr.bf16.mxu0 0
      %2562 = vmatpush1.bf16.msra.mxu0 0
      %2563 = vmatprep.subr.bf16.mxu0 0
      %2564 = vmatpush1.bf16.msra.mxu0 0
      %2565 = vmatprep.subr.bf16.mxu0 0
      %2566 = vmatpush1.bf16.msra.mxu0 0
      %2567 = vmatprep.subr.bf16.mxu0 0
      %2568 = vmatpush1.bf16.msra.mxu0 0
      %2569 = vmatprep.subr.bf16.mxu0 0
      %2570 = vmatpush1.bf16.msra.mxu0 0
      %2571 = vmatprep.subr.bf16.mxu0 0
      %2572 = vmatpush1.bf16.msra.mxu0 0
      %2573 = vmatprep.subr.bf16.mxu0 0
      %2574 = vmatpush1.bf16.msra.mxu0 0
      %2575 = vmatprep.subr.bf16.mxu0 0
      %2576 = vmatpush1.bf16.msra.mxu0 0
      %2577 = vmatprep.subr.bf16.mxu0 0
      %2578 = vmatpush1.bf16.msra.mxu0 0
      %2579 = vmatprep.subr.bf16.mxu0 0
      %2580 = vmatpush1.bf16.msra.mxu0 0
      %2581 = vmatprep.mubr.bf16.mxu0 0
      %2582 = vmatmul.mubr.bf16.gmra.mrb[0].mxu0 %v2547
      %v2583 = vpop.f32.mrb[0].mxu0
      %v2584 = vadd.f32 0.0, %v2583
      %v2585 = vpop.f32.mrb[0].mxu0
      %v2586 = vpop.f32.mrb[0].mxu0
      %v2587 = vadd.f32 0.0, %v2586
      %v2588 = vpop.f32.mrb[0].mxu0
      %2589 = vdwg.mxu0
      %v2590 = vpack.c.bf16 %v2587, %v2584
      %s2591 = scalar_lea.vmem %s444, 32
      %v2592 = vld [vmem:[%s2591] sm:$0xf]
      %v2593 = vld [vmem:[%s2591 + $0x4] sm:$0xf]
      %v2594 = vld [vmem:[%s2591 + $0x8] sm:$0xf]
      %v2595 = vld [vmem:[%s2591 + $0xc] sm:$0xf]
      %v2596 = vld [vmem:[%s2591 + $0x10] sm:$0xf]
      %v2597 = vld [vmem:[%s2591 + $0x14] sm:$0xf]
      %v2598 = vld [vmem:[%s2591 + $0x18] sm:$0xf]
      %v2599 = vld [vmem:[%s2591 + $0x1c] sm:$0xf]
      %v2608 = vunpack.c.l.b16 %v2592
      %v2609 = vunpack.c.l.b16 %v2593
      %v2610 = vunpack.c.l.b16 %v2594
      %v2611 = vunpack.c.l.b16 %v2595
      %v2612 = vunpack.c.l.b16 %v2596
      %v2613 = vunpack.c.l.b16 %v2597
      %v2614 = vunpack.c.l.b16 %v2598
      %v2615 = vunpack.c.l.b16 %v2599
      %v2616 = vpack.c.b16 %v2609, %v2608
      %v2617 = vpack.c.b16 %v2611, %v2610
      %v2618 = vpack.c.b16 %v2613, %v2612
      %v2619 = vpack.c.b16 %v2615, %v2614
      %v2625 = vsel %vm2484, %v2590, 0
      %2627 = vmatprep.subr.bf16.mxu0 0
      %2628 = vmatpush1.bf16.msra.mxu0 %v2616
      %2629 = vmatprep.subr.bf16.mxu0 0
      %2630 = vmatpush1.bf16.msra.mxu0 %v2617
      %2631 = vmatprep.subr.bf16.mxu0 0
      %2632 = vmatpush1.bf16.msra.mxu0 %v2618
      %2633 = vmatprep.subr.bf16.mxu0 0
      %2634 = vmatpush1.bf16.msra.mxu0 %v2619
      %2635 = vmatprep.subr.bf16.mxu0 0
      %2636 = vmatpush1.bf16.msra.mxu0 0
      %2637 = vmatprep.subr.bf16.mxu0 0
      %2638 = vmatpush1.bf16.msra.mxu0 0
      %2639 = vmatprep.subr.bf16.mxu0 0
      %2640 = vmatpush1.bf16.msra.mxu0 0
      %2641 = vmatprep.subr.bf16.mxu0 0
      %2642 = vmatpush1.bf16.msra.mxu0 0
      %2643 = vmatprep.subr.bf16.mxu0 0
      %2644 = vmatpush1.bf16.msra.mxu0 0
      %2645 = vmatprep.subr.bf16.mxu0 0
      %2646 = vmatpush1.bf16.msra.mxu0 0
      %2647 = vmatprep.subr.bf16.mxu0 0
      %2648 = vmatpush1.bf16.msra.mxu0 0
      %2649 = vmatprep.subr.bf16.mxu0 0
      %2650 = vmatpush1.bf16.msra.mxu0 0
      %2651 = vmatprep.subr.bf16.mxu0 0
      %2652 = vmatpush1.bf16.msra.mxu0 0
      %2653 = vmatprep.subr.bf16.mxu0 0
      %2654 = vmatpush1.bf16.msra.mxu0 0
      %2655 = vmatprep.subr.bf16.mxu0 0
      %2656 = vmatpush1.bf16.msra.mxu0 0
      %2657 = vmatprep.subr.bf16.mxu0 0
      %2658 = vmatpush1.bf16.msra.mxu0 0
      %2659 = vmatprep.mubr.bf16.mxu0 0
      %2660 = vmatmul.mubr.bf16.gmra.mrb[0].mxu0 %v2625
      %v2661 = vpop.f32.mrb[0].mxu0
      %v2662 = vadd.f32 0.0, %v2661
      %v2663 = vpop.f32.mrb[0].mxu0
      %v2664 = vpop.f32.mrb[0].mxu0
      %v2665 = vadd.f32 0.0, %v2664
      %v2666 = vpop.f32.mrb[0].mxu0
      %2667 = vdwg.mxu0
      %v2676 = vunpack.c.l.b16 %v2530
      %v2677 = vunpack.c.l.b16 %v2531
      %v2678 = vunpack.c.l.b16 %v2532
      %v2679 = vunpack.c.l.b16 %v2533
      %v2680 = vunpack.c.l.b16 %v2534
      %v2681 = vunpack.c.l.b16 %v2535
      %v2682 = vunpack.c.l.b16 %v2536
      %v2683 = vunpack.c.l.b16 %v2537
      %v2684 = vpack.c.b16 %v2677, %v2676
      %v2685 = vpack.c.b16 %v2679, %v2678
      %v2686 = vpack.c.b16 %v2681, %v2680
      %v2687 = vpack.c.b16 %v2683, %v2682
      %v2693 = vsel %vm2484, %v2529, 0
      %2695 = vmatprep.subr.bf16.mxu0 0
      %2696 = vmatpush1.bf16.msra.mxu0 %v2684
      %2697 = vmatprep.subr.bf16.mxu0 0
      %2698 = vmatpush1.bf16.msra.mxu0 %v2685
      %2699 = vmatprep.subr.bf16.mxu0 0
      %2700 = vmatpush1.bf16.msra.mxu0 %v2686
      %2701 = vmatprep.subr.bf16.mxu0 0
      %2702 = vmatpush1.bf16.msra.mxu0 %v2687
      %2703 = vmatprep.subr.bf16.mxu0 0
      %2704 = vmatpush1.bf16.msra.mxu0 0
      %2705 = vmatprep.subr.bf16.mxu0 0
      %2706 = vmatpush1.bf16.msra.mxu0 0
      %2707 = vmatprep.subr.bf16.mxu0 0
      %2708 = vmatpush1.bf16.msra.mxu0 0
      %2709 = vmatprep.subr.bf16.mxu0 0
      %2710 = vmatpush1.bf16.msra.mxu0 0
      %2711 = vmatprep.subr.bf16.mxu0 0
      %2712 = vmatpush1.bf16.msra.mxu0 0
      %2713 = vmatprep.subr.bf16.mxu0 0
      %2714 = vmatpush1.bf16.msra.mxu0 0
      %2715 = vmatprep.subr.bf16.mxu0 0
      %2716 = vmatpush1.bf16.msra.mxu0 0
      %2717 = vmatprep.subr.bf16.mxu0 0
      %2718 = vmatpush1.bf16.msra.mxu0 0
      %2719 = vmatprep.subr.bf16.mxu0 0
      %2720 = vmatpush1.bf16.msra.mxu0 0
      %2721 = vmatprep.subr.bf16.mxu0 0
      %2722 = vmatpush1.bf16.msra.mxu0 0
      %2723 = vmatprep.subr.bf16.mxu0 0
      %2724 = vmatpush1.bf16.msra.mxu0 0
      %2725 = vmatprep.subr.bf16.mxu0 0
      %2726 = vmatpush1.bf16.msra.mxu0 0
      %2727 = vmatprep.mubr.bf16.mxu0 0
      %2728 = vmatmul.mubr.bf16.gmra.mrb[0].mxu0 %v2693
      %v2729 = vpop.f32.mrb[0].mxu0
      %v2730 = vadd.f32 %v2662, %v2729
      %v2731 = vpop.f32.mrb[0].mxu0
      %v2732 = vpop.f32.mrb[0].mxu0
      %v2733 = vadd.f32 %v2665, %v2732
      %v2734 = vpop.f32.mrb[0].mxu0
      %2735 = vdwg.mxu0
      %s2736 = scalar_lea.vmem %s2, 16
      %v2737 = vld [vmem:[%s2736] sm:$0xf]
      %v2738 = vld [vmem:[%s2736 + $0x4] sm:$0xf]
      %v2741 = vunpack.c.l.b16 %v2737
      %v2742 = vunpack.c.l.b16 %v2738
      %v2743 = vpack.c.b16 %v2742, %v2741
      %v2745 = vsel %vm2484, %v2743, 0
      %2747 = vmatprep.subr.bf16.mxu0 0
      %2748 = vmatpush1.bf16.msra.mxu0 %v2473
      %2749 = vmatprep.subr.bf16.mxu0 0
      %2750 = vmatpush1.bf16.msra.mxu0 %v2474
      %2751 = vmatprep.subr.bf16.mxu0 0
      %2752 = vmatpush1.bf16.msra.mxu0 %v2475
      %2753 = vmatprep.subr.bf16.mxu0 0
      %2754 = vmatpush1.bf16.msra.mxu0 %v2476
      %2755 = vmatprep.subr.bf16.mxu0 0
      %2756 = vmatpush1.bf16.msra.mxu0 0
      %2757 = vmatprep.subr.bf16.mxu0 0
      %2758 = vmatpush1.bf16.msra.mxu0 0
      %2759 = vmatprep.subr.bf16.mxu0 0
      %2760 = vmatpush1.bf16.msra.mxu0 0
      %2761 = vmatprep.subr.bf16.mxu0 0
      %2762 = vmatpush1.bf16.msra.mxu0 0
      %2763 = vmatprep.subr.bf16.mxu0 0
      %2764 = vmatpush1.bf16.msra.mxu0 0
      %2765 = vmatprep.subr.bf16.mxu0 0
      %2766 = vmatpush1.bf16.msra.mxu0 0
      %2767 = vmatprep.subr.bf16.mxu0 0
      %2768 = vmatpush1.bf16.msra.mxu0 0
      %2769 = vmatprep.subr.bf16.mxu0 0
      %2770 = vmatpush1.bf16.msra.mxu0 0
      %2771 = vmatprep.subr.bf16.mxu0 0
      %2772 = vmatpush1.bf16.msra.mxu0 0
      %2773 = vmatprep.subr.bf16.mxu0 0
      %2774 = vmatpush1.bf16.msra.mxu0 0
      %2775 = vmatprep.subr.bf16.mxu0 0
      %2776 = vmatpush1.bf16.msra.mxu0 0
      %2777 = vmatprep.subr.bf16.mxu0 0
      %2778 = vmatpush1.bf16.msra.mxu0 0
      %2779 = vmatprep.mubr.bf16.mxu0 0
      %2780 = vmatmul.mubr.bf16.gmra.mrb[0].mxu0 %v2745
      %v2781 = vpop.f32.mrb[0].mxu0
      %v2782 = vadd.f32 0.0, %v2781
      %v2783 = vpop.f32.mrb[0].mxu0
      %v2784 = vpop.f32.mrb[0].mxu0
      %v2785 = vadd.f32 0.0, %v2784
      %v2786 = vpop.f32.mrb[0].mxu0
      %2787 = vdwg.mxu0
      %v2788 = vpack.c.bf16 %v2785, %v2782
      %s2789 = scalar_lea.vmem %s444, 64
      %v2790 = vld [vmem:[%s2789] sm:$0xf]
      %v2791 = vld [vmem:[%s2789 + $0x4] sm:$0xf]
      %v2792 = vld [vmem:[%s2789 + $0x8] sm:$0xf]
      %v2793 = vld [vmem:[%s2789 + $0xc] sm:$0xf]
      %v2794 = vld [vmem:[%s2789 + $0x10] sm:$0xf]
      %v2795 = vld [vmem:[%s2789 + $0x14] sm:$0xf]
      %v2796 = vld [vmem:[%s2789 + $0x18] sm:$0xf]
      %v2797 = vld [vmem:[%s2789 + $0x1c] sm:$0xf]
      %v2806 = vunpack.c.l.b16 %v2790
      %v2807 = vunpack.c.l.b16 %v2791
      %v2808 = vunpack.c.l.b16 %v2792
      %v2809 = vunpack.c.l.b16 %v2793
      %v2810 = vunpack.c.l.b16 %v2794
      %v2811 = vunpack.c.l.b16 %v2795
      %v2812 = vunpack.c.l.b16 %v2796
      %v2813 = vunpack.c.l.b16 %v2797
      %v2814 = vpack.c.b16 %v2807, %v2806
      %v2815 = vpack.c.b16 %v2809, %v2808
      %v2816 = vpack.c.b16 %v2811, %v2810
      %v2817 = vpack.c.b16 %v2813, %v2812
      %v2823 = vsel %vm2484, %v2788, 0
      %2825 = vmatprep.subr.bf16.mxu0 0
      %2826 = vmatpush1.bf16.msra.mxu0 %v2814
      %2827 = vmatprep.subr.bf16.mxu0 0
      %2828 = vmatpush1.bf16.msra.mxu0 %v2815
      %2829 = vmatprep.subr.bf16.mxu0 0
      %2830 = vmatpush1.bf16.msra.mxu0 %v2816
      %2831 = vmatprep.subr.bf16.mxu0 0
      %2832 = vmatpush1.bf16.msra.mxu0 %v2817
      %2833 = vmatprep.subr.bf16.mxu0 0
      %2834 = vmatpush1.bf16.msra.mxu0 0
      %2835 = vmatprep.subr.bf16.mxu0 0
      %2836 = vmatpush1.bf16.msra.mxu0 0
      %2837 = vmatprep.subr.bf16.mxu0 0
      %2838 = vmatpush1.bf16.msra.mxu0 0
      %2839 = vmatprep.subr.bf16.mxu0 0
      %2840 = vmatpush1.bf16.msra.mxu0 0
      %2841 = vmatprep.subr.bf16.mxu0 0
      %2842 = vmatpush1.bf16.msra.mxu0 0
      %2843 = vmatprep.subr.bf16.mxu0 0
      %2844 = vmatpush1.bf16.msra.mxu0 0
      %2845 = vmatprep.subr.bf16.mxu0 0
      %2846 = vmatpush1.bf16.msra.mxu0 0
      %2847 = vmatprep.subr.bf16.mxu0 0
      %2848 = vmatpush1.bf16.msra.mxu0 0
      %2849 = vmatprep.subr.bf16.mxu0 0
      %2850 = vmatpush1.bf16.msra.mxu0 0
      %2851 = vmatprep.subr.bf16.mxu0 0
      %2852 = vmatpush1.bf16.msra.mxu0 0
      %2853 = vmatprep.subr.bf16.mxu0 0
      %2854 = vmatpush1.bf16.msra.mxu0 0
      %2855 = vmatprep.subr.bf16.mxu0 0
      %2856 = vmatpush1.bf16.msra.mxu0 0
      %2857 = vmatprep.mubr.bf16.mxu0 0
      %2858 = vmatmul.mubr.bf16.gmra.mrb[0].mxu0 %v2823
      %v2859 = vpop.f32.mrb[0].mxu0
      %v2860 = vadd.f32 0.0, %v2859
      %v2861 = vpop.f32.mrb[0].mxu0
      %v2862 = vpop.f32.mrb[0].mxu0
      %v2863 = vadd.f32 0.0, %v2862
      %v2864 = vpop.f32.mrb[0].mxu0
      %2865 = vdwg.mxu0
      %v2866 = vadd.f32 %v2730, %v2860
      %v2867 = vadd.f32 %v2733, %v2863
      %s2868 = scalar_lea.vmem %s2, 24
      %v2869 = vld [vmem:[%s2868] sm:$0xf]
      %v2870 = vld [vmem:[%s2868 + $0x4] sm:$0xf]
      %v2873 = vunpack.c.l.b16 %v2869
      %v2874 = vunpack.c.l.b16 %v2870
      %v2875 = vpack.c.b16 %v2874, %v2873
      %v2877 = vsel %vm2484, %v2875, 0
      %2879 = vmatprep.subr.bf16.mxu0 0
      %2880 = vmatpush1.bf16.msra.mxu0 %v2473
      %2881 = vmatprep.subr.bf16.mxu0 0
      %2882 = vmatpush1.bf16.msra.mxu0 %v2474
      %2883 = vmatprep.subr.bf16.mxu0 0
      %2884 = vmatpush1.bf16.msra.mxu0 %v2475
      %2885 = vmatprep.subr.bf16.mxu0 0
      %2886 = vmatpush1.bf16.msra.mxu0 %v2476
      %2887 = vmatprep.subr.bf16.mxu0 0
      %2888 = vmatpush1.bf16.msra.mxu0 0
      %2889 = vmatprep.subr.bf16.mxu0 0
      %2890 = vmatpush1.bf16.msra.mxu0 0
      %2891 = vmatprep.subr.bf16.mxu0 0
      %2892 = vmatpush1.bf16.msra.mxu0 0
      %2893 = vmatprep.subr.bf16.mxu0 0
      %2894 = vmatpush1.bf16.msra.mxu0 0
      %2895 = vmatprep.subr.bf16.mxu0 0
      %2896 = vmatpush1.bf16.msra.mxu0 0
      %2897 = vmatprep.subr.bf16.mxu0 0
      %2898 = vmatpush1.bf16.msra.mxu0 0
      %2899 = vmatprep.subr.bf16.mxu0 0
      %2900 = vmatpush1.bf16.msra.mxu0 0
      %2901 = vmatprep.subr.bf16.mxu0 0
      %2902 = vmatpush1.bf16.msra.mxu0 0
      %2903 = vmatprep.subr.bf16.mxu0 0
      %2904 = vmatpush1.bf16.msra.mxu0 0
      %2905 = vmatprep.subr.bf16.mxu0 0
      %2906 = vmatpush1.bf16.msra.mxu0 0
      %2907 = vmatprep.subr.bf16.mxu0 0
      %2908 = vmatpush1.bf16.msra.mxu0 0
      %2909 = vmatprep.subr.bf16.mxu0 0
      %2910 = vmatpush1.bf16.msra.mxu0 0
      %2911 = vmatprep.mubr.bf16.mxu0 0
      %2912 = vmatmul.mubr.bf16.gmra.mrb[0].mxu0 %v2877
      %v2913 = vpop.f32.mrb[0].mxu0
      %v2914 = vadd.f32 0.0, %v2913
      %v2915 = vpop.f32.mrb[0].mxu0
      %v2916 = vpop.f32.mrb[0].mxu0
      %v2917 = vadd.f32 0.0, %v2916
      %v2918 = vpop.f32.mrb[0].mxu0
      %2919 = vdwg.mxu0
      %v2920 = vpack.c.bf16 %v2917, %v2914
      %s2921 = scalar_lea.vmem %s444, 96
      %v2922 = vld [vmem:[%s2921] sm:$0xf]
      %v2923 = vld [vmem:[%s2921 + $0x4] sm:$0xf]
      %v2924 = vld [vmem:[%s2921 + $0x8] sm:$0xf]
      %v2925 = vld [vmem:[%s2921 + $0xc] sm:$0xf]
      %v2926 = vld [vmem:[%s2921 + $0x10] sm:$0xf]
      %v2927 = vld [vmem:[%s2921 + $0x14] sm:$0xf]
      %v2928 = vld [vmem:[%s2921 + $0x18] sm:$0xf]
      %v2929 = vld [vmem:[%s2921 + $0x1c] sm:$0xf]
      %v2938 = vunpack.c.l.b16 %v2922
      %v2939 = vunpack.c.l.b16 %v2923
      %v2940 = vunpack.c.l.b16 %v2924
      %v2941 = vunpack.c.l.b16 %v2925
      %v2942 = vunpack.c.l.b16 %v2926
      %v2943 = vunpack.c.l.b16 %v2927
      %v2944 = vunpack.c.l.b16 %v2928
      %v2945 = vunpack.c.l.b16 %v2929
      %v2946 = vpack.c.b16 %v2939, %v2938
      %v2947 = vpack.c.b16 %v2941, %v2940
      %v2948 = vpack.c.b16 %v2943, %v2942
      %v2949 = vpack.c.b16 %v2945, %v2944
      %v2955 = vsel %vm2484, %v2920, 0
      %2957 = vmatprep.subr.bf16.mxu0 0
      %2958 = vmatpush1.bf16.msra.mxu0 %v2946
      %2959 = vmatprep.subr.bf16.mxu0 0
      %2960 = vmatpush1.bf16.msra.mxu0 %v2947
      %2961 = vmatprep.subr.bf16.mxu0 0
      %2962 = vmatpush1.bf16.msra.mxu0 %v2948
      %2963 = vmatprep.subr.bf16.mxu0 0
      %2964 = vmatpush1.bf16.msra.mxu0 %v2949
      %2965 = vmatprep.subr.bf16.mxu0 0
      %2966 = vmatpush1.bf16.msra.mxu0 0
      %2967 = vmatprep.subr.bf16.mxu0 0
      %2968 = vmatpush1.bf16.msra.mxu0 0
      %2969 = vmatprep.subr.bf16.mxu0 0
      %2970 = vmatpush1.bf16.msra.mxu0 0
      %2971 = vmatprep.subr.bf16.mxu0 0
      %2972 = vmatpush1.bf16.msra.mxu0 0
      %2973 = vmatprep.subr.bf16.mxu0 0
      %2974 = vmatpush1.bf16.msra.mxu0 0
      %2975 = vmatprep.subr.bf16.mxu0 0
      %2976 = vmatpush1.bf16.msra.mxu0 0
      %2977 = vmatprep.subr.bf16.mxu0 0
      %2978 = vmatpush1.bf16.msra.mxu0 0
      %2979 = vmatprep.subr.bf16.mxu0 0
      %2980 = vmatpush1.bf16.msra.mxu0 0
      %2981 = vmatprep.subr.bf16.mxu0 0
      %2982 = vmatpush1.bf16.msra.mxu0 0
      %2983 = vmatprep.subr.bf16.mxu0 0
      %2984 = vmatpush1.bf16.msra.mxu0 0
      %2985 = vmatprep.subr.bf16.mxu0 0
      %2986 = vmatpush1.bf16.msra.mxu0 0
      %2987 = vmatprep.subr.bf16.mxu0 0
      %2988 = vmatpush1.bf16.msra.mxu0 0
      %2989 = vmatprep.mubr.bf16.mxu0 0
      %2990 = vmatmul.mubr.bf16.gmra.mrb[0].mxu0 %v2955
      %v2991 = vpop.f32.mrb[0].mxu0
      %v2992 = vadd.f32 0.0, %v2991
      %v2993 = vpop.f32.mrb[0].mxu0
      %v2994 = vpop.f32.mrb[0].mxu0
      %v2995 = vadd.f32 0.0, %v2994
      %v2996 = vpop.f32.mrb[0].mxu0
      %2997 = vdwg.mxu0
      %v2998 = vadd.f32 %v2866, %v2992
      %v2999 = vadd.f32 %v2867, %v2995
      %s3000 = scalar_lea.vmem %s2, 32
      %v3001 = vld [vmem:[%s3000] sm:$0xf]
      %v3002 = vld [vmem:[%s3000 + $0x4] sm:$0xf]
      %v3005 = vunpack.c.l.b16 %v3001
      %v3006 = vunpack.c.l.b16 %v3002
      %v3007 = vpack.c.b16 %v3006, %v3005
      %v3009 = vsel %vm2484, %v3007, 0
      %3011 = vmatprep.subr.bf16.mxu0 0
      %3012 = vmatpush1.bf16.msra.mxu0 %v2473
      %3013 = vmatprep.subr.bf16.mxu0 0
      %3014 = vmatpush1.bf16.msra.mxu0 %v2474
      %3015 = vmatprep.subr.bf16.mxu0 0
      %3016 = vmatpush1.bf16.msra.mxu0 %v2475
      %3017 = vmatprep.subr.bf16.mxu0 0
      %3018 = vmatpush1.bf16.msra.mxu0 %v2476
      %3019 = vmatprep.subr.bf16.mxu0 0
      %3020 = vmatpush1.bf16.msra.mxu0 0
      %3021 = vmatprep.subr.bf16.mxu0 0
      %3022 = vmatpush1.bf16.msra.mxu0 0
      %3023 = vmatprep.subr.bf16.mxu0 0
      %3024 = vmatpush1.bf16.msra.mxu0 0
      %3025 = vmatprep.subr.bf16.mxu0 0
      %3026 = vmatpush1.bf16.msra.mxu0 0
      %3027 = vmatprep.subr.bf16.mxu0 0
      %3028 = vmatpush1.bf16.msra.mxu0 0
      %3029 = vmatprep.subr.bf16.mxu0 0
      %3030 = vmatpush1.bf16.msra.mxu0 0
      %3031 = vmatprep.subr.bf16.mxu0 0
      %3032 = vmatpush1.bf16.msra.mxu0 0
      %3033 = vmatprep.subr.bf16.mxu0 0
      %3034 = vmatpush1.bf16.msra.mxu0 0
      %3035 = vmatprep.subr.bf16.mxu0 0
      %3036 = vmatpush1.bf16.msra.mxu0 0
      %3037 = vmatprep.subr.bf16.mxu0 0
      %3038 = vmatpush1.bf16.msra.mxu0 0
      %3039 = vmatprep.subr.bf16.mxu0 0
      %3040 = vmatpush1.bf16.msra.mxu0 0
      %3041 = vmatprep.subr.bf16.mxu0 0
      %3042 = vmatpush1.bf16.msra.mxu0 0
      %3043 = vmatprep.mubr.bf16.mxu0 0
      %3044 = vmatmul.mubr.bf16.gmra.mrb[0].mxu0 %v3009
      %v3045 = vpop.f32.mrb[0].mxu0
      %v3046 = vadd.f32 0.0, %v3045
      %v3047 = vpop.f32.mrb[0].mxu0
      %v3048 = vpop.f32.mrb[0].mxu0
      %v3049 = vadd.f32 0.0, %v3048
      %v3050 = vpop.f32.mrb[0].mxu0
      %3051 = vdwg.mxu0
      %v3052 = vpack.c.bf16 %v3049, %v3046
      %s3053 = scalar_lea.vmem %s444, 128
      %v3054 = vld [vmem:[%s3053] sm:$0xf]
      %v3055 = vld [vmem:[%s3053 + $0x4] sm:$0xf]
      %v3056 = vld [vmem:[%s3053 + $0x8] sm:$0xf]
      %v3057 = vld [vmem:[%s3053 + $0xc] sm:$0xf]
      %v3058 = vld [vmem:[%s3053 + $0x10] sm:$0xf]
      %v3059 = vld [vmem:[%s3053 + $0x14] sm:$0xf]
      %v3060 = vld [vmem:[%s3053 + $0x18] sm:$0xf]
      %v3061 = vld [vmem:[%s3053 + $0x1c] sm:$0xf]
      %v3070 = vunpack.c.l.b16 %v3054
      %v3071 = vunpack.c.l.b16 %v3055
      %v3072 = vunpack.c.l.b16 %v3056
      %v3073 = vunpack.c.l.b16 %v3057
      %v3074 = vunpack.c.l.b16 %v3058
      %v3075 = vunpack.c.l.b16 %v3059
      %v3076 = vunpack.c.l.b16 %v3060
      %v3077 = vunpack.c.l.b16 %v3061
      %v3078 = vpack.c.b16 %v3071, %v3070
      %v3079 = vpack.c.b16 %v3073, %v3072
      %v3080 = vpack.c.b16 %v3075, %v3074
      %v3081 = vpack.c.b16 %v3077, %v3076
      %v3087 = vsel %vm2484, %v3052, 0
      %3089 = vmatprep.subr.bf16.mxu0 0
      %3090 = vmatpush1.bf16.msra.mxu0 %v3078
      %3091 = vmatprep.subr.bf16.mxu0 0
      %3092 = vmatpush1.bf16.msra.mxu0 %v3079
      %3093 = vmatprep.subr.bf16.mxu0 0
      %3094 = vmatpush1.bf16.msra.mxu0 %v3080
      %3095 = vmatprep.subr.bf16.mxu0 0
      %3096 = vmatpush1.bf16.msra.mxu0 %v3081
      %3097 = vmatprep.subr.bf16.mxu0 0
      %3098 = vmatpush1.bf16.msra.mxu0 0
      %3099 = vmatprep.subr.bf16.mxu0 0
      %3100 = vmatpush1.bf16.msra.mxu0 0
      %3101 = vmatprep.subr.bf16.mxu0 0
      %3102 = vmatpush1.bf16.msra.mxu0 0
      %3103 = vmatprep.subr.bf16.mxu0 0
      %3104 = vmatpush1.bf16.msra.mxu0 0
      %3105 = vmatprep.subr.bf16.mxu0 0
      %3106 = vmatpush1.bf16.msra.mxu0 0
      %3107 = vmatprep.subr.bf16.mxu0 0
      %3108 = vmatpush1.bf16.msra.mxu0 0
      %3109 = vmatprep.subr.bf16.mxu0 0
      %3110 = vmatpush1.bf16.msra.mxu0 0
      %3111 = vmatprep.subr.bf16.mxu0 0
      %3112 = vmatpush1.bf16.msra.mxu0 0
      %3113 = vmatprep.subr.bf16.mxu0 0
      %3114 = vmatpush1.bf16.msra.mxu0 0
      %3115 = vmatprep.subr.bf16.mxu0 0
      %3116 = vmatpush1.bf16.msra.mxu0 0
      %3117 = vmatprep.subr.bf16.mxu0 0
      %3118 = vmatpush1.bf16.msra.mxu0 0
      %3119 = vmatprep.subr.bf16.mxu0 0
      %3120 = vmatpush1.bf16.msra.mxu0 0
      %3121 = vmatprep.mubr.bf16.mxu0 0
      %3122 = vmatmul.mubr.bf16.gmra.mrb[0].mxu0 %v3087
      %v3123 = vpop.f32.mrb[0].mxu0
      %v3124 = vadd.f32 0.0, %v3123
      %v3125 = vpop.f32.mrb[0].mxu0
      %v3126 = vpop.f32.mrb[0].mxu0
      %v3127 = vadd.f32 0.0, %v3126
      %v3128 = vpop.f32.mrb[0].mxu0
      %3129 = vdwg.mxu0
      %v3130 = vadd.f32 %v2998, %v3124
      %v3131 = vadd.f32 %v2999, %v3127
      %s3132 = scalar_lea.vmem %s2, 40
      %v3133 = vld [vmem:[%s3132] sm:$0xf]
      %v3134 = vld [vmem:[%s3132 + $0x4] sm:$0xf]
      %v3137 = vunpack.c.l.b16 %v3133
      %v3138 = vunpack.c.l.b16 %v3134
      %v3139 = vpack.c.b16 %v3138, %v3137
      %v3141 = vsel %vm2484, %v3139, 0
      %3143 = vmatprep.subr.bf16.mxu0 0
      %3144 = vmatpush1.bf16.msra.mxu0 %v2473
      %3145 = vmatprep.subr.bf16.mxu0 0
      %3146 = vmatpush1.bf16.msra.mxu0 %v2474
      %3147 = vmatprep.subr.bf16.mxu0 0
      %3148 = vmatpush1.bf16.msra.mxu0 %v2475
      %3149 = vmatprep.subr.bf16.mxu0 0
      %3150 = vmatpush1.bf16.msra.mxu0 %v2476
      %3151 = vmatprep.subr.bf16.mxu0 0
      %3152 = vmatpush1.bf16.msra.mxu0 0
      %3153 = vmatprep.subr.bf16.mxu0 0
      %3154 = vmatpush1.bf16.msra.mxu0 0
      %3155 = vmatprep.subr.bf16.mxu0 0
      %3156 = vmatpush1.bf16.msra.mxu0 0
      %3157 = vmatprep.subr.bf16.mxu0 0
      %3158 = vmatpush1.bf16.msra.mxu0 0
      %3159 = vmatprep.subr.bf16.mxu0 0
      %3160 = vmatpush1.bf16.msra.mxu0 0
      %3161 = vmatprep.subr.bf16.mxu0 0
      %3162 = vmatpush1.bf16.msra.mxu0 0
      %3163 = vmatprep.subr.bf16.mxu0 0
      %3164 = vmatpush1.bf16.msra.mxu0 0
      %3165 = vmatprep.subr.bf16.mxu0 0
      %3166 = vmatpush1.bf16.msra.mxu0 0
      %3167 = vmatprep.subr.bf16.mxu0 0
      %3168 = vmatpush1.bf16.msra.mxu0 0
      %3169 = vmatprep.subr.bf16.mxu0 0
      %3170 = vmatpush1.bf16.msra.mxu0 0
      %3171 = vmatprep.subr.bf16.mxu0 0
      %3172 = vmatpush1.bf16.msra.mxu0 0
      %3173 = vmatprep.subr.bf16.mxu0 0
      %3174 = vmatpush1.bf16.msra.mxu0 0
      %3175 = vmatprep.mubr.bf16.mxu0 0
      %3176 = vmatmul.mubr.bf16.gmra.mrb[0].mxu0 %v3141
      %v3177 = vpop.f32.mrb[0].mxu0
      %v3178 = vadd.f32 0.0, %v3177
      %v3179 = vpop.f32.mrb[0].mxu0
      %v3180 = vpop.f32.mrb[0].mxu0
      %v3181 = vadd.f32 0.0, %v3180
      %v3182 = vpop.f32.mrb[0].mxu0
      %3183 = vdwg.mxu0
      %v3184 = vpack.c.bf16 %v3181, %v3178
      %s3185 = scalar_lea.vmem %s444, 160
      %v3186 = vld [vmem:[%s3185] sm:$0xf]
      %v3187 = vld [vmem:[%s3185 + $0x4] sm:$0xf]
      %v3188 = vld [vmem:[%s3185 + $0x8] sm:$0xf]
      %v3189 = vld [vmem:[%s3185 + $0xc] sm:$0xf]
      %v3190 = vld [vmem:[%s3185 + $0x10] sm:$0xf]
      %v3191 = vld [vmem:[%s3185 + $0x14] sm:$0xf]
      %v3192 = vld [vmem:[%s3185 + $0x18] sm:$0xf]
      %v3193 = vld [vmem:[%s3185 + $0x1c] sm:$0xf]
      %v3202 = vunpack.c.l.b16 %v3186
      %v3203 = vunpack.c.l.b16 %v3187
      %v3204 = vunpack.c.l.b16 %v3188
      %v3205 = vunpack.c.l.b16 %v3189
      %v3206 = vunpack.c.l.b16 %v3190
      %v3207 = vunpack.c.l.b16 %v3191
      %v3208 = vunpack.c.l.b16 %v3192
      %v3209 = vunpack.c.l.b16 %v3193
      %v3210 = vpack.c.b16 %v3203, %v3202
      %v3211 = vpack.c.b16 %v3205, %v3204
      %v3212 = vpack.c.b16 %v3207, %v3206
      %v3213 = vpack.c.b16 %v3209, %v3208
      %v3219 = vsel %vm2484, %v3184, 0
      %3221 = vmatprep.subr.bf16.mxu0 0
      %3222 = vmatpush1.bf16.msra.mxu0 %v3210
      %3223 = vmatprep.subr.bf16.mxu0 0
      %3224 = vmatpush1.bf16.msra.mxu0 %v3211
      %3225 = vmatprep.subr.bf16.mxu0 0
      %3226 = vmatpush1.bf16.msra.mxu0 %v3212
      %3227 = vmatprep.subr.bf16.mxu0 0
      %3228 = vmatpush1.bf16.msra.mxu0 %v3213
      %3229 = vmatprep.subr.bf16.mxu0 0
      %3230 = vmatpush1.bf16.msra.mxu0 0
      %3231 = vmatprep.subr.bf16.mxu0 0
      %3232 = vmatpush1.bf16.msra.mxu0 0
      %3233 = vmatprep.subr.bf16.mxu0 0
      %3234 = vmatpush1.bf16.msra.mxu0 0
      %3235 = vmatprep.subr.bf16.mxu0 0
      %3236 = vmatpush1.bf16.msra.mxu0 0
      %3237 = vmatprep.subr.bf16.mxu0 0
      %3238 = vmatpush1.bf16.msra.mxu0 0
      %3239 = vmatprep.subr.bf16.mxu0 0
      %3240 = vmatpush1.bf16.msra.mxu0 0
      %3241 = vmatprep.subr.bf16.mxu0 0
      %3242 = vmatpush1.bf16.msra.mxu0 0
      %3243 = vmatprep.subr.bf16.mxu0 0
      %3244 = vmatpush1.bf16.msra.mxu0 0
      %3245 = vmatprep.subr.bf16.mxu0 0
      %3246 = vmatpush1.bf16.msra.mxu0 0
      %3247 = vmatprep.subr.bf16.mxu0 0
      %3248 = vmatpush1.bf16.msra.mxu0 0
      %3249 = vmatprep.subr.bf16.mxu0 0
      %3250 = vmatpush1.bf16.msra.mxu0 0
      %3251 = vmatprep.subr.bf16.mxu0 0
      %3252 = vmatpush1.bf16.msra.mxu0 0
      %3253 = vmatprep.mubr.bf16.mxu0 0
      %3254 = vmatmul.mubr.bf16.gmra.mrb[0].mxu0 %v3219
      %v3255 = vpop.f32.mrb[0].mxu0
      %v3256 = vadd.f32 0.0, %v3255
      %v3257 = vpop.f32.mrb[0].mxu0
      %v3258 = vpop.f32.mrb[0].mxu0
      %v3259 = vadd.f32 0.0, %v3258
      %v3260 = vpop.f32.mrb[0].mxu0
      %3261 = vdwg.mxu0
      %v3262 = vadd.f32 %v3130, %v3256
      %v3263 = vadd.f32 %v3131, %v3259
      %s3264 = scalar_lea.vmem %s2, 48
      %v3265 = vld [vmem:[%s3264] sm:$0xf]
      %v3266 = vld [vmem:[%s3264 + $0x4] sm:$0xf]
      %v3269 = vunpack.c.l.b16 %v3265
      %v3270 = vunpack.c.l.b16 %v3266
      %v3271 = vpack.c.b16 %v3270, %v3269
      %v3273 = vsel %vm2484, %v3271, 0
      %3275 = vmatprep.subr.bf16.mxu0 0
      %3276 = vmatpush1.bf16.msra.mxu0 %v2473
      %3277 = vmatprep.subr.bf16.mxu0 0
      %3278 = vmatpush1.bf16.msra.mxu0 %v2474
      %3279 = vmatprep.subr.bf16.mxu0 0
      %3280 = vmatpush1.bf16.msra.mxu0 %v2475
      %3281 = vmatprep.subr.bf16.mxu0 0
      %3282 = vmatpush1.bf16.msra.mxu0 %v2476
      %3283 = vmatprep.subr.bf16.mxu0 0
      %3284 = vmatpush1.bf16.msra.mxu0 0
      %3285 = vmatprep.subr.bf16.mxu0 0
      %3286 = vmatpush1.bf16.msra.mxu0 0
      %3287 = vmatprep.subr.bf16.mxu0 0
      %3288 = vmatpush1.bf16.msra.mxu0 0
      %3289 = vmatprep.subr.bf16.mxu0 0
      %3290 = vmatpush1.bf16.msra.mxu0 0
      %3291 = vmatprep.subr.bf16.mxu0 0
      %3292 = vmatpush1.bf16.msra.mxu0 0
      %3293 = vmatprep.subr.bf16.mxu0 0
      %3294 = vmatpush1.bf16.msra.mxu0 0
      %3295 = vmatprep.subr.bf16.mxu0 0
      %3296 = vmatpush1.bf16.msra.mxu0 0
      %3297 = vmatprep.subr.bf16.mxu0 0
      %3298 = vmatpush1.bf16.msra.mxu0 0
      %3299 = vmatprep.subr.bf16.mxu0 0
      %3300 = vmatpush1.bf16.msra.mxu0 0
      %3301 = vmatprep.subr.bf16.mxu0 0
      %3302 = vmatpush1.bf16.msra.mxu0 0
      %3303 = vmatprep.subr.bf16.mxu0 0
      %3304 = vmatpush1.bf16.msra.mxu0 0
      %3305 = vmatprep.subr.bf16.mxu0 0
      %3306 = vmatpush1.bf16.msra.mxu0 0
      %3307 = vmatprep.mubr.bf16.mxu0 0
      %3308 = vmatmul.mubr.bf16.gmra.mrb[0].mxu0 %v3273
      %v3309 = vpop.f32.mrb[0].mxu0
      %v3310 = vadd.f32 0.0, %v3309
      %v3311 = vpop.f32.mrb[0].mxu0
      %v3312 = vpop.f32.mrb[0].mxu0
      %v3313 = vadd.f32 0.0, %v3312
      %v3314 = vpop.f32.mrb[0].mxu0
      %3315 = vdwg.mxu0
      %v3316 = vpack.c.bf16 %v3313, %v3310
      %s3317 = scalar_lea.vmem %s444, 192
      %v3318 = vld [vmem:[%s3317] sm:$0xf]
      %v3319 = vld [vmem:[%s3317 + $0x4] sm:$0xf]
      %v3320 = vld [vmem:[%s3317 + $0x8] sm:$0xf]
      %v3321 = vld [vmem:[%s3317 + $0xc] sm:$0xf]
      %v3322 = vld [vmem:[%s3317 + $0x10] sm:$0xf]
      %v3323 = vld [vmem:[%s3317 + $0x14] sm:$0xf]
      %v3324 = vld [vmem:[%s3317 + $0x18] sm:$0xf]
      %v3325 = vld [vmem:[%s3317 + $0x1c] sm:$0xf]
      %v3334 = vunpack.c.l.b16 %v3318
      %v3335 = vunpack.c.l.b16 %v3319
      %v3336 = vunpack.c.l.b16 %v3320
      %v3337 = vunpack.c.l.b16 %v3321
      %v3338 = vunpack.c.l.b16 %v3322
      %v3339 = vunpack.c.l.b16 %v3323
      %v3340 = vunpack.c.l.b16 %v3324
      %v3341 = vunpack.c.l.b16 %v3325
      %v3342 = vpack.c.b16 %v3335, %v3334
      %v3343 = vpack.c.b16 %v3337, %v3336
      %v3344 = vpack.c.b16 %v3339, %v3338
      %v3345 = vpack.c.b16 %v3341, %v3340
      %v3351 = vsel %vm2484, %v3316, 0
      %3353 = vmatprep.subr.bf16.mxu0 0
      %3354 = vmatpush1.bf16.msra.mxu0 %v3342
      %3355 = vmatprep.subr.bf16.mxu0 0
      %3356 = vmatpush1.bf16.msra.mxu0 %v3343
      %3357 = vmatprep.subr.bf16.mxu0 0
      %3358 = vmatpush1.bf16.msra.mxu0 %v3344
      %3359 = vmatprep.subr.bf16.mxu0 0
      %3360 = vmatpush1.bf16.msra.mxu0 %v3345
      %3361 = vmatprep.subr.bf16.mxu0 0
      %3362 = vmatpush1.bf16.msra.mxu0 0
      %3363 = vmatprep.subr.bf16.mxu0 0
      %3364 = vmatpush1.bf16.msra.mxu0 0
      %3365 = vmatprep.subr.bf16.mxu0 0
      %3366 = vmatpush1.bf16.msra.mxu0 0
      %3367 = vmatprep.subr.bf16.mxu0 0
      %3368 = vmatpush1.bf16.msra.mxu0 0
      %3369 = vmatprep.subr.bf16.mxu0 0
      %3370 = vmatpush1.bf16.msra.mxu0 0
      %3371 = vmatprep.subr.bf16.mxu0 0
      %3372 = vmatpush1.bf16.msra.mxu0 0
      %3373 = vmatprep.subr.bf16.mxu0 0
      %3374 = vmatpush1.bf16.msra.mxu0 0
      %3375 = vmatprep.subr.bf16.mxu0 0
      %3376 = vmatpush1.bf16.msra.mxu0 0
      %3377 = vmatprep.subr.bf16.mxu0 0
      %3378 = vmatpush1.bf16.msra.mxu0 0
      %3379 = vmatprep.subr.bf16.mxu0 0
      %3380 = vmatpush1.bf16.msra.mxu0 0
      %3381 = vmatprep.subr.bf16.mxu0 0
      %3382 = vmatpush1.bf16.msra.mxu0 0
      %3383 = vmatprep.subr.bf16.mxu0 0
      %3384 = vmatpush1.bf16.msra.mxu0 0
      %3385 = vmatprep.mubr.bf16.mxu0 0
      %3386 = vmatmul.mubr.bf16.gmra.mrb[0].mxu0 %v3351
      %v3387 = vpop.f32.mrb[0].mxu0
      %v3388 = vadd.f32 0.0, %v3387
      %v3389 = vpop.f32.mrb[0].mxu0
      %v3390 = vpop.f32.mrb[0].mxu0
      %v3391 = vadd.f32 0.0, %v3390
      %v3392 = vpop.f32.mrb[0].mxu0
      %3393 = vdwg.mxu0
      %v3394 = vadd.f32 %v3262, %v3388
      %v3395 = vadd.f32 %v3263, %v3391
      %s3396 = scalar_lea.vmem %s2, 56
      %v3397 = vld [vmem:[%s3396] sm:$0xf]
      %v3398 = vld [vmem:[%s3396 + $0x4] sm:$0xf]
      %v3401 = vunpack.c.l.b16 %v3397
      %v3402 = vunpack.c.l.b16 %v3398
      %v3403 = vpack.c.b16 %v3402, %v3401
      %v3405 = vsel %vm2484, %v3403, 0
      %3407 = vmatprep.subr.bf16.mxu0 0
      %3408 = vmatpush1.bf16.msra.mxu0 %v2473
      %3409 = vmatprep.subr.bf16.mxu0 0
      %3410 = vmatpush1.bf16.msra.mxu0 %v2474
      %3411 = vmatprep.subr.bf16.mxu0 0
      %3412 = vmatpush1.bf16.msra.mxu0 %v2475
      %3413 = vmatprep.subr.bf16.mxu0 0
      %3414 = vmatpush1.bf16.msra.mxu0 %v2476
      %3415 = vmatprep.subr.bf16.mxu0 0
      %3416 = vmatpush1.bf16.msra.mxu0 0
      %3417 = vmatprep.subr.bf16.mxu0 0
      %3418 = vmatpush1.bf16.msra.mxu0 0
      %3419 = vmatprep.subr.bf16.mxu0 0
      %3420 = vmatpush1.bf16.msra.mxu0 0
      %3421 = vmatprep.subr.bf16.mxu0 0
      %3422 = vmatpush1.bf16.msra.mxu0 0
      %3423 = vmatprep.subr.bf16.mxu0 0
      %3424 = vmatpush1.bf16.msra.mxu0 0
      %3425 = vmatprep.subr.bf16.mxu0 0
      %3426 = vmatpush1.bf16.msra.mxu0 0
      %3427 = vmatprep.subr.bf16.mxu0 0
      %3428 = vmatpush1.bf16.msra.mxu0 0
      %3429 = vmatprep.subr.bf16.mxu0 0
      %3430 = vmatpush1.bf16.msra.mxu0 0
      %3431 = vmatprep.subr.bf16.mxu0 0
      %3432 = vmatpush1.bf16.msra.mxu0 0
      %3433 = vmatprep.subr.bf16.mxu0 0
      %3434 = vmatpush1.bf16.msra.mxu0 0
      %3435 = vmatprep.subr.bf16.mxu0 0
      %3436 = vmatpush1.bf16.msra.mxu0 0
      %3437 = vmatprep.subr.bf16.mxu0 0
      %3438 = vmatpush1.bf16.msra.mxu0 0
      %3439 = vmatprep.mubr.bf16.mxu0 0
      %3440 = vmatmul.mubr.bf16.gmra.mrb[0].mxu0 %v3405
      %v3441 = vpop.f32.mrb[0].mxu0
      %v3442 = vadd.f32 0.0, %v3441
      %v3443 = vpop.f32.mrb[0].mxu0
      %v3444 = vpop.f32.mrb[0].mxu0
      %v3445 = vadd.f32 0.0, %v3444
      %v3446 = vpop.f32.mrb[0].mxu0
      %3447 = vdwg.mxu0
      %v3448 = vpack.c.bf16 %v3445, %v3442
      %s3449 = scalar_lea.vmem %s444, 224
      %v3450 = vld [vmem:[%s3449] sm:$0xf]
      %v3451 = vld [vmem:[%s3449 + $0x4] sm:$0xf]
      %v3452 = vld [vmem:[%s3449 + $0x8] sm:$0xf]
      %v3453 = vld [vmem:[%s3449 + $0xc] sm:$0xf]
      %v3454 = vld [vmem:[%s3449 + $0x10] sm:$0xf]
      %v3455 = vld [vmem:[%s3449 + $0x14] sm:$0xf]
      %v3456 = vld [vmem:[%s3449 + $0x18] sm:$0xf]
      %v3457 = vld [vmem:[%s3449 + $0x1c] sm:$0xf]
      %v3466 = vunpack.c.l.b16 %v3450
      %v3467 = vunpack.c.l.b16 %v3451
      %v3468 = vunpack.c.l.b16 %v3452
      %v3469 = vunpack.c.l.b16 %v3453
      %v3470 = vunpack.c.l.b16 %v3454
      %v3471 = vunpack.c.l.b16 %v3455
      %v3472 = vunpack.c.l.b16 %v3456
      %v3473 = vunpack.c.l.b16 %v3457
      %v3474 = vpack.c.b16 %v3467, %v3466
      %v3475 = vpack.c.b16 %v3469, %v3468
      %v3476 = vpack.c.b16 %v3471, %v3470
      %v3477 = vpack.c.b16 %v3473, %v3472
      %v3483 = vsel %vm2484, %v3448, 0
      %3485 = vmatprep.subr.bf16.mxu0 0
      %3486 = vmatpush1.bf16.msra.mxu0 %v3474
      %3487 = vmatprep.subr.bf16.mxu0 0
      %3488 = vmatpush1.bf16.msra.mxu0 %v3475
      %3489 = vmatprep.subr.bf16.mxu0 0
      %3490 = vmatpush1.bf16.msra.mxu0 %v3476
      %3491 = vmatprep.subr.bf16.mxu0 0
      %3492 = vmatpush1.bf16.msra.mxu0 %v3477
      %3493 = vmatprep.subr.bf16.mxu0 0
      %3494 = vmatpush1.bf16.msra.mxu0 0
      %3495 = vmatprep.subr.bf16.mxu0 0
      %3496 = vmatpush1.bf16.msra.mxu0 0
      %3497 = vmatprep.subr.bf16.mxu0 0
      %3498 = vmatpush1.bf16.msra.mxu0 0
      %3499 = vmatprep.subr.bf16.mxu0 0
      %3500 = vmatpush1.bf16.msra.mxu0 0
      %3501 = vmatprep.subr.bf16.mxu0 0
      %3502 = vmatpush1.bf16.msra.mxu0 0
      %3503 = vmatprep.subr.bf16.mxu0 0
      %3504 = vmatpush1.bf16.msra.mxu0 0
      %3505 = vmatprep.subr.bf16.mxu0 0
      %3506 = vmatpush1.bf16.msra.mxu0 0
      %3507 = vmatprep.subr.bf16.mxu0 0
      %3508 = vmatpush1.bf16.msra.mxu0 0
      %3509 = vmatprep.subr.bf16.mxu0 0
      %3510 = vmatpush1.bf16.msra.mxu0 0
      %3511 = vmatprep.subr.bf16.mxu0 0
      %3512 = vmatpush1.bf16.msra.mxu0 0
      %3513 = vmatprep.subr.bf16.mxu0 0
      %3514 = vmatpush1.bf16.msra.mxu0 0
      %3515 = vmatprep.subr.bf16.mxu0 0
      %3516 = vmatpush1.bf16.msra.mxu0 0
      %3517 = vmatprep.mubr.bf16.mxu0 0
      %3518 = vmatmul.mubr.bf16.gmra.mrb[0].mxu0 %v3483
      %v3519 = vpop.f32.mrb[0].mxu0
      %v3520 = vadd.f32 0.0, %v3519
      %v3521 = vpop.f32.mrb[0].mxu0
      %v3522 = vpop.f32.mrb[0].mxu0
      %v3523 = vadd.f32 0.0, %v3522
      %v3524 = vpop.f32.mrb[0].mxu0
      %3525 = vdwg.mxu0
      %v3526 = vadd.f32 %v3394, %v3520
      %v3527 = vadd.f32 %v3395, %v3523
      %s3528 = scalar_lea.vmem %s2, 64
      %v3529 = vld [vmem:[%s3528] sm:$0xf]
      %v3530 = vld [vmem:[%s3528 + $0x4] sm:$0xf]
      %v3533 = vunpack.c.l.b16 %v3529
      %v3534 = vunpack.c.l.b16 %v3530
      %v3535 = vpack.c.b16 %v3534, %v3533
      %v3537 = vsel %vm2484, %v3535, 0
      %3539 = vmatprep.subr.bf16.mxu0 0
      %3540 = vmatpush1.bf16.msra.mxu0 %v2473
      %3541 = vmatprep.subr.bf16.mxu0 0
      %3542 = vmatpush1.bf16.msra.mxu0 %v2474
      %3543 = vmatprep.subr.bf16.mxu0 0
      %3544 = vmatpush1.bf16.msra.mxu0 %v2475
      %3545 = vmatprep.subr.bf16.mxu0 0
      %3546 = vmatpush1.bf16.msra.mxu0 %v2476
      %3547 = vmatprep.subr.bf16.mxu0 0
      %3548 = vmatpush1.bf16.msra.mxu0 0
      %3549 = vmatprep.subr.bf16.mxu0 0
      %3550 = vmatpush1.bf16.msra.mxu0 0
      %3551 = vmatprep.subr.bf16.mxu0 0
      %3552 = vmatpush1.bf16.msra.mxu0 0
      %3553 = vmatprep.subr.bf16.mxu0 0
      %3554 = vmatpush1.bf16.msra.mxu0 0
      %3555 = vmatprep.subr.bf16.mxu0 0
      %3556 = vmatpush1.bf16.msra.mxu0 0
      %3557 = vmatprep.subr.bf16.mxu0 0
      %3558 = vmatpush1.bf16.msra.mxu0 0
      %3559 = vmatprep.subr.bf16.mxu0 0
      %3560 = vmatpush1.bf16.msra.mxu0 0
      %3561 = vmatprep.subr.bf16.mxu0 0
      %3562 = vmatpush1.bf16.msra.mxu0 0
      %3563 = vmatprep.subr.bf16.mxu0 0
      %3564 = vmatpush1.bf16.msra.mxu0 0
      %3565 = vmatprep.subr.bf16.mxu0 0
      %3566 = vmatpush1.bf16.msra.mxu0 0
      %3567 = vmatprep.subr.bf16.mxu0 0
      %3568 = vmatpush1.bf16.msra.mxu0 0
      %3569 = vmatprep.subr.bf16.mxu0 0
      %3570 = vmatpush1.bf16.msra.mxu0 0
      %3571 = vmatprep.mubr.bf16.mxu0 0
      %3572 = vmatmul.mubr.bf16.gmra.mrb[0].mxu0 %v3537
      %v3573 = vpop.f32.mrb[0].mxu0
      %v3574 = vadd.f32 0.0, %v3573
      %v3575 = vpop.f32.mrb[0].mxu0
      %v3576 = vpop.f32.mrb[0].mxu0
      %v3577 = vadd.f32 0.0, %v3576
      %v3578 = vpop.f32.mrb[0].mxu0
      %3579 = vdwg.mxu0
      %v3580 = vpack.c.bf16 %v3577, %v3574
      %s3581 = scalar_lea.vmem %s444, 256
      %v3582 = vld [vmem:[%s3581] sm:$0xf]
      %v3583 = vld [vmem:[%s3581 + $0x4] sm:$0xf]
      %v3584 = vld [vmem:[%s3581 + $0x8] sm:$0xf]
      %v3585 = vld [vmem:[%s3581 + $0xc] sm:$0xf]
      %v3586 = vld [vmem:[%s3581 + $0x10] sm:$0xf]
      %v3587 = vld [vmem:[%s3581 + $0x14] sm:$0xf]
      %v3588 = vld [vmem:[%s3581 + $0x18] sm:$0xf]
      %v3589 = vld [vmem:[%s3581 + $0x1c] sm:$0xf]
      %v3598 = vunpack.c.l.b16 %v3582
      %v3599 = vunpack.c.l.b16 %v3583
      %v3600 = vunpack.c.l.b16 %v3584
      %v3601 = vunpack.c.l.b16 %v3585
      %v3602 = vunpack.c.l.b16 %v3586
      %v3603 = vunpack.c.l.b16 %v3587
      %v3604 = vunpack.c.l.b16 %v3588
      %v3605 = vunpack.c.l.b16 %v3589
      %v3606 = vpack.c.b16 %v3599, %v3598
      %v3607 = vpack.c.b16 %v3601, %v3600
      %v3608 = vpack.c.b16 %v3603, %v3602
      %v3609 = vpack.c.b16 %v3605, %v3604
      %v3615 = vsel %vm2484, %v3580, 0
      %3617 = vmatprep.subr.bf16.mxu0 0
      %3618 = vmatpush1.bf16.msra.mxu0 %v3606
      %3619 = vmatprep.subr.bf16.mxu0 0
      %3620 = vmatpush1.bf16.msra.mxu0 %v3607
      %3621 = vmatprep.subr.bf16.mxu0 0
      %3622 = vmatpush1.bf16.msra.mxu0 %v3608
      %3623 = vmatprep.subr.bf16.mxu0 0
      %3624 = vmatpush1.bf16.msra.mxu0 %v3609
      %3625 = vmatprep.subr.bf16.mxu0 0
      %3626 = vmatpush1.bf16.msra.mxu0 0
      %3627 = vmatprep.subr.bf16.mxu0 0
      %3628 = vmatpush1.bf16.msra.mxu0 0
      %3629 = vmatprep.subr.bf16.mxu0 0
      %3630 = vmatpush1.bf16.msra.mxu0 0
      %3631 = vmatprep.subr.bf16.mxu0 0
      %3632 = vmatpush1.bf16.msra.mxu0 0
      %3633 = vmatprep.subr.bf16.mxu0 0
      %3634 = vmatpush1.bf16.msra.mxu0 0
      %3635 = vmatprep.subr.bf16.mxu0 0
      %3636 = vmatpush1.bf16.msra.mxu0 0
      %3637 = vmatprep.subr.bf16.mxu0 0
      %3638 = vmatpush1.bf16.msra.mxu0 0
      %3639 = vmatprep.subr.bf16.mxu0 0
      %3640 = vmatpush1.bf16.msra.mxu0 0
      %3641 = vmatprep.subr.bf16.mxu0 0
      %3642 = vmatpush1.bf16.msra.mxu0 0
      %3643 = vmatprep.subr.bf16.mxu0 0
      %3644 = vmatpush1.bf16.msra.mxu0 0
      %3645 = vmatprep.subr.bf16.mxu0 0
      %3646 = vmatpush1.bf16.msra.mxu0 0
      %3647 = vmatprep.subr.bf16.mxu0 0
      %3648 = vmatpush1.bf16.msra.mxu0 0
      %3649 = vmatprep.mubr.bf16.mxu0 0
      %3650 = vmatmul.mubr.bf16.gmra.mrb[0].mxu0 %v3615
      %v3651 = vpop.f32.mrb[0].mxu0
      %v3652 = vadd.f32 0.0, %v3651
      %v3653 = vpop.f32.mrb[0].mxu0
      %v3654 = vpop.f32.mrb[0].mxu0
      %v3655 = vadd.f32 0.0, %v3654
      %v3656 = vpop.f32.mrb[0].mxu0
      %3657 = vdwg.mxu0
      %v3658 = vadd.f32 %v3526, %v3652
      %v3659 = vadd.f32 %v3527, %v3655
      %v3660 = vld [vmem:[%s455] sm:$0x1]
      %v3662 = vlaneseq
      %v3663 = vshrl.u32 %v3662, 7
      %v3664 = vsub.s32 0, %v3663
      %v3665 = vrot.slane %v3660, %v3664
      %v3667 = vadd.f32 %v3658, %v3665
      %v3668 = vadd.f32 %v3659, %v3665
      %v3669 = vmax.f32 %v3667, 0.0
      %v3670 = vmax.f32 %v3668, 0.0
      %v3671 = vpack.c.bf16 %v3670, %v3669
      %v3672 = vld [vmem:[%s3] sm:$0x3]
      %vm3673 = vcmask 130048
      %v3675 = vsel %vm3673, %v3672, 0
      %3677 = vmatprep.subr.bf16.mxu0 0
      %3678 = vmatpush1.bf16.msra.mxu0 %v3671
      %3679 = vmatprep.subr.bf16.mxu0 0
      %3680 = vmatpush1.bf16.msra.mxu0 0
      %3681 = vmatprep.subr.bf16.mxu0 0
      %3682 = vmatpush1.bf16.msra.mxu0 0
      %3683 = vmatprep.subr.bf16.mxu0 0
      %3684 = vmatpush1.bf16.msra.mxu0 0
      %3685 = vmatprep.subr.bf16.mxu0 0
      %3686 = vmatpush1.bf16.msra.mxu0 0
      %3687 = vmatprep.subr.bf16.mxu0 0
      %3688 = vmatpush1.bf16.msra.mxu0 0
      %3689 = vmatprep.subr.bf16.mxu0 0
      %3690 = vmatpush1.bf16.msra.mxu0 0
      %3691 = vmatprep.subr.bf16.mxu0 0
      %3692 = vmatpush1.bf16.msra.mxu0 0
      %3693 = vmatprep.subr.bf16.mxu0 0
      %3694 = vmatpush1.bf16.msra.mxu0 0
      %3695 = vmatprep.subr.bf16.mxu0 0
      %3696 = vmatpush1.bf16.msra.mxu0 0
      %3697 = vmatprep.subr.bf16.mxu0 0
      %3698 = vmatpush1.bf16.msra.mxu0 0
      %3699 = vmatprep.subr.bf16.mxu0 0
      %3700 = vmatpush1.bf16.msra.mxu0 0
      %3701 = vmatprep.subr.bf16.mxu0 0
      %3702 = vmatpush1.bf16.msra.mxu0 0
      %3703 = vmatprep.subr.bf16.mxu0 0
      %3704 = vmatpush1.bf16.msra.mxu0 0
      %3705 = vmatprep.subr.bf16.mxu0 0
      %3706 = vmatpush1.bf16.msra.mxu0 0
      %3707 = vmatprep.subr.bf16.mxu0 0
      %3708 = vmatpush1.bf16.msra.mxu0 0
      %3709 = vmatprep.mubr.bf16.mxu0 0
      %3710 = vmatmul.mubr.bf16.gmra.mrb[0].mxu0 %v3675
      %v3711 = vpop.f32.mrb[0].mxu0
      %v3712 = vadd.f32 0.0, %v3711
      %v3713 = vpop.f32.mrb[0].mxu0
      %v3714 = vpop.f32.mrb[0].mxu0
      %v3715 = vpop.f32.mrb[0].mxu0
      %3716 = vdwg.mxu0
      %v3717 = vpack.c.bf16 %v3712, %v3712
      %v3718 = vld [vmem:[%s449] sm:$0xff]
      %v3719 = vld [vmem:[%s449 + $0x8] sm:$0xff]
      %v3720 = vld [vmem:[%s449 + $0x10] sm:$0xff]
      %v3721 = vld [vmem:[%s449 + $0x18] sm:$0xff]
      %v3722 = vld [vmem:[%s449 + $0x20] sm:$0xff]
      %v3723 = vld [vmem:[%s449 + $0x28] sm:$0xff]
      %v3724 = vld [vmem:[%s449 + $0x30] sm:$0xff]
      %v3725 = vld [vmem:[%s449 + $0x38] sm:$0xff]
      %v3726 = vld [vmem:[%s449 + $0x40] sm:$0xff]
      %v3727 = vld [vmem:[%s449 + $0x48] sm:$0xff]
      %v3728 = vld [vmem:[%s449 + $0x50] sm:$0xff]
      %v3729 = vld [vmem:[%s449 + $0x58] sm:$0xff]
      %v3730 = vld [vmem:[%s449 + $0x60] sm:$0xff]
      %v3731 = vld [vmem:[%s449 + $0x68] sm:$0xff]
      %v3732 = vld [vmem:[%s449 + $0x70] sm:$0xff]
      %v3733 = vld [vmem:[%s449 + $0x78] sm:$0xff]
      %s3734 = scalar_lea.vmem %s3, 2
      %v3735 = vld [vmem:[%s3734] sm:$0x3]
      %v3737 = vsel %vm3673, %v3735, 0
      %3739 = vmatprep.subr.bf16.mxu0 0
      %3740 = vmatpush1.bf16.msra.mxu0 %v3671
      %3741 = vmatprep.subr.bf16.mxu0 0
      %3742 = vmatpush1.bf16.msra.mxu0 0
      %3743 = vmatprep.subr.bf16.mxu0 0
      %3744 = vmatpush1.bf16.msra.mxu0 0
      %3745 = vmatprep.subr.bf16.mxu0 0
      %3746 = vmatpush1.bf16.msra.mxu0 0
      %3747 = vmatprep.subr.bf16.mxu0 0
      %3748 = vmatpush1.bf16.msra.mxu0 0
      %3749 = vmatprep.subr.bf16.mxu0 0
      %3750 = vmatpush1.bf16.msra.mxu0 0
      %3751 = vmatprep.subr.bf16.mxu0 0
      %3752 = vmatpush1.bf16.msra.mxu0 0
      %3753 = vmatprep.subr.bf16.mxu0 0
      %3754 = vmatpush1.bf16.msra.mxu0 0
      %3755 = vmatprep.subr.bf16.mxu0 0
      %3756 = vmatpush1.bf16.msra.mxu0 0
      %3757 = vmatprep.subr.bf16.mxu0 0
      %3758 = vmatpush1.bf16.msra.mxu0 0
      %3759 = vmatprep.subr.bf16.mxu0 0
      %3760 = vmatpush1.bf16.msra.mxu0 0
      %3761 = vmatprep.subr.bf16.mxu0 0
      %3762 = vmatpush1.bf16.msra.mxu0 0
      %3763 = vmatprep.subr.bf16.mxu0 0
      %3764 = vmatpush1.bf16.msra.mxu0 0
      %3765 = vmatprep.subr.bf16.mxu0 0
      %3766 = vmatpush1.bf16.msra.mxu0 0
      %3767 = vmatprep.subr.bf16.mxu0 0
      %3768 = vmatpush1.bf16.msra.mxu0 0
      %3769 = vmatprep.subr.bf16.mxu0 0
      %3770 = vmatpush1.bf16.msra.mxu0 0
      %3771 = vmatprep.mubr.bf16.mxu0 0
      %3772 = vmatmul.mubr.bf16.gmra.mrb[0].mxu0 %v3737
      %v3773 = vpop.f32.mrb[0].mxu0
      %v3774 = vadd.f32 0.0, %v3773
      %v3775 = vpop.f32.mrb[0].mxu0
      %v3776 = vpop.f32.mrb[0].mxu0
      %v3777 = vpop.f32.mrb[0].mxu0
      %3778 = vdwg.mxu0
      %v3779 = vpack.c.bf16 %v3774, %v3774
      %s3780 = scalar_lea.vmem %s449, 128
      %v3781 = vld [vmem:[%s3780] sm:$0xff]
      %v3782 = vld [vmem:[%s3780 + $0x8] sm:$0xff]
      %v3783 = vld [vmem:[%s3780 + $0x10] sm:$0xff]
      %v3784 = vld [vmem:[%s3780 + $0x18] sm:$0xff]
      %v3785 = vld [vmem:[%s3780 + $0x20] sm:$0xff]
      %v3786 = vld [vmem:[%s3780 + $0x28] sm:$0xff]
      %v3787 = vld [vmem:[%s3780 + $0x30] sm:$0xff]
      %v3788 = vld [vmem:[%s3780 + $0x38] sm:$0xff]
      %v3789 = vld [vmem:[%s3780 + $0x40] sm:$0xff]
      %v3790 = vld [vmem:[%s3780 + $0x48] sm:$0xff]
      %v3791 = vld [vmem:[%s3780 + $0x50] sm:$0xff]
      %v3792 = vld [vmem:[%s3780 + $0x58] sm:$0xff]
      %v3793 = vld [vmem:[%s3780 + $0x60] sm:$0xff]
      %v3794 = vld [vmem:[%s3780 + $0x68] sm:$0xff]
      %v3795 = vld [vmem:[%s3780 + $0x70] sm:$0xff]
      %v3796 = vld [vmem:[%s3780 + $0x78] sm:$0xff]
      %v3813 = vunpack.c.l.b16 %v3781
      %v3814 = vunpack.c.h.b16 %v3781
      %v3815 = vunpack.c.l.b16 %v3782
      %v3816 = vunpack.c.h.b16 %v3782
      %v3817 = vunpack.c.l.b16 %v3783
      %v3818 = vunpack.c.h.b16 %v3783
      %v3819 = vunpack.c.l.b16 %v3784
      %v3820 = vunpack.c.h.b16 %v3784
      %v3821 = vunpack.c.l.b16 %v3785
      %v3822 = vunpack.c.h.b16 %v3785
      %v3823 = vunpack.c.l.b16 %v3786
      %v3824 = vunpack.c.h.b16 %v3786
      %v3825 = vunpack.c.l.b16 %v3787
      %v3826 = vunpack.c.h.b16 %v3787
      %v3827 = vunpack.c.l.b16 %v3788
      %v3828 = vunpack.c.h.b16 %v3788
      %v3829 = vunpack.c.l.b16 %v3789
      %v3830 = vunpack.c.h.b16 %v3789
      %v3831 = vunpack.c.l.b16 %v3790
      %v3832 = vunpack.c.h.b16 %v3790
      %v3833 = vunpack.c.l.b16 %v3791
      %v3834 = vunpack.c.h.b16 %v3791
      %v3835 = vunpack.c.l.b16 %v3792
      %v3836 = vunpack.c.h.b16 %v3792
      %v3837 = vunpack.c.l.b16 %v3793
      %v3838 = vunpack.c.h.b16 %v3793
      %v3839 = vunpack.c.l.b16 %v3794
      %v3840 = vunpack.c.h.b16 %v3794
      %v3841 = vunpack.c.l.b16 %v3795
      %v3842 = vunpack.c.h.b16 %v3795
      %v3843 = vunpack.c.l.b16 %v3796
      %v3844 = vunpack.c.h.b16 %v3796
      %v3845 = vpack.c.b16 %v3815, %v3813
      %v3846 = vpack.c.b16 %v3816, %v3814
      %v3847 = vpack.c.b16 %v3819, %v3817
      %v3848 = vpack.c.b16 %v3820, %v3818
      %v3849 = vpack.c.b16 %v3823, %v3821
      %v3850 = vpack.c.b16 %v3824, %v3822
      %v3851 = vpack.c.b16 %v3827, %v3825
      %v3852 = vpack.c.b16 %v3828, %v3826
      %v3853 = vpack.c.b16 %v3831, %v3829
      %v3854 = vpack.c.b16 %v3832, %v3830
      %v3855 = vpack.c.b16 %v3835, %v3833
      %v3856 = vpack.c.b16 %v3836, %v3834
      %v3857 = vpack.c.b16 %v3839, %v3837
      %v3858 = vpack.c.b16 %v3840, %v3838
      %v3859 = vpack.c.b16 %v3843, %v3841
      %v3860 = vpack.c.b16 %v3844, %v3842
      %3877 = vmatprep.subr.bf16.mxu0 %v3846
      %3878 = vmatpush1.bf16.msra.mxu0 %v3845
      %3879 = vmatprep.subr.bf16.mxu0 %v3848
      %3880 = vmatpush1.bf16.msra.mxu0 %v3847
      %3881 = vmatprep.subr.bf16.mxu0 %v3850
      %3882 = vmatpush1.bf16.msra.mxu0 %v3849
      %3883 = vmatprep.subr.bf16.mxu0 %v3852
      %3884 = vmatpush1.bf16.msra.mxu0 %v3851
      %3885 = vmatprep.subr.bf16.mxu0 %v3854
      %3886 = vmatpush1.bf16.msra.mxu0 %v3853
      %3887 = vmatprep.subr.bf16.mxu0 %v3856
      %3888 = vmatpush1.bf16.msra.mxu0 %v3855
      %3889 = vmatprep.subr.bf16.mxu0 %v3858
      %3890 = vmatpush1.bf16.msra.mxu0 %v3857
      %3891 = vmatprep.subr.bf16.mxu0 %v3860
      %3892 = vmatpush1.bf16.msra.mxu0 %v3859
      %3893 = vmatprep.subr.bf16.mxu0 0
      %3894 = vmatpush1.bf16.msra.mxu0 0
      %3895 = vmatprep.subr.bf16.mxu0 0
      %3896 = vmatpush1.bf16.msra.mxu0 0
      %3897 = vmatprep.subr.bf16.mxu0 0
      %3898 = vmatpush1.bf16.msra.mxu0 0
      %3899 = vmatprep.subr.bf16.mxu0 0
      %3900 = vmatpush1.bf16.msra.mxu0 0
      %3901 = vmatprep.subr.bf16.mxu0 0
      %3902 = vmatpush1.bf16.msra.mxu0 0
      %3903 = vmatprep.subr.bf16.mxu0 0
      %3904 = vmatpush1.bf16.msra.mxu0 0
      %3905 = vmatprep.subr.bf16.mxu0 0
      %3906 = vmatpush1.bf16.msra.mxu0 0
      %3907 = vmatprep.subr.bf16.mxu0 0
      %3908 = vmatpush1.bf16.msra.mxu0 0
      %3909 = vmatprep.mubr.bf16.mxu0 0
      %3910 = vmatmul.mubr.bf16.gmra.mrb[0].mxu0 %v3779
      %v3911 = vpop.f32.mrb[0].mxu0
      %v3912 = vadd.f32 0.0, %v3911
      %v3913 = vpop.f32.mrb[0].mxu0
      %v3914 = vadd.f32 0.0, %v3913
      %v3915 = vpop.f32.mrb[0].mxu0
      %v3916 = vpop.f32.mrb[0].mxu0
      %3917 = vdwg.mxu0
      %v3934 = vunpack.c.l.b16 %v3718
      %v3935 = vunpack.c.h.b16 %v3718
      %v3936 = vunpack.c.l.b16 %v3719
      %v3937 = vunpack.c.h.b16 %v3719
      %v3938 = vunpack.c.l.b16 %v3720
      %v3939 = vunpack.c.h.b16 %v3720
      %v3940 = vunpack.c.l.b16 %v3721
      %v3941 = vunpack.c.h.b16 %v3721
      %v3942 = vunpack.c.l.b16 %v3722
      %v3943 = vunpack.c.h.b16 %v3722
      %v3944 = vunpack.c.l.b16 %v3723
      %v3945 = vunpack.c.h.b16 %v3723
      %v3946 = vunpack.c.l.b16 %v3724
      %v3947 = vunpack.c.h.b16 %v3724
      %v3948 = vunpack.c.l.b16 %v3725
      %v3949 = vunpack.c.h.b16 %v3725
      %v3950 = vunpack.c.l.b16 %v3726
      %v3951 = vunpack.c.h.b16 %v3726
      %v3952 = vunpack.c.l.b16 %v3727
      %v3953 = vunpack.c.h.b16 %v3727
      %v3954 = vunpack.c.l.b16 %v3728
      %v3955 = vunpack.c.h.b16 %v3728
      %v3956 = vunpack.c.l.b16 %v3729
      %v3957 = vunpack.c.h.b16 %v3729
      %v3958 = vunpack.c.l.b16 %v3730
      %v3959 = vunpack.c.h.b16 %v3730
      %v3960 = vunpack.c.l.b16 %v3731
      %v3961 = vunpack.c.h.b16 %v3731
      %v3962 = vunpack.c.l.b16 %v3732
      %v3963 = vunpack.c.h.b16 %v3732
      %v3964 = vunpack.c.l.b16 %v3733
      %v3965 = vunpack.c.h.b16 %v3733
      %v3966 = vpack.c.b16 %v3936, %v3934
      %v3967 = vpack.c.b16 %v3937, %v3935
      %v3968 = vpack.c.b16 %v3940, %v3938
      %v3969 = vpack.c.b16 %v3941, %v3939
      %v3970 = vpack.c.b16 %v3944, %v3942
      %v3971 = vpack.c.b16 %v3945, %v3943
      %v3972 = vpack.c.b16 %v3948, %v3946
      %v3973 = vpack.c.b16 %v3949, %v3947
      %v3974 = vpack.c.b16 %v3952, %v3950
      %v3975 = vpack.c.b16 %v3953, %v3951
      %v3976 = vpack.c.b16 %v3956, %v3954
      %v3977 = vpack.c.b16 %v3957, %v3955
      %v3978 = vpack.c.b16 %v3960, %v3958
      %v3979 = vpack.c.b16 %v3961, %v3959
      %v3980 = vpack.c.b16 %v3964, %v3962
      %v3981 = vpack.c.b16 %v3965, %v3963
      %3998 = vmatprep.subr.bf16.mxu0 %v3967
      %3999 = vmatpush1.bf16.msra.mxu0 %v3966
      %4000 = vmatprep.subr.bf16.mxu0 %v3969
      %4001 = vmatpush1.bf16.msra.mxu0 %v3968
      %4002 = vmatprep.subr.bf16.mxu0 %v3971
      %4003 = vmatpush1.bf16.msra.mxu0 %v3970
      %4004 = vmatprep.subr.bf16.mxu0 %v3973
      %4005 = vmatpush1.bf16.msra.mxu0 %v3972
      %4006 = vmatprep.subr.bf16.mxu0 %v3975
      %4007 = vmatpush1.bf16.msra.mxu0 %v3974
      %4008 = vmatprep.subr.bf16.mxu0 %v3977
      %4009 = vmatpush1.bf16.msra.mxu0 %v3976
      %4010 = vmatprep.subr.bf16.mxu0 %v3979
      %4011 = vmatpush1.bf16.msra.mxu0 %v3978
      %4012 = vmatprep.subr.bf16.mxu0 %v3981
      %4013 = vmatpush1.bf16.msra.mxu0 %v3980
      %4014 = vmatprep.subr.bf16.mxu0 0
      %4015 = vmatpush1.bf16.msra.mxu0 0
      %4016 = vmatprep.subr.bf16.mxu0 0
      %4017 = vmatpush1.bf16.msra.mxu0 0
      %4018 = vmatprep.subr.bf16.mxu0 0
      %4019 = vmatpush1.bf16.msra.mxu0 0
      %4020 = vmatprep.subr.bf16.mxu0 0
      %4021 = vmatpush1.bf16.msra.mxu0 0
      %4022 = vmatprep.subr.bf16.mxu0 0
      %4023 = vmatpush1.bf16.msra.mxu0 0
      %4024 = vmatprep.subr.bf16.mxu0 0
      %4025 = vmatpush1.bf16.msra.mxu0 0
      %4026 = vmatprep.subr.bf16.mxu0 0
      %4027 = vmatpush1.bf16.msra.mxu0 0
      %4028 = vmatprep.subr.bf16.mxu0 0
      %4029 = vmatpush1.bf16.msra.mxu0 0
      %4030 = vmatprep.mubr.bf16.mxu0 0
      %4031 = vmatmul.mubr.bf16.gmra.mrb[0].mxu0 %v3717
      %v4032 = vpop.f32.mrb[0].mxu0
      %v4033 = vadd.f32 %v3912, %v4032
      %v4034 = vpop.f32.mrb[0].mxu0
      %v4035 = vadd.f32 %v3914, %v4034
      %v4036 = vpop.f32.mrb[0].mxu0
      %v4037 = vpop.f32.mrb[0].mxu0
      %4038 = vdwg.mxu0
      %s4039 = scalar_lea.vmem %s3, 4
      %v4040 = vld [vmem:[%s4039] sm:$0x3]
      %v4042 = vsel %vm3673, %v4040, 0
      %4044 = vmatprep.subr.bf16.mxu0 0
      %4045 = vmatpush1.bf16.msra.mxu0 %v3671
      %4046 = vmatprep.subr.bf16.mxu0 0
      %4047 = vmatpush1.bf16.msra.mxu0 0
      %4048 = vmatprep.subr.bf16.mxu0 0
      %4049 = vmatpush1.bf16.msra.mxu0 0
      %4050 = vmatprep.subr.bf16.mxu0 0
      %4051 = vmatpush1.bf16.msra.mxu0 0
      %4052 = vmatprep.subr.bf16.mxu0 0
      %4053 = vmatpush1.bf16.msra.mxu0 0
      %4054 = vmatprep.subr.bf16.mxu0 0
      %4055 = vmatpush1.bf16.msra.mxu0 0
      %4056 = vmatprep.subr.bf16.mxu0 0
      %4057 = vmatpush1.bf16.msra.mxu0 0
      %4058 = vmatprep.subr.bf16.mxu0 0
      %4059 = vmatpush1.bf16.msra.mxu0 0
      %4060 = vmatprep.subr.bf16.mxu0 0
      %4061 = vmatpush1.bf16.msra.mxu0 0
      %4062 = vmatprep.subr.bf16.mxu0 0
      %4063 = vmatpush1.bf16.msra.mxu0 0
      %4064 = vmatprep.subr.bf16.mxu0 0
      %4065 = vmatpush1.bf16.msra.mxu0 0
      %4066 = vmatprep.subr.bf16.mxu0 0
      %4067 = vmatpush1.bf16.msra.mxu0 0
      %4068 = vmatprep.subr.bf16.mxu0 0
      %4069 = vmatpush1.bf16.msra.mxu0 0
      %4070 = vmatprep.subr.bf16.mxu0 0
      %4071 = vmatpush1.bf16.msra.mxu0 0
      %4072 = vmatprep.subr.bf16.mxu0 0
      %4073 = vmatpush1.bf16.msra.mxu0 0
      %4074 = vmatprep.subr.bf16.mxu0 0
      %4075 = vmatpush1.bf16.msra.mxu0 0
      %4076 = vmatprep.mubr.bf16.mxu0 0
      %4077 = vmatmul.mubr.bf16.gmra.mrb[0].mxu0 %v4042
      %v4078 = vpop.f32.mrb[0].mxu0
      %v4079 = vadd.f32 0.0, %v4078
      %v4080 = vpop.f32.mrb[0].mxu0
      %v4081 = vpop.f32.mrb[0].mxu0
      %v4082 = vpop.f32.mrb[0].mxu0
      %4083 = vdwg.mxu0
      %v4084 = vpack.c.bf16 %v4079, %v4079
      %s4085 = scalar_lea.vmem %s449, 256
      %v4086 = vld [vmem:[%s4085] sm:$0xff]
      %v4087 = vld [vmem:[%s4085 + $0x8] sm:$0xff]
      %v4088 = vld [vmem:[%s4085 + $0x10] sm:$0xff]
      %v4089 = vld [vmem:[%s4085 + $0x18] sm:$0xff]
      %v4090 = vld [vmem:[%s4085 + $0x20] sm:$0xff]
      %v4091 = vld [vmem:[%s4085 + $0x28] sm:$0xff]
      %v4092 = vld [vmem:[%s4085 + $0x30] sm:$0xff]
      %v4093 = vld [vmem:[%s4085 + $0x38] sm:$0xff]
      %v4094 = vld [vmem:[%s4085 + $0x40] sm:$0xff]
      %v4095 = vld [vmem:[%s4085 + $0x48] sm:$0xff]
      %v4096 = vld [vmem:[%s4085 + $0x50] sm:$0xff]
      %v4097 = vld [vmem:[%s4085 + $0x58] sm:$0xff]
      %v4098 = vld [vmem:[%s4085 + $0x60] sm:$0xff]
      %v4099 = vld [vmem:[%s4085 + $0x68] sm:$0xff]
      %v4100 = vld [vmem:[%s4085 + $0x70] sm:$0xff]
      %v4101 = vld [vmem:[%s4085 + $0x78] sm:$0xff]
      %v4118 = vunpack.c.l.b16 %v4086
      %v4119 = vunpack.c.h.b16 %v4086
      %v4120 = vunpack.c.l.b16 %v4087
      %v4121 = vunpack.c.h.b16 %v4087
      %v4122 = vunpack.c.l.b16 %v4088
      %v4123 = vunpack.c.h.b16 %v4088
      %v4124 = vunpack.c.l.b16 %v4089
      %v4125 = vunpack.c.h.b16 %v4089
      %v4126 = vunpack.c.l.b16 %v4090
      %v4127 = vunpack.c.h.b16 %v4090
      %v4128 = vunpack.c.l.b16 %v4091
      %v4129 = vunpack.c.h.b16 %v4091
      %v4130 = vunpack.c.l.b16 %v4092
      %v4131 = vunpack.c.h.b16 %v4092
      %v4132 = vunpack.c.l.b16 %v4093
      %v4133 = vunpack.c.h.b16 %v4093
      %v4134 = vunpack.c.l.b16 %v4094
      %v4135 = vunpack.c.h.b16 %v4094
      %v4136 = vunpack.c.l.b16 %v4095
      %v4137 = vunpack.c.h.b16 %v4095
      %v4138 = vunpack.c.l.b16 %v4096
      %v4139 = vunpack.c.h.b16 %v4096
      %v4140 = vunpack.c.l.b16 %v4097
      %v4141 = vunpack.c.h.b16 %v4097
      %v4142 = vunpack.c.l.b16 %v4098
      %v4143 = vunpack.c.h.b16 %v4098
      %v4144 = vunpack.c.l.b16 %v4099
      %v4145 = vunpack.c.h.b16 %v4099
      %v4146 = vunpack.c.l.b16 %v4100
      %v4147 = vunpack.c.h.b16 %v4100
      %v4148 = vunpack.c.l.b16 %v4101
      %v4149 = vunpack.c.h.b16 %v4101
      %v4150 = vpack.c.b16 %v4120, %v4118
      %v4151 = vpack.c.b16 %v4121, %v4119
      %v4152 = vpack.c.b16 %v4124, %v4122
      %v4153 = vpack.c.b16 %v4125, %v4123
      %v4154 = vpack.c.b16 %v4128, %v4126
      %v4155 = vpack.c.b16 %v4129, %v4127
      %v4156 = vpack.c.b16 %v4132, %v4130
      %v4157 = vpack.c.b16 %v4133, %v4131
      %v4158 = vpack.c.b16 %v4136, %v4134
      %v4159 = vpack.c.b16 %v4137, %v4135
      %v4160 = vpack.c.b16 %v4140, %v4138
      %v4161 = vpack.c.b16 %v4141, %v4139
      %v4162 = vpack.c.b16 %v4144, %v4142
      %v4163 = vpack.c.b16 %v4145, %v4143
      %v4164 = vpack.c.b16 %v4148, %v4146
      %v4165 = vpack.c.b16 %v4149, %v4147
      %4182 = vmatprep.subr.bf16.mxu0 %v4151
      %4183 = vmatpush1.bf16.msra.mxu0 %v4150
      %4184 = vmatprep.subr.bf16.mxu0 %v4153
      %4185 = vmatpush1.bf16.msra.mxu0 %v4152
      %4186 = vmatprep.subr.bf16.mxu0 %v4155
      %4187 = vmatpush1.bf16.msra.mxu0 %v4154
      %4188 = vmatprep.subr.bf16.mxu0 %v4157
      %4189 = vmatpush1.bf16.msra.mxu0 %v4156
      %4190 = vmatprep.subr.bf16.mxu0 %v4159
      %4191 = vmatpush1.bf16.msra.mxu0 %v4158
      %4192 = vmatprep.subr.bf16.mxu0 %v4161
      %4193 = vmatpush1.bf16.msra.mxu0 %v4160
      %4194 = vmatprep.subr.bf16.mxu0 %v4163
      %4195 = vmatpush1.bf16.msra.mxu0 %v4162
      %4196 = vmatprep.subr.bf16.mxu0 %v4165
      %4197 = vmatpush1.bf16.msra.mxu0 %v4164
      %4198 = vmatprep.subr.bf16.mxu0 0
      %4199 = vmatpush1.bf16.msra.mxu0 0
      %4200 = vmatprep.subr.bf16.mxu0 0
      %4201 = vmatpush1.bf16.msra.mxu0 0
      %4202 = vmatprep.subr.bf16.mxu0 0
      %4203 = vmatpush1.bf16.msra.mxu0 0
      %4204 = vmatprep.subr.bf16.mxu0 0
      %4205 = vmatpush1.bf16.msra.mxu0 0
      %4206 = vmatprep.subr.bf16.mxu0 0
      %4207 = vmatpush1.bf16.msra.mxu0 0
      %4208 = vmatprep.subr.bf16.mxu0 0
      %4209 = vmatpush1.bf16.msra.mxu0 0
      %4210 = vmatprep.subr.bf16.mxu0 0
      %4211 = vmatpush1.bf16.msra.mxu0 0
      %4212 = vmatprep.subr.bf16.mxu0 0
      %4213 = vmatpush1.bf16.msra.mxu0 0
      %4214 = vmatprep.mubr.bf16.mxu0 0
      %4215 = vmatmul.mubr.bf16.gmra.mrb[0].mxu0 %v4084
      %v4216 = vpop.f32.mrb[0].mxu0
      %v4217 = vadd.f32 0.0, %v4216
      %v4218 = vpop.f32.mrb[0].mxu0
      %v4219 = vadd.f32 0.0, %v4218
      %v4220 = vpop.f32.mrb[0].mxu0
      %v4221 = vpop.f32.mrb[0].mxu0
      %4222 = vdwg.mxu0
      %v4223 = vadd.f32 %v4033, %v4217
      %v4224 = vadd.f32 %v4035, %v4219
      %s4225 = scalar_lea.vmem %s3, 6
      %v4226 = vld [vmem:[%s4225] sm:$0x3]
      %v4228 = vsel %vm3673, %v4226, 0
      %4230 = vmatprep.subr.bf16.mxu0 0
      %4231 = vmatpush1.bf16.msra.mxu0 %v3671
      %4232 = vmatprep.subr.bf16.mxu0 0
      %4233 = vmatpush1.bf16.msra.mxu0 0
      %4234 = vmatprep.subr.bf16.mxu0 0
      %4235 = vmatpush1.bf16.msra.mxu0 0
      %4236 = vmatprep.subr.bf16.mxu0 0
      %4237 = vmatpush1.bf16.msra.mxu0 0
      %4238 = vmatprep.subr.bf16.mxu0 0
      %4239 = vmatpush1.bf16.msra.mxu0 0
      %4240 = vmatprep.subr.bf16.mxu0 0
      %4241 = vmatpush1.bf16.msra.mxu0 0
      %4242 = vmatprep.subr.bf16.mxu0 0
      %4243 = vmatpush1.bf16.msra.mxu0 0
      %4244 = vmatprep.subr.bf16.mxu0 0
      %4245 = vmatpush1.bf16.msra.mxu0 0
      %4246 = vmatprep.subr.bf16.mxu0 0
      %4247 = vmatpush1.bf16.msra.mxu0 0
      %4248 = vmatprep.subr.bf16.mxu0 0
      %4249 = vmatpush1.bf16.msra.mxu0 0
      %4250 = vmatprep.subr.bf16.mxu0 0
      %4251 = vmatpush1.bf16.msra.mxu0 0
      %4252 = vmatprep.subr.bf16.mxu0 0
      %4253 = vmatpush1.bf16.msra.mxu0 0
      %4254 = vmatprep.subr.bf16.mxu0 0
      %4255 = vmatpush1.bf16.msra.mxu0 0
      %4256 = vmatprep.subr.bf16.mxu0 0
      %4257 = vmatpush1.bf16.msra.mxu0 0
      %4258 = vmatprep.subr.bf16.mxu0 0
      %4259 = vmatpush1.bf16.msra.mxu0 0
      %4260 = vmatprep.subr.bf16.mxu0 0
      %4261 = vmatpush1.bf16.msra.mxu0 0
      %4262 = vmatprep.mubr.bf16.mxu0 0
      %4263 = vmatmul.mubr.bf16.gmra.mrb[0].mxu0 %v4228
      %v4264 = vpop.f32.mrb[0].mxu0
      %v4265 = vadd.f32 0.0, %v4264
      %v4266 = vpop.f32.mrb[0].mxu0
      %v4267 = vpop.f32.mrb[0].mxu0
      %v4268 = vpop.f32.mrb[0].mxu0
      %4269 = vdwg.mxu0
      %v4270 = vpack.c.bf16 %v4265, %v4265
      %s4271 = scalar_lea.vmem %s449, 384
      %v4272 = vld [vmem:[%s4271] sm:$0xff]
      %v4273 = vld [vmem:[%s4271 + $0x8] sm:$0xff]
      %v4274 = vld [vmem:[%s4271 + $0x10] sm:$0xff]
      %v4275 = vld [vmem:[%s4271 + $0x18] sm:$0xff]
      %v4276 = vld [vmem:[%s4271 + $0x20] sm:$0xff]
      %v4277 = vld [vmem:[%s4271 + $0x28] sm:$0xff]
      %v4278 = vld [vmem:[%s4271 + $0x30] sm:$0xff]
      %v4279 = vld [vmem:[%s4271 + $0x38] sm:$0xff]
      %v4280 = vld [vmem:[%s4271 + $0x40] sm:$0xff]
      %v4281 = vld [vmem:[%s4271 + $0x48] sm:$0xff]
      %v4282 = vld [vmem:[%s4271 + $0x50] sm:$0xff]
      %v4283 = vld [vmem:[%s4271 + $0x58] sm:$0xff]
      %v4284 = vld [vmem:[%s4271 + $0x60] sm:$0xff]
      %v4285 = vld [vmem:[%s4271 + $0x68] sm:$0xff]
      %v4286 = vld [vmem:[%s4271 + $0x70] sm:$0xff]
      %v4287 = vld [vmem:[%s4271 + $0x78] sm:$0xff]
      %v4304 = vunpack.c.l.b16 %v4272
      %v4305 = vunpack.c.h.b16 %v4272
      %v4306 = vunpack.c.l.b16 %v4273
      %v4307 = vunpack.c.h.b16 %v4273
      %v4308 = vunpack.c.l.b16 %v4274
      %v4309 = vunpack.c.h.b16 %v4274
      %v4310 = vunpack.c.l.b16 %v4275
      %v4311 = vunpack.c.h.b16 %v4275
      %v4312 = vunpack.c.l.b16 %v4276
      %v4313 = vunpack.c.h.b16 %v4276
      %v4314 = vunpack.c.l.b16 %v4277
      %v4315 = vunpack.c.h.b16 %v4277
      %v4316 = vunpack.c.l.b16 %v4278
      %v4317 = vunpack.c.h.b16 %v4278
      %v4318 = vunpack.c.l.b16 %v4279
      %v4319 = vunpack.c.h.b16 %v4279
      %v4320 = vunpack.c.l.b16 %v4280
      %v4321 = vunpack.c.h.b16 %v4280
      %v4322 = vunpack.c.l.b16 %v4281
      %v4323 = vunpack.c.h.b16 %v4281
      %v4324 = vunpack.c.l.b16 %v4282
      %v4325 = vunpack.c.h.b16 %v4282
      %v4326 = vunpack.c.l.b16 %v4283
      %v4327 = vunpack.c.h.b16 %v4283
      %v4328 = vunpack.c.l.b16 %v4284
      %v4329 = vunpack.c.h.b16 %v4284
      %v4330 = vunpack.c.l.b16 %v4285
      %v4331 = vunpack.c.h.b16 %v4285
      %v4332 = vunpack.c.l.b16 %v4286
      %v4333 = vunpack.c.h.b16 %v4286
      %v4334 = vunpack.c.l.b16 %v4287
      %v4335 = vunpack.c.h.b16 %v4287
      %v4336 = vpack.c.b16 %v4306, %v4304
      %v4337 = vpack.c.b16 %v4307, %v4305
      %v4338 = vpack.c.b16 %v4310, %v4308
      %v4339 = vpack.c.b16 %v4311, %v4309
      %v4340 = vpack.c.b16 %v4314, %v4312
      %v4341 = vpack.c.b16 %v4315, %v4313
      %v4342 = vpack.c.b16 %v4318, %v4316
      %v4343 = vpack.c.b16 %v4319, %v4317
      %v4344 = vpack.c.b16 %v4322, %v4320
      %v4345 = vpack.c.b16 %v4323, %v4321
      %v4346 = vpack.c.b16 %v4326, %v4324
      %v4347 = vpack.c.b16 %v4327, %v4325
      %v4348 = vpack.c.b16 %v4330, %v4328
      %v4349 = vpack.c.b16 %v4331, %v4329
      %v4350 = vpack.c.b16 %v4334, %v4332
      %v4351 = vpack.c.b16 %v4335, %v4333
      %4368 = vmatprep.subr.bf16.mxu0 %v4337
      %4369 = vmatpush1.bf16.msra.mxu0 %v4336
      %4370 = vmatprep.subr.bf16.mxu0 %v4339
      %4371 = vmatpush1.bf16.msra.mxu0 %v4338
      %4372 = vmatprep.subr.bf16.mxu0 %v4341
      %4373 = vmatpush1.bf16.msra.mxu0 %v4340
      %4374 = vmatprep.subr.bf16.mxu0 %v4343
      %4375 = vmatpush1.bf16.msra.mxu0 %v4342
      %4376 = vmatprep.subr.bf16.mxu0 %v4345
      %4377 = vmatpush1.bf16.msra.mxu0 %v4344
      %4378 = vmatprep.subr.bf16.mxu0 %v4347
      %4379 = vmatpush1.bf16.msra.mxu0 %v4346
      %4380 = vmatprep.subr.bf16.mxu0 %v4349
      %4381 = vmatpush1.bf16.msra.mxu0 %v4348
      %4382 = vmatprep.subr.bf16.mxu0 %v4351
      %4383 = vmatpush1.bf16.msra.mxu0 %v4350
      %4384 = vmatprep.subr.bf16.mxu0 0
      %4385 = vmatpush1.bf16.msra.mxu0 0
      %4386 = vmatprep.subr.bf16.mxu0 0
      %4387 = vmatpush1.bf16.msra.mxu0 0
      %4388 = vmatprep.subr.bf16.mxu0 0
      %4389 = vmatpush1.bf16.msra.mxu0 0
      %4390 = vmatprep.subr.bf16.mxu0 0
      %4391 = vmatpush1.bf16.msra.mxu0 0
      %4392 = vmatprep.subr.bf16.mxu0 0
      %4393 = vmatpush1.bf16.msra.mxu0 0
      %4394 = vmatprep.subr.bf16.mxu0 0
      %4395 = vmatpush1.bf16.msra.mxu0 0
      %4396 = vmatprep.subr.bf16.mxu0 0
      %4397 = vmatpush1.bf16.msra.mxu0 0
      %4398 = vmatprep.subr.bf16.mxu0 0
      %4399 = vmatpush1.bf16.msra.mxu0 0
      %4400 = vmatprep.mubr.bf16.mxu0 0
      %4401 = vmatmul.mubr.bf16.gmra.mrb[0].mxu0 %v4270
      %v4402 = vpop.f32.mrb[0].mxu0
      %v4403 = vadd.f32 0.0, %v4402
      %v4404 = vpop.f32.mrb[0].mxu0
      %v4405 = vadd.f32 0.0, %v4404
      %v4406 = vpop.f32.mrb[0].mxu0
      %v4407 = vpop.f32.mrb[0].mxu0
      %4408 = vdwg.mxu0
      %v4409 = vadd.f32 %v4223, %v4403
      %v4410 = vadd.f32 %v4224, %v4405
      %s4411 = scalar_lea.vmem %s3, 8
      %v4412 = vld [vmem:[%s4411] sm:$0x3]
      %v4414 = vsel %vm3673, %v4412, 0
      %4416 = vmatprep.subr.bf16.mxu0 0
      %4417 = vmatpush1.bf16.msra.mxu0 %v3671
      %4418 = vmatprep.subr.bf16.mxu0 0
      %4419 = vmatpush1.bf16.msra.mxu0 0
      %4420 = vmatprep.subr.bf16.mxu0 0
      %4421 = vmatpush1.bf16.msra.mxu0 0
      %4422 = vmatprep.subr.bf16.mxu0 0
      %4423 = vmatpush1.bf16.msra.mxu0 0
      %4424 = vmatprep.subr.bf16.mxu0 0
      %4425 = vmatpush1.bf16.msra.mxu0 0
      %4426 = vmatprep.subr.bf16.mxu0 0
      %4427 = vmatpush1.bf16.msra.mxu0 0
      %4428 = vmatprep.subr.bf16.mxu0 0
      %4429 = vmatpush1.bf16.msra.mxu0 0
      %4430 = vmatprep.subr.bf16.mxu0 0
      %4431 = vmatpush1.bf16.msra.mxu0 0
      %4432 = vmatprep.subr.bf16.mxu0 0
      %4433 = vmatpush1.bf16.msra.mxu0 0
      %4434 = vmatprep.subr.bf16.mxu0 0
      %4435 = vmatpush1.bf16.msra.mxu0 0
      %4436 = vmatprep.subr.bf16.mxu0 0
      %4437 = vmatpush1.bf16.msra.mxu0 0
      %4438 = vmatprep.subr.bf16.mxu0 0
      %4439 = vmatpush1.bf16.msra.mxu0 0
      %4440 = vmatprep.subr.bf16.mxu0 0
      %4441 = vmatpush1.bf16.msra.mxu0 0
      %4442 = vmatprep.subr.bf16.mxu0 0
      %4443 = vmatpush1.bf16.msra.mxu0 0
      %4444 = vmatprep.subr.bf16.mxu0 0
      %4445 = vmatpush1.bf16.msra.mxu0 0
      %4446 = vmatprep.subr.bf16.mxu0 0
      %4447 = vmatpush1.bf16.msra.mxu0 0
      %4448 = vmatprep.mubr.bf16.mxu0 0
      %4449 = vmatmul.mubr.bf16.gmra.mrb[0].mxu0 %v4414
      %v4450 = vpop.f32.mrb[0].mxu0
      %v4451 = vadd.f32 0.0, %v4450
      %v4452 = vpop.f32.mrb[0].mxu0
      %v4453 = vpop.f32.mrb[0].mxu0
      %v4454 = vpop.f32.mrb[0].mxu0
      %4455 = vdwg.mxu0
      %v4456 = vpack.c.bf16 %v4451, %v4451
      %s4457 = scalar_lea.vmem %s449, 512
      %v4458 = vld [vmem:[%s4457] sm:$0xff]
      %v4459 = vld [vmem:[%s4457 + $0x8] sm:$0xff]
      %v4460 = vld [vmem:[%s4457 + $0x10] sm:$0xff]
      %v4461 = vld [vmem:[%s4457 + $0x18] sm:$0xff]
      %v4462 = vld [vmem:[%s4457 + $0x20] sm:$0xff]
      %v4463 = vld [vmem:[%s4457 + $0x28] sm:$0xff]
      %v4464 = vld [vmem:[%s4457 + $0x30] sm:$0xff]
      %v4465 = vld [vmem:[%s4457 + $0x38] sm:$0xff]
      %v4466 = vld [vmem:[%s4457 + $0x40] sm:$0xff]
      %v4467 = vld [vmem:[%s4457 + $0x48] sm:$0xff]
      %v4468 = vld [vmem:[%s4457 + $0x50] sm:$0xff]
      %v4469 = vld [vmem:[%s4457 + $0x58] sm:$0xff]
      %v4470 = vld [vmem:[%s4457 + $0x60] sm:$0xff]
      %v4471 = vld [vmem:[%s4457 + $0x68] sm:$0xff]
      %v4472 = vld [vmem:[%s4457 + $0x70] sm:$0xff]
      %v4473 = vld [vmem:[%s4457 + $0x78] sm:$0xff]
      %v4490 = vunpack.c.l.b16 %v4458
      %v4491 = vunpack.c.h.b16 %v4458
      %v4492 = vunpack.c.l.b16 %v4459
      %v4493 = vunpack.c.h.b16 %v4459
      %v4494 = vunpack.c.l.b16 %v4460
      %v4495 = vunpack.c.h.b16 %v4460
      %v4496 = vunpack.c.l.b16 %v4461
      %v4497 = vunpack.c.h.b16 %v4461
      %v4498 = vunpack.c.l.b16 %v4462
      %v4499 = vunpack.c.h.b16 %v4462
      %v4500 = vunpack.c.l.b16 %v4463
      %v4501 = vunpack.c.h.b16 %v4463
      %v4502 = vunpack.c.l.b16 %v4464
      %v4503 = vunpack.c.h.b16 %v4464
      %v4504 = vunpack.c.l.b16 %v4465
      %v4505 = vunpack.c.h.b16 %v4465
      %v4506 = vunpack.c.l.b16 %v4466
      %v4507 = vunpack.c.h.b16 %v4466
      %v4508 = vunpack.c.l.b16 %v4467
      %v4509 = vunpack.c.h.b16 %v4467
      %v4510 = vunpack.c.l.b16 %v4468
      %v4511 = vunpack.c.h.b16 %v4468
      %v4512 = vunpack.c.l.b16 %v4469
      %v4513 = vunpack.c.h.b16 %v4469
      %v4514 = vunpack.c.l.b16 %v4470
      %v4515 = vunpack.c.h.b16 %v4470
      %v4516 = vunpack.c.l.b16 %v4471
      %v4517 = vunpack.c.h.b16 %v4471
      %v4518 = vunpack.c.l.b16 %v4472
      %v4519 = vunpack.c.h.b16 %v4472
      %v4520 = vunpack.c.l.b16 %v4473
      %v4521 = vunpack.c.h.b16 %v4473
      %v4522 = vpack.c.b16 %v4492, %v4490
      %v4523 = vpack.c.b16 %v4493, %v4491
      %v4524 = vpack.c.b16 %v4496, %v4494
      %v4525 = vpack.c.b16 %v4497, %v4495
      %v4526 = vpack.c.b16 %v4500, %v4498
      %v4527 = vpack.c.b16 %v4501, %v4499
      %v4528 = vpack.c.b16 %v4504, %v4502
      %v4529 = vpack.c.b16 %v4505, %v4503
      %v4530 = vpack.c.b16 %v4508, %v4506
      %v4531 = vpack.c.b16 %v4509, %v4507
      %v4532 = vpack.c.b16 %v4512, %v4510
      %v4533 = vpack.c.b16 %v4513, %v4511
      %v4534 = vpack.c.b16 %v4516, %v4514
      %v4535 = vpack.c.b16 %v4517, %v4515
      %v4536 = vpack.c.b16 %v4520, %v4518
      %v4537 = vpack.c.b16 %v4521, %v4519
      %4554 = vmatprep.subr.bf16.mxu0 %v4523
      %4555 = vmatpush1.bf16.msra.mxu0 %v4522
      %4556 = vmatprep.subr.bf16.mxu0 %v4525
      %4557 = vmatpush1.bf16.msra.mxu0 %v4524
      %4558 = vmatprep.subr.bf16.mxu0 %v4527
      %4559 = vmatpush1.bf16.msra.mxu0 %v4526
      %4560 = vmatprep.subr.bf16.mxu0 %v4529
      %4561 = vmatpush1.bf16.msra.mxu0 %v4528
      %4562 = vmatprep.subr.bf16.mxu0 %v4531
      %4563 = vmatpush1.bf16.msra.mxu0 %v4530
      %4564 = vmatprep.subr.bf16.mxu0 %v4533
      %4565 = vmatpush1.bf16.msra.mxu0 %v4532
      %4566 = vmatprep.subr.bf16.mxu0 %v4535
      %4567 = vmatpush1.bf16.msra.mxu0 %v4534
      %4568 = vmatprep.subr.bf16.mxu0 %v4537
      %4569 = vmatpush1.bf16.msra.mxu0 %v4536
      %4570 = vmatprep.subr.bf16.mxu0 0
      %4571 = vmatpush1.bf16.msra.mxu0 0
      %4572 = vmatprep.subr.bf16.mxu0 0
      %4573 = vmatpush1.bf16.msra.mxu0 0
      %4574 = vmatprep.subr.bf16.mxu0 0
      %4575 = vmatpush1.bf16.msra.mxu0 0
      %4576 = vmatprep.subr.bf16.mxu0 0
      %4577 = vmatpush1.bf16.msra.mxu0 0
      %4578 = vmatprep.subr.bf16.mxu0 0
      %4579 = vmatpush1.bf16.msra.mxu0 0
      %4580 = vmatprep.subr.bf16.mxu0 0
      %4581 = vmatpush1.bf16.msra.mxu0 0
      %4582 = vmatprep.subr.bf16.mxu0 0
      %4583 = vmatpush1.bf16.msra.mxu0 0
      %4584 = vmatprep.subr.bf16.mxu0 0
      %4585 = vmatpush1.bf16.msra.mxu0 0
      %4586 = vmatprep.mubr.bf16.mxu0 0
      %4587 = vmatmul.mubr.bf16.gmra.mrb[0].mxu0 %v4456
      %v4588 = vpop.f32.mrb[0].mxu0
      %v4589 = vadd.f32 0.0, %v4588
      %v4590 = vpop.f32.mrb[0].mxu0
      %v4591 = vadd.f32 0.0, %v4590
      %v4592 = vpop.f32.mrb[0].mxu0
      %v4593 = vpop.f32.mrb[0].mxu0
      %4594 = vdwg.mxu0
      %v4595 = vadd.f32 %v4409, %v4589
      %v4596 = vadd.f32 %v4410, %v4591
      %s4597 = scalar_lea.vmem %s3, 10
      %v4598 = vld [vmem:[%s4597] sm:$0x3]
      %v4600 = vsel %vm3673, %v4598, 0
      %4602 = vmatprep.subr.bf16.mxu0 0
      %4603 = vmatpush1.bf16.msra.mxu0 %v3671
      %4604 = vmatprep.subr.bf16.mxu0 0
      %4605 = vmatpush1.bf16.msra.mxu0 0
      %4606 = vmatprep.subr.bf16.mxu0 0
      %4607 = vmatpush1.bf16.msra.mxu0 0
      %4608 = vmatprep.subr.bf16.mxu0 0
      %4609 = vmatpush1.bf16.msra.mxu0 0
      %4610 = vmatprep.subr.bf16.mxu0 0
      %4611 = vmatpush1.bf16.msra.mxu0 0
      %4612 = vmatprep.subr.bf16.mxu0 0
      %4613 = vmatpush1.bf16.msra.mxu0 0
      %4614 = vmatprep.subr.bf16.mxu0 0
      %4615 = vmatpush1.bf16.msra.mxu0 0
      %4616 = vmatprep.subr.bf16.mxu0 0
      %4617 = vmatpush1.bf16.msra.mxu0 0
      %4618 = vmatprep.subr.bf16.mxu0 0
      %4619 = vmatpush1.bf16.msra.mxu0 0
      %4620 = vmatprep.subr.bf16.mxu0 0
      %4621 = vmatpush1.bf16.msra.mxu0 0
      %4622 = vmatprep.subr.bf16.mxu0 0
      %4623 = vmatpush1.bf16.msra.mxu0 0
      %4624 = vmatprep.subr.bf16.mxu0 0
      %4625 = vmatpush1.bf16.msra.mxu0 0
      %4626 = vmatprep.subr.bf16.mxu0 0
      %4627 = vmatpush1.bf16.msra.mxu0 0
      %4628 = vmatprep.subr.bf16.mxu0 0
      %4629 = vmatpush1.bf16.msra.mxu0 0
      %4630 = vmatprep.subr.bf16.mxu0 0
      %4631 = vmatpush1.bf16.msra.mxu0 0
      %4632 = vmatprep.subr.bf16.mxu0 0
      %4633 = vmatpush1.bf16.msra.mxu0 0
      %4634 = vmatprep.mubr.bf16.mxu0 0
      %4635 = vmatmul.mubr.bf16.gmra.mrb[0].mxu0 %v4600
      %v4636 = vpop.f32.mrb[0].mxu0
      %v4637 = vadd.f32 0.0, %v4636
      %v4638 = vpop.f32.mrb[0].mxu0
      %v4639 = vpop.f32.mrb[0].mxu0
      %v4640 = vpop.f32.mrb[0].mxu0
      %4641 = vdwg.mxu0
      %v4642 = vpack.c.bf16 %v4637, %v4637
      %s4643 = scalar_lea.vmem %s449, 640
      %v4644 = vld [vmem:[%s4643] sm:$0xff]
      %v4645 = vld [vmem:[%s4643 + $0x8] sm:$0xff]
      %v4646 = vld [vmem:[%s4643 + $0x10] sm:$0xff]
      %v4647 = vld [vmem:[%s4643 + $0x18] sm:$0xff]
      %v4648 = vld [vmem:[%s4643 + $0x20] sm:$0xff]
      %v4649 = vld [vmem:[%s4643 + $0x28] sm:$0xff]
      %v4650 = vld [vmem:[%s4643 + $0x30] sm:$0xff]
      %v4651 = vld [vmem:[%s4643 + $0x38] sm:$0xff]
      %v4652 = vld [vmem:[%s4643 + $0x40] sm:$0xff]
      %v4653 = vld [vmem:[%s4643 + $0x48] sm:$0xff]
      %v4654 = vld [vmem:[%s4643 + $0x50] sm:$0xff]
      %v4655 = vld [vmem:[%s4643 + $0x58] sm:$0xff]
      %v4656 = vld [vmem:[%s4643 + $0x60] sm:$0xff]
      %v4657 = vld [vmem:[%s4643 + $0x68] sm:$0xff]
      %v4658 = vld [vmem:[%s4643 + $0x70] sm:$0xff]
      %v4659 = vld [vmem:[%s4643 + $0x78] sm:$0xff]
      %v4676 = vunpack.c.l.b16 %v4644
      %v4677 = vunpack.c.h.b16 %v4644
      %v4678 = vunpack.c.l.b16 %v4645
      %v4679 = vunpack.c.h.b16 %v4645
      %v4680 = vunpack.c.l.b16 %v4646
      %v4681 = vunpack.c.h.b16 %v4646
      %v4682 = vunpack.c.l.b16 %v4647
      %v4683 = vunpack.c.h.b16 %v4647
      %v4684 = vunpack.c.l.b16 %v4648
      %v4685 = vunpack.c.h.b16 %v4648
      %v4686 = vunpack.c.l.b16 %v4649
      %v4687 = vunpack.c.h.b16 %v4649
      %v4688 = vunpack.c.l.b16 %v4650
      %v4689 = vunpack.c.h.b16 %v4650
      %v4690 = vunpack.c.l.b16 %v4651
      %v4691 = vunpack.c.h.b16 %v4651
      %v4692 = vunpack.c.l.b16 %v4652
      %v4693 = vunpack.c.h.b16 %v4652
      %v4694 = vunpack.c.l.b16 %v4653
      %v4695 = vunpack.c.h.b16 %v4653
      %v4696 = vunpack.c.l.b16 %v4654
      %v4697 = vunpack.c.h.b16 %v4654
      %v4698 = vunpack.c.l.b16 %v4655
      %v4699 = vunpack.c.h.b16 %v4655
      %v4700 = vunpack.c.l.b16 %v4656
      %v4701 = vunpack.c.h.b16 %v4656
      %v4702 = vunpack.c.l.b16 %v4657
      %v4703 = vunpack.c.h.b16 %v4657
      %v4704 = vunpack.c.l.b16 %v4658
      %v4705 = vunpack.c.h.b16 %v4658
      %v4706 = vunpack.c.l.b16 %v4659
      %v4707 = vunpack.c.h.b16 %v4659
      %v4708 = vpack.c.b16 %v4678, %v4676
      %v4709 = vpack.c.b16 %v4679, %v4677
      %v4710 = vpack.c.b16 %v4682, %v4680
      %v4711 = vpack.c.b16 %v4683, %v4681
      %v4712 = vpack.c.b16 %v4686, %v4684
      %v4713 = vpack.c.b16 %v4687, %v4685
      %v4714 = vpack.c.b16 %v4690, %v4688
      %v4715 = vpack.c.b16 %v4691, %v4689
      %v4716 = vpack.c.b16 %v4694, %v4692
      %v4717 = vpack.c.b16 %v4695, %v4693
      %v4718 = vpack.c.b16 %v4698, %v4696
      %v4719 = vpack.c.b16 %v4699, %v4697
      %v4720 = vpack.c.b16 %v4702, %v4700
      %v4721 = vpack.c.b16 %v4703, %v4701
      %v4722 = vpack.c.b16 %v4706, %v4704
      %v4723 = vpack.c.b16 %v4707, %v4705
      %4740 = vmatprep.subr.bf16.mxu0 %v4709
      %4741 = vmatpush1.bf16.msra.mxu0 %v4708
      %4742 = vmatprep.subr.bf16.mxu0 %v4711
      %4743 = vmatpush1.bf16.msra.mxu0 %v4710
      %4744 = vmatprep.subr.bf16.mxu0 %v4713
      %4745 = vmatpush1.bf16.msra.mxu0 %v4712
      %4746 = vmatprep.subr.bf16.mxu0 %v4715
      %4747 = vmatpush1.bf16.msra.mxu0 %v4714
      %4748 = vmatprep.subr.bf16.mxu0 %v4717
      %4749 = vmatpush1.bf16.msra.mxu0 %v4716
      %4750 = vmatprep.subr.bf16.mxu0 %v4719
      %4751 = vmatpush1.bf16.msra.mxu0 %v4718
      %4752 = vmatprep.subr.bf16.mxu0 %v4721
      %4753 = vmatpush1.bf16.msra.mxu0 %v4720
      %4754 = vmatprep.subr.bf16.mxu0 %v4723
      %4755 = vmatpush1.bf16.msra.mxu0 %v4722
      %4756 = vmatprep.subr.bf16.mxu0 0
      %4757 = vmatpush1.bf16.msra.mxu0 0
      %4758 = vmatprep.subr.bf16.mxu0 0
      %4759 = vmatpush1.bf16.msra.mxu0 0
      %4760 = vmatprep.subr.bf16.mxu0 0
      %4761 = vmatpush1.bf16.msra.mxu0 0
      %4762 = vmatprep.subr.bf16.mxu0 0
      %4763 = vmatpush1.bf16.msra.mxu0 0
      %4764 = vmatprep.subr.bf16.mxu0 0
      %4765 = vmatpush1.bf16.msra.mxu0 0
      %4766 = vmatprep.subr.bf16.mxu0 0
      %4767 = vmatpush1.bf16.msra.mxu0 0
      %4768 = vmatprep.subr.bf16.mxu0 0
      %4769 = vmatpush1.bf16.msra.mxu0 0
      %4770 = vmatprep.subr.bf16.mxu0 0
      %4771 = vmatpush1.bf16.msra.mxu0 0
      %4772 = vmatprep.mubr.bf16.mxu0 0
      %4773 = vmatmul.mubr.bf16.gmra.mrb[0].mxu0 %v4642
      %v4774 = vpop.f32.mrb[0].mxu0
      %v4775 = vadd.f32 0.0, %v4774
      %v4776 = vpop.f32.mrb[0].mxu0
      %v4777 = vadd.f32 0.0, %v4776
      %v4778 = vpop.f32.mrb[0].mxu0
      %v4779 = vpop.f32.mrb[0].mxu0
      %4780 = vdwg.mxu0
      %v4781 = vadd.f32 %v4595, %v4775
      %v4782 = vadd.f32 %v4596, %v4777
      %s4783 = scalar_lea.vmem %s3, 12
      %v4784 = vld [vmem:[%s4783] sm:$0x3]
      %v4786 = vsel %vm3673, %v4784, 0
      %4788 = vmatprep.subr.bf16.mxu0 0
      %4789 = vmatpush1.bf16.msra.mxu0 %v3671
      %4790 = vmatprep.subr.bf16.mxu0 0
      %4791 = vmatpush1.bf16.msra.mxu0 0
      %4792 = vmatprep.subr.bf16.mxu0 0
      %4793 = vmatpush1.bf16.msra.mxu0 0
      %4794 = vmatprep.subr.bf16.mxu0 0
      %4795 = vmatpush1.bf16.msra.mxu0 0
      %4796 = vmatprep.subr.bf16.mxu0 0
      %4797 = vmatpush1.bf16.msra.mxu0 0
      %4798 = vmatprep.subr.bf16.mxu0 0
      %4799 = vmatpush1.bf16.msra.mxu0 0
      %4800 = vmatprep.subr.bf16.mxu0 0
      %4801 = vmatpush1.bf16.msra.mxu0 0
      %4802 = vmatprep.subr.bf16.mxu0 0
      %4803 = vmatpush1.bf16.msra.mxu0 0
      %4804 = vmatprep.subr.bf16.mxu0 0
      %4805 = vmatpush1.bf16.msra.mxu0 0
      %4806 = vmatprep.subr.bf16.mxu0 0
      %4807 = vmatpush1.bf16.msra.mxu0 0
      %4808 = vmatprep.subr.bf16.mxu0 0
      %4809 = vmatpush1.bf16.msra.mxu0 0
      %4810 = vmatprep.subr.bf16.mxu0 0
      %4811 = vmatpush1.bf16.msra.mxu0 0
      %4812 = vmatprep.subr.bf16.mxu0 0
      %4813 = vmatpush1.bf16.msra.mxu0 0
      %4814 = vmatprep.subr.bf16.mxu0 0
      %4815 = vmatpush1.bf16.msra.mxu0 0
      %4816 = vmatprep.subr.bf16.mxu0 0
      %4817 = vmatpush1.bf16.msra.mxu0 0
      %4818 = vmatprep.subr.bf16.mxu0 0
      %4819 = vmatpush1.bf16.msra.mxu0 0
      %4820 = vmatprep.mubr.bf16.mxu0 0
      %4821 = vmatmul.mubr.bf16.gmra.mrb[0].mxu0 %v4786
      %v4822 = vpop.f32.mrb[0].mxu0
      %v4823 = vadd.f32 0.0, %v4822
      %v4824 = vpop.f32.mrb[0].mxu0
      %v4825 = vpop.f32.mrb[0].mxu0
      %v4826 = vpop.f32.mrb[0].mxu0
      %4827 = vdwg.mxu0
      %v4828 = vpack.c.bf16 %v4823, %v4823
      %s4829 = scalar_lea.vmem %s449, 768
      %v4830 = vld [vmem:[%s4829] sm:$0xff]
      %v4831 = vld [vmem:[%s4829 + $0x8] sm:$0xff]
      %v4832 = vld [vmem:[%s4829 + $0x10] sm:$0xff]
      %v4833 = vld [vmem:[%s4829 + $0x18] sm:$0xff]
      %v4834 = vld [vmem:[%s4829 + $0x20] sm:$0xff]
      %v4835 = vld [vmem:[%s4829 + $0x28] sm:$0xff]
      %v4836 = vld [vmem:[%s4829 + $0x30] sm:$0xff]
      %v4837 = vld [vmem:[%s4829 + $0x38] sm:$0xff]
      %v4838 = vld [vmem:[%s4829 + $0x40] sm:$0xff]
      %v4839 = vld [vmem:[%s4829 + $0x48] sm:$0xff]
      %v4840 = vld [vmem:[%s4829 + $0x50] sm:$0xff]
      %v4841 = vld [vmem:[%s4829 + $0x58] sm:$0xff]
      %v4842 = vld [vmem:[%s4829 + $0x60] sm:$0xff]
      %v4843 = vld [vmem:[%s4829 + $0x68] sm:$0xff]
      %v4844 = vld [vmem:[%s4829 + $0x70] sm:$0xff]
      %v4845 = vld [vmem:[%s4829 + $0x78] sm:$0xff]
      %v4862 = vunpack.c.l.b16 %v4830
      %v4863 = vunpack.c.h.b16 %v4830
      %v4864 = vunpack.c.l.b16 %v4831
      %v4865 = vunpack.c.h.b16 %v4831
      %v4866 = vunpack.c.l.b16 %v4832
      %v4867 = vunpack.c.h.b16 %v4832
      %v4868 = vunpack.c.l.b16 %v4833
      %v4869 = vunpack.c.h.b16 %v4833
      %v4870 = vunpack.c.l.b16 %v4834
      %v4871 = vunpack.c.h.b16 %v4834
      %v4872 = vunpack.c.l.b16 %v4835
      %v4873 = vunpack.c.h.b16 %v4835
      %v4874 = vunpack.c.l.b16 %v4836
      %v4875 = vunpack.c.h.b16 %v4836
      %v4876 = vunpack.c.l.b16 %v4837
      %v4877 = vunpack.c.h.b16 %v4837
      %v4878 = vunpack.c.l.b16 %v4838
      %v4879 = vunpack.c.h.b16 %v4838
      %v4880 = vunpack.c.l.b16 %v4839
      %v4881 = vunpack.c.h.b16 %v4839
      %v4882 = vunpack.c.l.b16 %v4840
      %v4883 = vunpack.c.h.b16 %v4840
      %v4884 = vunpack.c.l.b16 %v4841
      %v4885 = vunpack.c.h.b16 %v4841
      %v4886 = vunpack.c.l.b16 %v4842
      %v4887 = vunpack.c.h.b16 %v4842
      %v4888 = vunpack.c.l.b16 %v4843
      %v4889 = vunpack.c.h.b16 %v4843
      %v4890 = vunpack.c.l.b16 %v4844
      %v4891 = vunpack.c.h.b16 %v4844
      %v4892 = vunpack.c.l.b16 %v4845
      %v4893 = vunpack.c.h.b16 %v4845
      %v4894 = vpack.c.b16 %v4864, %v4862
      %v4895 = vpack.c.b16 %v4865, %v4863
      %v4896 = vpack.c.b16 %v4868, %v4866
      %v4897 = vpack.c.b16 %v4869, %v4867
      %v4898 = vpack.c.b16 %v4872, %v4870
      %v4899 = vpack.c.b16 %v4873, %v4871
      %v4900 = vpack.c.b16 %v4876, %v4874
      %v4901 = vpack.c.b16 %v4877, %v4875
      %v4902 = vpack.c.b16 %v4880, %v4878
      %v4903 = vpack.c.b16 %v4881, %v4879
      %v4904 = vpack.c.b16 %v4884, %v4882
      %v4905 = vpack.c.b16 %v4885, %v4883
      %v4906 = vpack.c.b16 %v4888, %v4886
      %v4907 = vpack.c.b16 %v4889, %v4887
      %v4908 = vpack.c.b16 %v4892, %v4890
      %v4909 = vpack.c.b16 %v4893, %v4891
      %4926 = vmatprep.subr.bf16.mxu0 %v4895
      %4927 = vmatpush1.bf16.msra.mxu0 %v4894
      %4928 = vmatprep.subr.bf16.mxu0 %v4897
      %4929 = vmatpush1.bf16.msra.mxu0 %v4896
      %4930 = vmatprep.subr.bf16.mxu0 %v4899
      %4931 = vmatpush1.bf16.msra.mxu0 %v4898
      %4932 = vmatprep.subr.bf16.mxu0 %v4901
      %4933 = vmatpush1.bf16.msra.mxu0 %v4900
      %4934 = vmatprep.subr.bf16.mxu0 %v4903
      %4935 = vmatpush1.bf16.msra.mxu0 %v4902
      %4936 = vmatprep.subr.bf16.mxu0 %v4905
      %4937 = vmatpush1.bf16.msra.mxu0 %v4904
      %4938 = vmatprep.subr.bf16.mxu0 %v4907
      %4939 = vmatpush1.bf16.msra.mxu0 %v4906
      %4940 = vmatprep.subr.bf16.mxu0 %v4909
      %4941 = vmatpush1.bf16.msra.mxu0 %v4908
      %4942 = vmatprep.subr.bf16.mxu0 0
      %4943 = vmatpush1.bf16.msra.mxu0 0
      %4944 = vmatprep.subr.bf16.mxu0 0
      %4945 = vmatpush1.bf16.msra.mxu0 0
      %4946 = vmatprep.subr.bf16.mxu0 0
      %4947 = vmatpush1.bf16.msra.mxu0 0
      %4948 = vmatprep.subr.bf16.mxu0 0
      %4949 = vmatpush1.bf16.msra.mxu0 0
      %4950 = vmatprep.subr.bf16.mxu0 0
      %4951 = vmatpush1.bf16.msra.mxu0 0
      %4952 = vmatprep.subr.bf16.mxu0 0
      %4953 = vmatpush1.bf16.msra.mxu0 0
      %4954 = vmatprep.subr.bf16.mxu0 0
      %4955 = vmatpush1.bf16.msra.mxu0 0
      %4956 = vmatprep.subr.bf16.mxu0 0
      %4957 = vmatpush1.bf16.msra.mxu0 0
      %4958 = vmatprep.mubr.bf16.mxu0 0
      %4959 = vmatmul.mubr.bf16.gmra.mrb[0].mxu0 %v4828
      %v4960 = vpop.f32.mrb[0].mxu0
      %v4961 = vadd.f32 0.0, %v4960
      %v4962 = vpop.f32.mrb[0].mxu0
      %v4963 = vadd.f32 0.0, %v4962
      %v4964 = vpop.f32.mrb[0].mxu0
      %v4965 = vpop.f32.mrb[0].mxu0
      %4966 = vdwg.mxu0
      %v4967 = vadd.f32 %v4781, %v4961
      %v4968 = vadd.f32 %v4782, %v4963
      %s4969 = scalar_lea.vmem %s3, 14
      %v4970 = vld [vmem:[%s4969] sm:$0x3]
      %v4972 = vsel %vm3673, %v4970, 0
      %4974 = vmatprep.subr.bf16.mxu0 0
      %4975 = vmatpush1.bf16.msra.mxu0 %v3671
      %4976 = vmatprep.subr.bf16.mxu0 0
      %4977 = vmatpush1.bf16.msra.mxu0 0
      %4978 = vmatprep.subr.bf16.mxu0 0
      %4979 = vmatpush1.bf16.msra.mxu0 0
      %4980 = vmatprep.subr.bf16.mxu0 0
      %4981 = vmatpush1.bf16.msra.mxu0 0
      %4982 = vmatprep.subr.bf16.mxu0 0
      %4983 = vmatpush1.bf16.msra.mxu0 0
      %4984 = vmatprep.subr.bf16.mxu0 0
      %4985 = vmatpush1.bf16.msra.mxu0 0
      %4986 = vmatprep.subr.bf16.mxu0 0
      %4987 = vmatpush1.bf16.msra.mxu0 0
      %4988 = vmatprep.subr.bf16.mxu0 0
      %4989 = vmatpush1.bf16.msra.mxu0 0
      %4990 = vmatprep.subr.bf16.mxu0 0
      %4991 = vmatpush1.bf16.msra.mxu0 0
      %4992 = vmatprep.subr.bf16.mxu0 0
      %4993 = vmatpush1.bf16.msra.mxu0 0
      %4994 = vmatprep.subr.bf16.mxu0 0
      %4995 = vmatpush1.bf16.msra.mxu0 0
      %4996 = vmatprep.subr.bf16.mxu0 0
      %4997 = vmatpush1.bf16.msra.mxu0 0
      %4998 = vmatprep.subr.bf16.mxu0 0
      %4999 = vmatpush1.bf16.msra.mxu0 0
      %5000 = vmatprep.subr.bf16.mxu0 0
      %5001 = vmatpush1.bf16.msra.mxu0 0
      %5002 = vmatprep.subr.bf16.mxu0 0
      %5003 = vmatpush1.bf16.msra.mxu0 0
      %5004 = vmatprep.subr.bf16.mxu0 0
      %5005 = vmatpush1.bf16.msra.mxu0 0
      %5006 = vmatprep.mubr.bf16.mxu0 0
      %5007 = vmatmul.mubr.bf16.gmra.mrb[0].mxu0 %v4972
      %v5008 = vpop.f32.mrb[0].mxu0
      %v5009 = vadd.f32 0.0, %v5008
      %v5010 = vpop.f32.mrb[0].mxu0
      %v5011 = vpop.f32.mrb[0].mxu0
      %v5012 = vpop.f32.mrb[0].mxu0
      %5013 = vdwg.mxu0
      %v5014 = vpack.c.bf16 %v5009, %v5009
      %s5015 = scalar_lea.vmem %s449, 896
      %v5016 = vld [vmem:[%s5015] sm:$0xff]
      %v5017 = vld [vmem:[%s5015 + $0x8] sm:$0xff]
      %v5018 = vld [vmem:[%s5015 + $0x10] sm:$0xff]
      %v5019 = vld [vmem:[%s5015 + $0x18] sm:$0xff]
      %v5020 = vld [vmem:[%s5015 + $0x20] sm:$0xff]
      %v5021 = vld [vmem:[%s5015 + $0x28] sm:$0xff]
      %v5022 = vld [vmem:[%s5015 + $0x30] sm:$0xff]
      %v5023 = vld [vmem:[%s5015 + $0x38] sm:$0xff]
      %v5024 = vld [vmem:[%s5015 + $0x40] sm:$0xff]
      %v5025 = vld [vmem:[%s5015 + $0x48] sm:$0xff]
      %v5026 = vld [vmem:[%s5015 + $0x50] sm:$0xff]
      %v5027 = vld [vmem:[%s5015 + $0x58] sm:$0xff]
      %v5028 = vld [vmem:[%s5015 + $0x60] sm:$0xff]
      %v5029 = vld [vmem:[%s5015 + $0x68] sm:$0xff]
      %v5030 = vld [vmem:[%s5015 + $0x70] sm:$0xff]
      %v5031 = vld [vmem:[%s5015 + $0x78] sm:$0xff]
      %v5048 = vunpack.c.l.b16 %v5016
      %v5049 = vunpack.c.h.b16 %v5016
      %v5050 = vunpack.c.l.b16 %v5017
      %v5051 = vunpack.c.h.b16 %v5017
      %v5052 = vunpack.c.l.b16 %v5018
      %v5053 = vunpack.c.h.b16 %v5018
      %v5054 = vunpack.c.l.b16 %v5019
      %v5055 = vunpack.c.h.b16 %v5019
      %v5056 = vunpack.c.l.b16 %v5020
      %v5057 = vunpack.c.h.b16 %v5020
      %v5058 = vunpack.c.l.b16 %v5021
      %v5059 = vunpack.c.h.b16 %v5021
      %v5060 = vunpack.c.l.b16 %v5022
      %v5061 = vunpack.c.h.b16 %v5022
      %v5062 = vunpack.c.l.b16 %v5023
      %v5063 = vunpack.c.h.b16 %v5023
      %v5064 = vunpack.c.l.b16 %v5024
      %v5065 = vunpack.c.h.b16 %v5024
      %v5066 = vunpack.c.l.b16 %v5025
      %v5067 = vunpack.c.h.b16 %v5025
      %v5068 = vunpack.c.l.b16 %v5026
      %v5069 = vunpack.c.h.b16 %v5026
      %v5070 = vunpack.c.l.b16 %v5027
      %v5071 = vunpack.c.h.b16 %v5027
      %v5072 = vunpack.c.l.b16 %v5028
      %v5073 = vunpack.c.h.b16 %v5028
      %v5074 = vunpack.c.l.b16 %v5029
      %v5075 = vunpack.c.h.b16 %v5029
      %v5076 = vunpack.c.l.b16 %v5030
      %v5077 = vunpack.c.h.b16 %v5030
      %v5078 = vunpack.c.l.b16 %v5031
      %v5079 = vunpack.c.h.b16 %v5031
      %v5080 = vpack.c.b16 %v5050, %v5048
      %v5081 = vpack.c.b16 %v5051, %v5049
      %v5082 = vpack.c.b16 %v5054, %v5052
      %v5083 = vpack.c.b16 %v5055, %v5053
      %v5084 = vpack.c.b16 %v5058, %v5056
      %v5085 = vpack.c.b16 %v5059, %v5057
      %v5086 = vpack.c.b16 %v5062, %v5060
      %v5087 = vpack.c.b16 %v5063, %v5061
      %v5088 = vpack.c.b16 %v5066, %v5064
      %v5089 = vpack.c.b16 %v5067, %v5065
      %v5090 = vpack.c.b16 %v5070, %v5068
      %v5091 = vpack.c.b16 %v5071, %v5069
      %v5092 = vpack.c.b16 %v5074, %v5072
      %v5093 = vpack.c.b16 %v5075, %v5073
      %v5094 = vpack.c.b16 %v5078, %v5076
      %v5095 = vpack.c.b16 %v5079, %v5077
      %5112 = vmatprep.subr.bf16.mxu0 %v5081
      %5113 = vmatpush1.bf16.msra.mxu0 %v5080
      %5114 = vmatprep.subr.bf16.mxu0 %v5083
      %5115 = vmatpush1.bf16.msra.mxu0 %v5082
      %5116 = vmatprep.subr.bf16.mxu0 %v5085
      %5117 = vmatpush1.bf16.msra.mxu0 %v5084
      %5118 = vmatprep.subr.bf16.mxu0 %v5087
      %5119 = vmatpush1.bf16.msra.mxu0 %v5086
      %5120 = vmatprep.subr.bf16.mxu0 %v5089
      %5121 = vmatpush1.bf16.msra.mxu0 %v5088
      %5122 = vmatprep.subr.bf16.mxu0 %v5091
      %5123 = vmatpush1.bf16.msra.mxu0 %v5090
      %5124 = vmatprep.subr.bf16.mxu0 %v5093
      %5125 = vmatpush1.bf16.msra.mxu0 %v5092
      %5126 = vmatprep.subr.bf16.mxu0 %v5095
      %5127 = vmatpush1.bf16.msra.mxu0 %v5094
      %5128 = vmatprep.subr.bf16.mxu0 0
      %5129 = vmatpush1.bf16.msra.mxu0 0
      %5130 = vmatprep.subr.bf16.mxu0 0
      %5131 = vmatpush1.bf16.msra.mxu0 0
      %5132 = vmatprep.subr.bf16.mxu0 0
      %5133 = vmatpush1.bf16.msra.mxu0 0
      %5134 = vmatprep.subr.bf16.mxu0 0
      %5135 = vmatpush1.bf16.msra.mxu0 0
      %5136 = vmatprep.subr.bf16.mxu0 0
      %5137 = vmatpush1.bf16.msra.mxu0 0
      %5138 = vmatprep.subr.bf16.mxu0 0
      %5139 = vmatpush1.bf16.msra.mxu0 0
      %5140 = vmatprep.subr.bf16.mxu0 0
      %5141 = vmatpush1.bf16.msra.mxu0 0
      %5142 = vmatprep.subr.bf16.mxu0 0
      %5143 = vmatpush1.bf16.msra.mxu0 0
      %5144 = vmatprep.mubr.bf16.mxu0 0
      %5145 = vmatmul.mubr.bf16.gmra.mrb[0].mxu0 %v5014
      %v5146 = vpop.f32.mrb[0].mxu0
      %v5147 = vadd.f32 0.0, %v5146
      %v5148 = vpop.f32.mrb[0].mxu0
      %v5149 = vadd.f32 0.0, %v5148
      %v5150 = vpop.f32.mrb[0].mxu0
      %v5151 = vpop.f32.mrb[0].mxu0
      %5152 = vdwg.mxu0
      %v5153 = vadd.f32 %v4967, %v5147
      %v5154 = vadd.f32 %v4968, %v5149
      %s5155 = scalar_lea.vmem %s3, 16
      %v5156 = vld [vmem:[%s5155] sm:$0x3]
      %v5158 = vsel %vm3673, %v5156, 0
      %5160 = vmatprep.subr.bf16.mxu0 0
      %5161 = vmatpush1.bf16.msra.mxu0 %v3671
      %5162 = vmatprep.subr.bf16.mxu0 0
      %5163 = vmatpush1.bf16.msra.mxu0 0
      %5164 = vmatprep.subr.bf16.mxu0 0
      %5165 = vmatpush1.bf16.msra.mxu0 0
      %5166 = vmatprep.subr.bf16.mxu0 0
      %5167 = vmatpush1.bf16.msra.mxu0 0
      %5168 = vmatprep.subr.bf16.mxu0 0
      %5169 = vmatpush1.bf16.msra.mxu0 0
      %5170 = vmatprep.subr.bf16.mxu0 0
      %5171 = vmatpush1.bf16.msra.mxu0 0
      %5172 = vmatprep.subr.bf16.mxu0 0
      %5173 = vmatpush1.bf16.msra.mxu0 0
      %5174 = vmatprep.subr.bf16.mxu0 0
      %5175 = vmatpush1.bf16.msra.mxu0 0
      %5176 = vmatprep.subr.bf16.mxu0 0
      %5177 = vmatpush1.bf16.msra.mxu0 0
      %5178 = vmatprep.subr.bf16.mxu0 0
      %5179 = vmatpush1.bf16.msra.mxu0 0
      %5180 = vmatprep.subr.bf16.mxu0 0
      %5181 = vmatpush1.bf16.msra.mxu0 0
      %5182 = vmatprep.subr.bf16.mxu0 0
      %5183 = vmatpush1.bf16.msra.mxu0 0
      %5184 = vmatprep.subr.bf16.mxu0 0
      %5185 = vmatpush1.bf16.msra.mxu0 0
      %5186 = vmatprep.subr.bf16.mxu0 0
      %5187 = vmatpush1.bf16.msra.mxu0 0
      %5188 = vmatprep.subr.bf16.mxu0 0
      %5189 = vmatpush1.bf16.msra.mxu0 0
      %5190 = vmatprep.subr.bf16.mxu0 0
      %5191 = vmatpush1.bf16.msra.mxu0 0
      %5192 = vmatprep.mubr.bf16.mxu0 0
      %5193 = vmatmul.mubr.bf16.gmra.mrb[0].mxu0 %v5158
      %v5194 = vpop.f32.mrb[0].mxu0
      %v5195 = vadd.f32 0.0, %v5194
      %v5196 = vpop.f32.mrb[0].mxu0
      %v5197 = vpop.f32.mrb[0].mxu0
      %v5198 = vpop.f32.mrb[0].mxu0
      %5199 = vdwg.mxu0
      %v5200 = vpack.c.bf16 %v5195, %v5195
      %s5201 = scalar_lea.vmem %s449, 1024
      %v5202 = vld [vmem:[%s5201] sm:$0xff]
      %v5203 = vld [vmem:[%s5201 + $0x8] sm:$0xff]
      %v5204 = vld [vmem:[%s5201 + $0x10] sm:$0xff]
      %v5205 = vld [vmem:[%s5201 + $0x18] sm:$0xff]
      %v5206 = vld [vmem:[%s5201 + $0x20] sm:$0xff]
      %v5207 = vld [vmem:[%s5201 + $0x28] sm:$0xff]
      %v5208 = vld [vmem:[%s5201 + $0x30] sm:$0xff]
      %v5209 = vld [vmem:[%s5201 + $0x38] sm:$0xff]
      %v5210 = vld [vmem:[%s5201 + $0x40] sm:$0xff]
      %v5211 = vld [vmem:[%s5201 + $0x48] sm:$0xff]
      %v5212 = vld [vmem:[%s5201 + $0x50] sm:$0xff]
      %v5213 = vld [vmem:[%s5201 + $0x58] sm:$0xff]
      %v5214 = vld [vmem:[%s5201 + $0x60] sm:$0xff]
      %v5215 = vld [vmem:[%s5201 + $0x68] sm:$0xff]
      %v5216 = vld [vmem:[%s5201 + $0x70] sm:$0xff]
      %v5217 = vld [vmem:[%s5201 + $0x78] sm:$0xff]
      %v5234 = vunpack.c.l.b16 %v5202
      %v5235 = vunpack.c.h.b16 %v5202
      %v5236 = vunpack.c.l.b16 %v5203
      %v5237 = vunpack.c.h.b16 %v5203
      %v5238 = vunpack.c.l.b16 %v5204
      %v5239 = vunpack.c.h.b16 %v5204
      %v5240 = vunpack.c.l.b16 %v5205
      %v5241 = vunpack.c.h.b16 %v5205
      %v5242 = vunpack.c.l.b16 %v5206
      %v5243 = vunpack.c.h.b16 %v5206
      %v5244 = vunpack.c.l.b16 %v5207
      %v5245 = vunpack.c.h.b16 %v5207
      %v5246 = vunpack.c.l.b16 %v5208
      %v5247 = vunpack.c.h.b16 %v5208
      %v5248 = vunpack.c.l.b16 %v5209
      %v5249 = vunpack.c.h.b16 %v5209
      %v5250 = vunpack.c.l.b16 %v5210
      %v5251 = vunpack.c.h.b16 %v5210
      %v5252 = vunpack.c.l.b16 %v5211
      %v5253 = vunpack.c.h.b16 %v5211
      %v5254 = vunpack.c.l.b16 %v5212
      %v5255 = vunpack.c.h.b16 %v5212
      %v5256 = vunpack.c.l.b16 %v5213
      %v5257 = vunpack.c.h.b16 %v5213
      %v5258 = vunpack.c.l.b16 %v5214
      %v5259 = vunpack.c.h.b16 %v5214
      %v5260 = vunpack.c.l.b16 %v5215
      %v5261 = vunpack.c.h.b16 %v5215
      %v5262 = vunpack.c.l.b16 %v5216
      %v5263 = vunpack.c.h.b16 %v5216
      %v5264 = vunpack.c.l.b16 %v5217
      %v5265 = vunpack.c.h.b16 %v5217
      %v5266 = vpack.c.b16 %v5236, %v5234
      %v5267 = vpack.c.b16 %v5237, %v5235
      %v5268 = vpack.c.b16 %v5240, %v5238
      %v5269 = vpack.c.b16 %v5241, %v5239
      %v5270 = vpack.c.b16 %v5244, %v5242
      %v5271 = vpack.c.b16 %v5245, %v5243
      %v5272 = vpack.c.b16 %v5248, %v5246
      %v5273 = vpack.c.b16 %v5249, %v5247
      %v5274 = vpack.c.b16 %v5252, %v5250
      %v5275 = vpack.c.b16 %v5253, %v5251
      %v5276 = vpack.c.b16 %v5256, %v5254
      %v5277 = vpack.c.b16 %v5257, %v5255
      %v5278 = vpack.c.b16 %v5260, %v5258
      %v5279 = vpack.c.b16 %v5261, %v5259
      %v5280 = vpack.c.b16 %v5264, %v5262
      %v5281 = vpack.c.b16 %v5265, %v5263
      %5298 = vmatprep.subr.bf16.mxu0 %v5267
      %5299 = vmatpush1.bf16.msra.mxu0 %v5266
      %5300 = vmatprep.subr.bf16.mxu0 %v5269
      %5301 = vmatpush1.bf16.msra.mxu0 %v5268
      %5302 = vmatprep.subr.bf16.mxu0 %v5271
      %5303 = vmatpush1.bf16.msra.mxu0 %v5270
      %5304 = vmatprep.subr.bf16.mxu0 %v5273
      %5305 = vmatpush1.bf16.msra.mxu0 %v5272
      %5306 = vmatprep.subr.bf16.mxu0 %v5275
      %5307 = vmatpush1.bf16.msra.mxu0 %v5274
      %5308 = vmatprep.subr.bf16.mxu0 %v5277
      %5309 = vmatpush1.bf16.msra.mxu0 %v5276
      %5310 = vmatprep.subr.bf16.mxu0 %v5279
      %5311 = vmatpush1.bf16.msra.mxu0 %v5278
      %5312 = vmatprep.subr.bf16.mxu0 %v5281
      %5313 = vmatpush1.bf16.msra.mxu0 %v5280
      %5314 = vmatprep.subr.bf16.mxu0 0
      %5315 = vmatpush1.bf16.msra.mxu0 0
      %5316 = vmatprep.subr.bf16.mxu0 0
      %5317 = vmatpush1.bf16.msra.mxu0 0
      %5318 = vmatprep.subr.bf16.mxu0 0
      %5319 = vmatpush1.bf16.msra.mxu0 0
      %5320 = vmatprep.subr.bf16.mxu0 0
      %5321 = vmatpush1.bf16.msra.mxu0 0
      %5322 = vmatprep.subr.bf16.mxu0 0
      %5323 = vmatpush1.bf16.msra.mxu0 0
      %5324 = vmatprep.subr.bf16.mxu0 0
      %5325 = vmatpush1.bf16.msra.mxu0 0
      %5326 = vmatprep.subr.bf16.mxu0 0
      %5327 = vmatpush1.bf16.msra.mxu0 0
      %5328 = vmatprep.subr.bf16.mxu0 0
      %5329 = vmatpush1.bf16.msra.mxu0 0
      %5330 = vmatprep.mubr.bf16.mxu0 0
      %5331 = vmatmul.mubr.bf16.gmra.mrb[0].mxu0 %v5200
      %v5332 = vpop.f32.mrb[0].mxu0
      %v5333 = vadd.f32 0.0, %v5332
      %v5334 = vpop.f32.mrb[0].mxu0
      %v5335 = vadd.f32 0.0, %v5334
      %v5336 = vpop.f32.mrb[0].mxu0
      %v5337 = vpop.f32.mrb[0].mxu0
      %5338 = vdwg.mxu0
      %v5339 = vadd.f32 %v5153, %v5333
      %v5340 = vadd.f32 %v5154, %v5335
      %v5341 = vld [vmem:[%s459] sm:$0x3]
      %v5343 = vlaneseq
      %v5344 = vshrl.u32 %v5343, 7
      %v5345 = vsub.s32 0, %v5344
      %v5346 = vrot.slane %v5341, %v5345
      %v5347 = vlaneseq
      %v5348 = vshrl.u32 %v5347, 7
      %v5349 = vsub.s32 1, %v5348
      %v5350 = vrot.slane %v5341, %v5349
      %v5353 = vadd.f32 %v5339, %v5346
      %v5354 = vadd.f32 %v5340, %v5350
      %v5355 = vmax.f32 %v5353, 0.0
      %v5356 = vmax.f32 %v5354, 0.0
      %v5359 = vcombine.low %v5355, %v5356
      %5361 = vst [vmem:[%s464] sm:$0xff] %v5359
      %p5362 = scmp.lt.s32.totalorder %s21, 1
      %s5363 = scalar_select %p5362, %s21, 1
      %s5364 = smul.addr %s5363, 2
      %s5365 = smul.addr %s5364, 4
      %s5366 = scalar_lea.vmem %s10, %s5365
      // Predicated region
      $region61: #{_lambda_.2} parent=59 // pred_check
        %p5367 = pneg %p284
      $region62: #{_lambda_.2} parent=59 // pred_check_branch
        %5369 = sbr.rel (%p5367) target = $region64
      $region63: #{_lambda_.2} parent=59 // pred_region
        _
      $region64: #{_lambda_.2} parent=59 // pred_fallthru
        _
    $region60: #{_lambda_.2} parent=5 // pred_fallthru
      _
    %p5370 = scmp.le.s32.totalorder 2, %s16
    // Predicated region
    $region65: #{_lambda_.2} parent=5 // pred_check
      %p5371 = pneg %p5370
    $region66: #{_lambda_.2} parent=5 // pred_check_branch
      %5373 = sbr.rel (%p5371) target = $region68
    $region67: #{_lambda_.2} parent=5 // pred_region
      %s5374 = ssub.s32 %s16, 2
      // Predicated region
      $region69: #{_lambda_.2} parent=67 // pred_check
        %p5375 = pneg %p290
      $region70: #{_lambda_.2} parent=67 // pred_check_branch
        %5377 = sbr.rel (%p5375) target = $region72
      $region71: #{_lambda_.2} parent=67 // pred_region
        %p5378 = scmp.lt.s32.totalorder %s22, 1
        %s5379 = scalar_select %p5378, %s22, 1
        %s5380 = smul.addr %s5379, 2
        %s5381 = smul.addr %s5380, 4
        %s5382 = scalar_lea.vmem %s10, %s5381
      $region72: #{_lambda_.2} parent=67 // pred_fallthru
        _
    $region68: #{_lambda_.2} parent=5 // pred_fallthru
      _
  $region6: #{_lambda_.2} parent=0 // loop_footer
    %s20 = sadd.s32 1, %s16
  $region7: #{_lambda_.2} parent=0 // loop_footer_branch
    %15 = sbr.rel target = $region3
  $region8: #{_lambda_.2} parent=0 // loop_exit
    _

</llo_original>
